<compile_context>
chip_gen: v7x
topology: tpu7x:2x2x1
jax: 0.10.0
libtpu: 0.0.40
codegen_flags: <defaults>
</compile_context>

<pallas_src>
import math

import jax
import jax.numpy as jnp
from jax import lax
from jax.experimental import pallas as pl
from jax.experimental.pallas import tpu as pltpu

PAD, BOS, EOS = 0, 1, 2
NEG_INF = -1e30
TC = 8   # encoder time-steps per grid chunk
TD = 4   # decoder time-steps per grid chunk


def _rup(x, m):
    return ((x + m - 1) // m) * m


def _bf(x):
    return x.astype(jnp.bfloat16)


def _vmem_limit(block_bytes, scratch_bytes=0):
    # Default pipelining double-buffers every block; add headroom, clamp under v7x's 64 MiB.
    need = 2 * block_bytes + scratch_bytes + (2 << 20)
    return int(min(max(need, 16 << 20), 56 << 20))


# ----------------------------------------------------------------------------- encoder kernel
def encoder_kernel(lens_ref, emb_ref, wih_ref, whh_ref, bih_ref, bhh_ref,
                   outs_ref, hlast_ref):
    Bp, tc, Hp = outs_ref.shape
    c = pl.program_id(0)

    @pl.when(c == 0)
    def _():
        hlast_ref[...] = jnp.zeros_like(hlast_ref)

    # Hoisted input projection for the whole chunk: [TC*Bp, Ep] @ [Ep, 3Hp] (MXU, bf16 -> f32).
    gx_all = jnp.dot(emb_ref[...], wih_ref[...],
                     preferred_element_type=jnp.float32) + bih_ref[...]
    whh = whh_ref[...]
    bhh = bhh_ref[...]
    lens = lens_ref[...]                    # [Bp, 1] int32
    h = hlast_ref[...]                      # carried hidden state, f32 [Bp, Hp]

    outs = []
    for tt in range(tc):                    # static unroll of the chunk recurrence
        t = c * tc + tt
        gx = gx_all[tt * Bp:(tt + 1) * Bp, :]
        gh = jnp.dot(_bf(h), whh, preferred_element_type=jnp.float32) + bhh
        r = jax.nn.sigmoid(gx[:, 0:Hp] + gh[:, 0:Hp])
        z = jax.nn.sigmoid(gx[:, Hp:2 * Hp] + gh[:, Hp:2 * Hp])
        n = jnp.tanh(gx[:, 2 * Hp:3 * Hp] + r * gh[:, 2 * Hp:3 * Hp])
        hn = (1.0 - z) * n + z * h
        valid = t < lens                    # pack_padded_sequence semantics
        h = jnp.where(valid, hn, h)         # freeze hidden past each length
        outs.append(jnp.where(valid, hn, 0.0))  # zero outputs past length

    # Single dense bf16 store for the whole chunk (no per-step masked partial stores).
    outs_ref[...] = jnp.stack(outs, axis=1).astype(jnp.bfloat16)
    hlast_ref[...] = h


def run_encoder(emb_flat, lens, pp, *, Sp, Bp, Hp, Ep):
    nc = Sp // TC
    block_bytes = (Bp * 4 + TC * Bp * Ep * 2 + Ep * 3 * Hp * 2 + Hp * 3 * Hp * 2
                   + 2 * 3 * Hp * 4 + Bp * TC * Hp * 2 + Bp * Hp * 4)
    grid_spec = pltpu.PrefetchScalarGridSpec(
        num_scalar_prefetch=0,
        grid=(nc,),
        in_specs=[
            pl.BlockSpec((Bp, 1), lambda c: (0, 0)),            # lengths (resident)
            pl.BlockSpec((TC * Bp, Ep), lambda c: (c, 0)),      # embedded inputs, per chunk
            pl.BlockSpec((Ep, 3 * Hp), lambda c: (0, 0)),       # W_ih (resident)
            pl.BlockSpec((Hp, 3 * Hp), lambda c: (0, 0)),       # W_hh (resident)
            pl.BlockSpec((1, 3 * Hp), lambda c: (0, 0)),        # b_ih
            pl.BlockSpec((1, 3 * Hp), lambda c: (0, 0)),        # b_hh
        ],
        out_specs=(
            pl.BlockSpec((Bp, TC, Hp), lambda c: (0, c, 0)),    # encoder outputs [B,S,H] bf16
            pl.BlockSpec((Bp, Hp), lambda c: (0, 0)),           # final hidden (resident acc)
        ),
    )
    return pl.pallas_call(
        encoder_kernel,
        grid_spec=grid_spec,
        out_shape=(jax.ShapeDtypeStruct((Bp, Sp, Hp), jnp.bfloat16),
                   jax.ShapeDtypeStruct((Bp, Hp), jnp.float32)),
        compiler_params=pltpu.CompilerParams(
            dimension_semantics=("arbitrary",),
            vmem_limit_bytes=_vmem_limit(block_bytes)),
    )(lens, emb_flat, pp["enc_wih"], pp["enc_whh"], pp["enc_bih"], pp["enc_bhh"])


# ----------------------------------------------------------------------------- fused decoder
def decoder_kernel(tf_ref, tgt_ref, h0_ref, lens_ref, enc_ref,
                   wbig_ref, bbig_ref, wcat_ref, bcat_ref, wout_ref, bout_ref,
                   loss_ref, h_scr, tok_scr, acc_ref):
    td, Bp, _ = tgt_ref.shape
    _, Sp, Hp = enc_ref.shape
    Vp = wout_ref.shape[1]
    c = pl.program_id(0)

    @pl.when(c == 0)
    def _():
        h_scr[...] = h0_ref[...]
        tok_scr[...] = jnp.full((Bp, 1), BOS, dtype=jnp.int32)
        acc_ref[0] = jnp.float32(0.0)
        acc_ref[1] = jnp.float32(0.0)

    # Hoisted per-chunk constants.
    cols = lax.broadcasted_iota(jnp.int32, (Bp, Vp), 1)
    enc = enc_ref[...]                                           # bf16 [Bp, Sp, Hp] resident
    kpos = lax.broadcasted_iota(jnp.int32, (Bp, 1, Sp), 2)
    lens3 = jnp.reshape(lens_ref[...], (Bp, 1, 1))
    wbig, bbig = wbig_ref[...], bbig_ref[...]
    wcat, bcat = wcat_ref[...], bcat_ref[...]
    wout, bout = wout_ref[...], bout_ref[...]

    h = h_scr[...]
    tok = tok_scr[...]
    total = acc_ref[0]
    count = acc_ref[1]

    for tt in range(td):                                         # static unroll of the chunk
        t = c * td + tt

        # Embedding folded into the GRU input projection; x/h projections fused:
        #   [onehot | h_bf16] @ [[EW_r, EW_z, EW_n, 0], [Whr, Whz, 0, Whn]] -> [Bp, 4Hp]
        onehot = (cols == tok).astype(jnp.bfloat16)
        xh = jnp.concatenate([onehot, _bf(h)], axis=1)
        g = jnp.dot(xh, wbig, preferred_element_type=jnp.float32) + bbig
        r = jax.nn.sigmoid(g[:, 0:Hp])
        z = jax.nn.sigmoid(g[:, Hp:2 * Hp])
        n = jnp.tanh(g[:, 2 * Hp:3 * Hp] + r * g[:, 3 * Hp:4 * Hp])
        hn = (1.0 - z) * n + z * h                               # [Bp, Hp] f32

        # Luong dot attention over bf16 encoder outputs (MXU einsums) with length masking.
        q = jnp.reshape(_bf(hn), (Bp, 1, Hp))
        scores = jnp.einsum('bqd,bkd->bqk', q, enc,
                            preferred_element_type=jnp.float32)  # [Bp, 1, Sp]
        scores = jnp.where(kpos < lens3, scores, NEG_INF)
        m = jnp.max(scores, axis=2, keepdims=True)
        e = jnp.exp(scores - m)
        attn = e * pl.reciprocal(jnp.sum(e, axis=2, keepdims=True), approx=True)
        ctx = jnp.einsum('bqk,bkd->bqd', _bf(attn), enc,
                         preferred_element_type=jnp.float32)     # [Bp, 1, Hp]
        context = jnp.reshape(ctx, (Bp, Hp))

        # Fused concat projection: tanh(concat([hn, ctx]) @ W_cat + b), then output projection.
        cat_in = jnp.concatenate([_bf(hn), _bf(context)], axis=1)
        cat = jnp.tanh(jnp.dot(cat_in, wcat, preferred_element_type=jnp.float32) + bcat)
        logits = jnp.dot(_bf(cat), wout,
                         preferred_element_type=jnp.float32) + bout          # [Bp, Vp]

        # Fused NLLLoss(ignore_index=PAD): running sum / count (no [T*B,V] materialization).
        maxv = jnp.max(logits, axis=1, keepdims=True)
        lse = maxv + jnp.log(jnp.sum(jnp.exp(logits - maxv), axis=1, keepdims=True))
        tgt = tgt_ref[tt]                                        # [Bp, 1] int32
        tlogit = jnp.sum(jnp.where(cols == tgt, logits, 0.0), axis=1, keepdims=True)
        valid = (tgt != PAD).astype(jnp.float32)
        total = total + jnp.sum((lse - tlogit) * valid)
        count = count + jnp.sum(valid)

        # Greedy argmax (first max index, like torch.topk(1)) + teacher forcing.
        topi = jnp.min(jnp.where(logits == maxv, cols, Vp), axis=1, keepdims=True)
        use_tf = tf_ref[t] > 0
        tok = jnp.where(use_tf, tgt, topi).astype(jnp.int32)
        h = hn

    h_scr[...] = h
    tok_scr[...] = tok
    acc_ref[0] = total
    acc_ref[1] = count

    @pl.when(c == pl.num_programs(0) - 1)
    def _():
        loss_ref[0, 0] = total / jnp.maximum(count, 1.0)


def run_decoder(tf_flags, tgt, h0, lens, enc, pp):
    Bp, Sp, Hp = enc.shape
    Tp = tgt.shape[0]
    Vp = pp["w_out"].shape[1]
    nch = Tp // TD
    block_bytes = (TD * Bp * 4 + Bp * Hp * 4 + Bp * 4 + Bp * Sp * Hp * 2
                   + (Vp + Hp) * 4 * Hp * 2 + 4 * Hp * 4 + 2 * Hp * Hp * 2 + Hp * 4
                   + Hp * Vp * 2 + Vp * 4)
    scratch_bytes = Bp * Hp * 4 + Bp * 4 + 8
    # TODO(synk): large-V path — vocab-tile grid axis with online logsumexp/argmax so
    # w_out/b_out stream; pl.Buffered(1) on constant-index blocks; v7x batch-parallel axis.
    grid_spec = pltpu.PrefetchScalarGridSpec(
        num_scalar_prefetch=1,                                   # teacher-forcing flags in SMEM
        grid=(nch,),
        in_specs=[
            pl.BlockSpec((TD, Bp, 1), lambda c, tf: (c, 0, 0)),  # per-chunk target tokens
            pl.BlockSpec((Bp, Hp), lambda c, tf: (0, 0)),        # initial hidden
            pl.BlockSpec((Bp, 1), lambda c, tf: (0, 0)),         # input lengths
            pl.BlockSpec((Bp, Sp, Hp), lambda c, tf: (0, 0, 0)),  # encoder outputs (bf16)
            pl.BlockSpec((Vp + Hp, 4 * Hp), lambda c, tf: (0, 0)),  # fused [EW | W_hh] stack
            pl.BlockSpec((1, 4 * Hp), lambda c, tf: (0, 0)),     # fused GRU bias
            pl.BlockSpec((2 * Hp, Hp), lambda c, tf: (0, 0)),    # fused W_concat
            pl.BlockSpec((1, Hp), lambda c, tf: (0, 0)),         # b_concat
            pl.BlockSpec((Hp, Vp), lambda c, tf: (0, 0)),        # W_out
            pl.BlockSpec((1, Vp), lambda c, tf: (0, 0)),         # b_out (padded cols -1e9)
        ],
        out_specs=pl.BlockSpec(memory_space=pltpu.MemorySpace.SMEM),
        scratch_shapes=[
            pltpu.VMEM((Bp, Hp), jnp.float32),   # carried hidden state
            pltpu.VMEM((Bp, 1), jnp.int32),      # carried input token
            pltpu.SMEM((2,), jnp.float32),       # [sum_nll, valid_count]
        ],
    )
    loss = pl.pallas_call(
        decoder_kernel,
        grid_spec=grid_spec,
        out_shape=jax.ShapeDtypeStruct((1, 1), jnp.float32),
        compiler_params=pltpu.CompilerParams(
            dimension_semantics=("arbitrary",),
            vmem_limit_bytes=_vmem_limit(block_bytes, scratch_bytes)),
    )(tf_flags, tgt, h0, lens, enc,
      pp["w_big"], pp["b_big"], pp["w_cat"], pp["b_cat"], pp["w_out"], pp["b_out"])
    return loss[0, 0]


# ----------------------------------------------------------------------------- params & padding
def init_params(key, vin, vout, emb_dim, hid_dim):
    ks = jax.random.split(key, 15)

    def u(k, shape, scale=0.1):
        return jax.random.uniform(k, shape, jnp.float32, -scale, scale)

    H, E = hid_dim, emb_dim
    return dict(
        enc_emb=u(ks[0], (vin, E)),
        enc_wih=u(ks[1], (E, 3 * H)), enc_whh=u(ks[2], (H, 3 * H)),
        enc_bih=u(ks[3], (1, 3 * H)), enc_bhh=u(ks[4], (1, 3 * H)),
        dec_emb=u(ks[5], (vout, E)),
        dec_wih=u(ks[6], (E, 3 * H)), dec_whh=u(ks[7], (H, 3 * H)),
        dec_bih=u(ks[8], (1, 3 * H)), dec_bhh=u(ks[9], (1, 3 * H)),
        wc_h=u(ks[10], (H, H)), wc_c=u(ks[11], (H, H)), b_cat=u(ks[12], (1, H)),
        w_out=u(ks[13], (H, vout)), b_out=u(ks[14], (1, vout)),
    )


def _pad2(x, rows, cols, value=0.0):
    r, c = x.shape
    return jnp.pad(x, ((0, rows - r), (0, cols - c)), constant_values=value)


def _pad_gru_w(w, in_p, Hp):
    H = w.shape[1] // 3
    return jnp.concatenate([_pad2(w[:, g * H:(g + 1) * H], in_p, Hp) for g in range(3)], axis=1)


def _pad_gru_b(b, Hp):
    H = b.shape[1] // 3
    return jnp.concatenate([_pad2(b[:, g * H:(g + 1) * H], 1, Hp) for g in range(3)], axis=1)


def pad_params(params, Ep, Hp, Vp):
    """Zero-pad lane dims to 128 (gate-aware for GRU weights); padded vocab bias = -1e9.
    Decoder embedding is folded into W_ih (EW = E @ W_ih) and stacked with W_hh so the whole
    GRU input projection is ONE matmul; wc_h/wc_c are stacked likewise. Matmul operands bf16."""
    enc_emb = _bf(_pad2(params["enc_emb"], params["enc_emb"].shape[0], Ep))
    enc_wih = _bf(_pad_gru_w(params["enc_wih"], Ep, Hp))
    enc_whh = _bf(_pad_gru_w(params["enc_whh"], Hp, Hp))
    enc_bih = _pad_gru_b(params["enc_bih"], Hp)
    enc_bhh = _pad_gru_b(params["enc_bhh"], Hp)

    dec_emb_p = _pad2(params["dec_emb"], Vp, Ep)                   # f32 [Vp, Ep]
    dec_wih_p = _pad_gru_w(params["dec_wih"], Ep, Hp)              # f32 [Ep, 3Hp]
    dec_whh_p = _pad_gru_w(params["dec_whh"], Hp, Hp)              # f32 [Hp, 3Hp]
    ew = dec_emb_p @ dec_wih_p                                     # f32 [Vp, 3Hp]
    zV = jnp.zeros((Vp, Hp), jnp.float32)
    zH = jnp.zeros((Hp, Hp), jnp.float32)
    w_big = jnp.concatenate([
        jnp.concatenate([ew[:, 0:Hp], ew[:, Hp:2 * Hp], ew[:, 2 * Hp:3 * Hp], zV], axis=1),
        jnp.concatenate([dec_whh_p[:, 0:Hp], dec_whh_p[:, Hp:2 * Hp], zH,
                         dec_whh_p[:, 2 * Hp:3 * Hp]], axis=1),
    ], axis=0)                                                     # [Vp+Hp, 4Hp]
    bih = _pad_gru_b(params["dec_bih"], Hp)
    bhh = _pad_gru_b(params["dec_bhh"], Hp)
    b_big = jnp.concatenate([bih[:, 0:Hp] + bhh[:, 0:Hp],
                             bih[:, Hp:2 * Hp] + bhh[:, Hp:2 * Hp],
                             bih[:, 2 * Hp:3 * Hp], bhh[:, 2 * Hp:3 * Hp]], axis=1)  # [1, 4Hp]
    w_cat = jnp.concatenate([_pad2(params["wc_h"], Hp, Hp),
                             _pad2(params["wc_c"], Hp, Hp)], axis=0)                 # [2Hp, Hp]

    return dict(
        enc_emb=enc_emb, enc_wih=enc_wih, enc_whh=enc_whh,
        enc_bih=enc_bih, enc_bhh=enc_bhh,
        w_big=_bf(w_big), b_big=b_big,
        w_cat=_bf(w_cat), b_cat=_pad2(params["b_cat"], 1, Hp),
        w_out=_bf(_pad2(params["w_out"], Hp, Vp)),
        b_out=_pad2(params["b_out"], 1, Vp, value=-1e9),
    )


# ----------------------------------------------------------------------------- forward
def seq2seq_forward(params, input_batches, input_lengths, target_batches,
                    target_lengths, tf_key, teacher_forcing_ratio=0.5):
    """Training-mode forward (predict=False): returns the NLL loss, like the PyTorch module."""
    S, B = input_batches.shape
    E = params["enc_emb"].shape[1]
    H = params["enc_whh"].shape[0]
    Vout = params["w_out"].shape[1]

    Bp = max(_rup(B, 8), 16)            # >=16 rows: full bf16 sublane packing on v5e
    Ep, Hp, Vp = _rup(E, 128), _rup(H, 128), _rup(Vout, 128)
    Sp = _rup(S, TC)
    T = int(max(target_lengths))        # TODO(synk): python constant -> recompile per max len
    Tp = _rup(T, TD)

    pp = pad_params(params, Ep, Hp, Vp)

    # ---- encoder (bf16 embedding lookup on host: one XLA gather, half the HBM bytes) ----
    emb = jnp.take(pp["enc_emb"], input_batches, axis=0)              # [S, B, Ep] bf16
    emb = jnp.pad(emb, ((0, Sp - S), (0, Bp - B), (0, 0)))
    emb_flat = emb.reshape(Sp * Bp, Ep)
    lens = jnp.pad(jnp.asarray(input_lengths, jnp.int32), (0, Bp - B)).reshape(Bp, 1)

    enc_outs, enc_hidden = run_encoder(emb_flat, lens, pp, Sp=Sp, Bp=Bp, Hp=Hp, Ep=Ep)

    # ---- fused decoder + attention + NLL (time-chunked) ----
    tgt = jnp.pad(target_batches[:T].astype(jnp.int32),
                  ((0, Tp - T), (0, Bp - B)), constant_values=PAD).reshape(Tp, Bp, 1)
    tf_flags = (jax.random.uniform(tf_key, (Tp,)) < teacher_forcing_ratio).astype(jnp.int32)
    return run_decoder(tf_flags, tgt, enc_hidden, lens, enc_outs, pp)


# ----------------------------------------------------------------------------- main
if __name__ == "__main__":
    key = jax.random.PRNGKey(0)
    k_par, k_in, k_tgt, k_tf = jax.random.split(key, 4)

    B, S, T = 2, 8, 6
    E, H = 32, 32
    VIN, VOUT = 20, 24

    params = init_params(k_par, VIN, VOUT, E, H)

    input_batches = jax.random.randint(k_in, (S, B), 3, VIN, dtype=jnp.int32)
    input_lengths = [S, S - 2]

    target_lengths = [6, 4]
    target_batches = jax.random.randint(k_tgt, (T, B), 3, VOUT, dtype=jnp.int32)
    t_idx = jnp.arange(T)[:, None]
    len_arr = jnp.array(target_lengths, dtype=jnp.int32)[None, :]
    target_batches = jnp.where(t_idx < len_arr, target_batches, PAD).astype(jnp.int32)

    loss = seq2seq_forward(params, input_batches, input_lengths,
                           target_batches, target_lengths, k_tf,
                           teacher_forcing_ratio=0.5)
    loss = jax.block_until_ready(loss)
    assert loss.shape == () and bool(jnp.isfinite(loss))
    print("KERNEL_OK")
</pallas_src>

<mosaic_0001>
module attributes {stable_mosaic.version = 11 : i64} {
  func.func @encoder_kernel(%arg0: i32, %arg1: memref<16x1xi32, #tpu.memory_space<vmem>>, %arg2: memref<128x128xbf16, #tpu.memory_space<vmem>>, %arg3: memref<128x384xbf16, #tpu.memory_space<vmem>>, %arg4: memref<128x384xbf16, #tpu.memory_space<vmem>>, %arg5: memref<1x384xf32, #tpu.memory_space<vmem>>, %arg6: memref<1x384xf32, #tpu.memory_space<vmem>>, %arg7: memref<16x8x128xbf16, #tpu.memory_space<vmem>>, %arg8: memref<16x128xf32, #tpu.memory_space<vmem>>) attributes {dimension_semantics = [#tpu.dimension_semantics<arbitrary>], iteration_bounds = array<i64: 1>, scalar_prefetch = 0 : i64, scratch_operands = 0 : i64, tpu.core_type = #tpu.core_type<tc>, window_params = [{pipeline_mode = #tpu.pipeline_mode<synchronous>, transform_indices = @transform_0, window_bounds = array<i64: 16, 1>}, {transform_indices = @transform_1, window_bounds = array<i64: 128, 128>}, {pipeline_mode = #tpu.pipeline_mode<synchronous>, transform_indices = @transform_2, window_bounds = array<i64: 128, 384>}, {pipeline_mode = #tpu.pipeline_mode<synchronous>, transform_indices = @transform_3, window_bounds = array<i64: 128, 384>}, {pipeline_mode = #tpu.pipeline_mode<synchronous>, transform_indices = @transform_4, window_bounds = array<i64: 1, 384>}, {pipeline_mode = #tpu.pipeline_mode<synchronous>, transform_indices = @transform_5, window_bounds = array<i64: 1, 384>}, {transform_indices = @transform_6, window_bounds = array<i64: 16, 8, 128>}, {pipeline_mode = #tpu.pipeline_mode<synchronous>, transform_indices = @transform_7, window_bounds = array<i64: 16, 128>}]} {
    %c0_i32 = arith.constant 0 : i32
    %0 = arith.cmpi eq, %arg0, %c0_i32 : i32
    %1 = arith.extui %0 : i1 to i32
    %c0_i32_0 = arith.constant 0 : i32
    %2 = arith.cmpi ne, %1, %c0_i32_0 : i32
    scf.if %2 {
      %cst_67 = arith.constant 0.000000e+00 : f32
      %361 = vector.broadcast %cst_67 : f32 to vector<16x128xf32>
      %c0_68 = arith.constant 0 : index
      %c0_69 = arith.constant 0 : index
      %362 = vector.load %arg8[%c0_68, %c0_69] : memref<16x128xf32, #tpu.memory_space<vmem>>, vector<16x128xf32>
      tpu.vector_store %arg8[%c0_68, %c0_69], %361 {strides = array<i32>} : memref<16x128xf32, #tpu.memory_space<vmem>>, vector<16x128xf32>,
    } else {
    }
    %c0 = arith.constant 0 : index
    %c0_1 = arith.constant 0 : index
    %3 = vector.load %arg2[%c0, %c0_1] : memref<128x128xbf16, #tpu.memory_space<vmem>>, vector<128x128xbf16>
    %c0_2 = arith.constant 0 : index
    %c0_3 = arith.constant 0 : index
    %4 = vector.load %arg3[%c0_2, %c0_3] : memref<128x384xbf16, #tpu.memory_space<vmem>>, vector<128x384xbf16>
    %cst = arith.constant dense<0.000000e+00> : vector<128x384xf32>
    %5 = tpu.matmul %3, %4, %cst {dimension_numbers = #tpu.dot_dimension_numbers<[1], [0], [0], [1], [0, 0, 1, 1], [], []>} : vector<128x128xbf16>, vector<128x384xbf16>, vector<128x384xf32> -> vector<128x384xf32>
    %c0_4 = arith.constant 0 : index
    %c0_5 = arith.constant 0 : index
    %6 = vector.load %arg5[%c0_4, %c0_5] : memref<1x384xf32, #tpu.memory_space<vmem>>, vector<1x384xf32>
    %7 = vector.broadcast %6 : vector<1x384xf32> to vector<128x384xf32>
    %8 = arith.addf %5, %7 : vector<128x384xf32>
    %c0_6 = arith.constant 0 : index
    %c0_7 = arith.constant 0 : index
    %9 = vector.load %arg4[%c0_6, %c0_7] : memref<128x384xbf16, #tpu.memory_space<vmem>>, vector<128x384xbf16>
    %c0_8 = arith.constant 0 : index
    %c0_9 = arith.constant 0 : index
    %10 = vector.load %arg6[%c0_8, %c0_9] : memref<1x384xf32, #tpu.memory_space<vmem>>, vector<1x384xf32>
    %c0_10 = arith.constant 0 : index
    %c0_11 = arith.constant 0 : index
    %11 = vector.load %arg1[%c0_10, %c0_11] : memref<16x1xi32, #tpu.memory_space<vmem>>, vector<16x1xi32>
    %c0_12 = arith.constant 0 : index
    %c0_13 = arith.constant 0 : index
    %12 = vector.load %arg8[%c0_12, %c0_13] : memref<16x128xf32, #tpu.memory_space<vmem>>, vector<16x128xf32>
    %c8_i32 = arith.constant 8 : i32
    %13 = arith.muli %arg0, %c8_i32 : i32
    %c0_i32_14 = arith.constant 0 : i32
    %14 = arith.addi %13, %c0_i32_14 : i32
    %15 = vector.extract_strided_slice %8 {offsets = [0, 0], sizes = [16, 384], strides = [1, 1]} : vector<128x384xf32> to vector<16x384xf32>
    %16 = arith.truncf %12 : vector<16x128xf32> to vector<16x128xbf16>
    %cst_15 = arith.constant dense<0.000000e+00> : vector<16x384xf32>
    %17 = tpu.matmul %16, %9, %cst_15 {dimension_numbers = #tpu.dot_dimension_numbers<[1], [0], [0], [1], [0, 0, 1, 1], [], []>} : vector<16x128xbf16>, vector<128x384xbf16>, vector<16x384xf32> -> vector<16x384xf32>
    %18 = vector.broadcast %10 : vector<1x384xf32> to vector<16x384xf32>
    %19 = arith.addf %17, %18 : vector<16x384xf32>
    %20 = vector.extract_strided_slice %15 {offsets = [0, 0], sizes = [16, 128], strides = [1, 1]} : vector<16x384xf32> to vector<16x128xf32>
    %21 = vector.extract_strided_slice %19 {offsets = [0, 0], sizes = [16, 128], strides = [1, 1]} : vector<16x384xf32> to vector<16x128xf32>
    %22 = arith.addf %20, %21 : vector<16x128xf32>
    %23 = arith.negf %22 : vector<16x128xf32>
    %24 = math.exp %23 : vector<16x128xf32>
    %cst_16 = arith.constant 1.000000e+00 : f32
    %25 = vector.broadcast %cst_16 : f32 to vector<16x128xf32>
    %26 = arith.addf %25, %24 : vector<16x128xf32>
    %27 = arith.divf %25, %26 : vector<16x128xf32>
    %28 = vector.extract_strided_slice %15 {offsets = [0, 128], sizes = [16, 128], strides = [1, 1]} : vector<16x384xf32> to vector<16x128xf32>
    %29 = vector.extract_strided_slice %19 {offsets = [0, 128], sizes = [16, 128], strides = [1, 1]} : vector<16x384xf32> to vector<16x128xf32>
    %30 = arith.addf %28, %29 : vector<16x128xf32>
    %31 = arith.negf %30 : vector<16x128xf32>
    %32 = math.exp %31 : vector<16x128xf32>
    %cst_17 = arith.constant 1.000000e+00 : f32
    %33 = vector.broadcast %cst_17 : f32 to vector<16x128xf32>
    %34 = arith.addf %33, %32 : vector<16x128xf32>
    %35 = arith.divf %33, %34 : vector<16x128xf32>
    %36 = vector.extract_strided_slice %15 {offsets = [0, 256], sizes = [16, 128], strides = [1, 1]} : vector<16x384xf32> to vector<16x128xf32>
    %37 = vector.extract_strided_slice %19 {offsets = [0, 256], sizes = [16, 128], strides = [1, 1]} : vector<16x384xf32> to vector<16x128xf32>
    %38 = arith.mulf %27, %37 : vector<16x128xf32>
    %39 = arith.addf %36, %38 : vector<16x128xf32>
    %40 = math.tanh %39 : vector<16x128xf32>
    %cst_18 = arith.constant 1.000000e+00 : f32
    %41 = vector.broadcast %cst_18 : f32 to vector<16x128xf32>
    %42 = arith.subf %41, %35 : vector<16x128xf32>
    %43 = arith.mulf %42, %40 : vector<16x128xf32>
    %44 = arith.mulf %35, %12 : vector<16x128xf32>
    %45 = arith.addf %43, %44 : vector<16x128xf32>
    %46 = vector.broadcast %14 : i32 to vector<16x1xi32>
    %47 = arith.cmpi slt, %46, %11 : vector<16x1xi32>
    %48 = vector.shape_cast %47 : vector<16x1xi1> to vector<16x1xi1>
    %49 = vector.broadcast %48 : vector<16x1xi1> to vector<16x128xi1>
    %50 = arith.select %49, %45, %12 : vector<16x128xi1>, vector<16x128xf32>
    %cst_19 = arith.constant 0.000000e+00 : f32
    %51 = vector.shape_cast %47 : vector<16x1xi1> to vector<16x1xi1>
    %52 = vector.broadcast %51 : vector<16x1xi1> to vector<16x128xi1>
    %53 = vector.broadcast %cst_19 : f32 to vector<16x128xf32>
    %54 = arith.select %52, %45, %53 : vector<16x128xi1>, vector<16x128xf32>
    %c8_i32_20 = arith.constant 8 : i32
    %55 = arith.muli %arg0, %c8_i32_20 : i32
    %c1_i32 = arith.constant 1 : i32
    %56 = arith.addi %55, %c1_i32 : i32
    %57 = vector.extract_strided_slice %8 {offsets = [16, 0], sizes = [16, 384], strides = [1, 1]} : vector<128x384xf32> to vector<16x384xf32>
    %58 = arith.truncf %50 : vector<16x128xf32> to vector<16x128xbf16>
    %cst_21 = arith.constant dense<0.000000e+00> : vector<16x384xf32>
    %59 = tpu.matmul %58, %9, %cst_21 {dimension_numbers = #tpu.dot_dimension_numbers<[1], [0], [0], [1], [0, 0, 1, 1], [], []>} : vector<16x128xbf16>, vector<128x384xbf16>, vector<16x384xf32> -> vector<16x384xf32>
    %60 = vector.broadcast %10 : vector<1x384xf32> to vector<16x384xf32>
    %61 = arith.addf %59, %60 : vector<16x384xf32>
    %62 = vector.extract_strided_slice %57 {offsets = [0, 0], sizes = [16, 128], strides = [1, 1]} : vector<16x384xf32> to vector<16x128xf32>
    %63 = vector.extract_strided_slice %61 {offsets = [0, 0], sizes = [16, 128], strides = [1, 1]} : vector<16x384xf32> to vector<16x128xf32>
    %64 = arith.addf %62, %63 : vector<16x128xf32>
    %65 = arith.negf %64 : vector<16x128xf32>
    %66 = math.exp %65 : vector<16x128xf32>
    %cst_22 = arith.constant 1.000000e+00 : f32
    %67 = vector.broadcast %cst_22 : f32 to vector<16x128xf32>
    %68 = arith.addf %67, %66 : vector<16x128xf32>
    %69 = arith.divf %67, %68 : vector<16x128xf32>
    %70 = vector.extract_strided_slice %57 {offsets = [0, 128], sizes = [16, 128], strides = [1, 1]} : vector<16x384xf32> to vector<16x128xf32>
    %71 = vector.extract_strided_slice %61 {offsets = [0, 128], sizes = [16, 128], strides = [1, 1]} : vector<16x384xf32> to vector<16x128xf32>
    %72 = arith.addf %70, %71 : vector<16x128xf32>
    %73 = arith.negf %72 : vector<16x128xf32>
    %74 = math.exp %73 : vector<16x128xf32>
    %cst_23 = arith.constant 1.000000e+00 : f32
    %75 = vector.broadcast %cst_23 : f32 to vector<16x128xf32>
    %76 = arith.addf %75, %74 : vector<16x128xf32>
    %77 = arith.divf %75, %76 : vector<16x128xf32>
    %78 = vector.extract_strided_slice %57 {offsets = [0, 256], sizes = [16, 128], strides = [1, 1]} : vector<16x384xf32> to vector<16x128xf32>
    %79 = vector.extract_strided_slice %61 {offsets = [0, 256], sizes = [16, 128], strides = [1, 1]} : vector<16x384xf32> to vector<16x128xf32>
    %80 = arith.mulf %69, %79 : vector<16x128xf32>
    %81 = arith.addf %78, %80 : vector<16x128xf32>
    %82 = math.tanh %81 : vector<16x128xf32>
    %cst_24 = arith.constant 1.000000e+00 : f32
    %83 = vector.broadcast %cst_24 : f32 to vector<16x128xf32>
    %84 = arith.subf %83, %77 : vector<16x128xf32>
    %85 = arith.mulf %84, %82 : vector<16x128xf32>
    %86 = arith.mulf %77, %50 : vector<16x128xf32>
    %87 = arith.addf %85, %86 : vector<16x128xf32>
    %88 = vector.broadcast %56 : i32 to vector<16x1xi32>
    %89 = arith.cmpi slt, %88, %11 : vector<16x1xi32>
    %90 = vector.shape_cast %89 : vector<16x1xi1> to vector<16x1xi1>
    %91 = vector.broadcast %90 : vector<16x1xi1> to vector<16x128xi1>
    %92 = arith.select %91, %87, %50 : vector<16x128xi1>, vector<16x128xf32>
    %cst_25 = arith.constant 0.000000e+00 : f32
    %93 = vector.shape_cast %89 : vector<16x1xi1> to vector<16x1xi1>
    %94 = vector.broadcast %93 : vector<16x1xi1> to vector<16x128xi1>
    %95 = vector.broadcast %cst_25 : f32 to vector<16x128xf32>
    %96 = arith.select %94, %87, %95 : vector<16x128xi1>, vector<16x128xf32>
    %c8_i32_26 = arith.constant 8 : i32
    %97 = arith.muli %arg0, %c8_i32_26 : i32
    %c2_i32 = arith.constant 2 : i32
    %98 = arith.addi %97, %c2_i32 : i32
    %99 = vector.extract_strided_slice %8 {offsets = [32, 0], sizes = [16, 384], strides = [1, 1]} : vector<128x384xf32> to vector<16x384xf32>
    %100 = arith.truncf %92 : vector<16x128xf32> to vector<16x128xbf16>
    %cst_27 = arith.constant dense<0.000000e+00> : vector<16x384xf32>
    %101 = tpu.matmul %100, %9, %cst_27 {dimension_numbers = #tpu.dot_dimension_numbers<[1], [0], [0], [1], [0, 0, 1, 1], [], []>} : vector<16x128xbf16>, vector<128x384xbf16>, vector<16x384xf32> -> vector<16x384xf32>
    %102 = vector.broadcast %10 : vector<1x384xf32> to vector<16x384xf32>
    %103 = arith.addf %101, %102 : vector<16x384xf32>
    %104 = vector.extract_strided_slice %99 {offsets = [0, 0], sizes = [16, 128], strides = [1, 1]} : vector<16x384xf32> to vector<16x128xf32>
    %105 = vector.extract_strided_slice %103 {offsets = [0, 0], sizes = [16, 128], strides = [1, 1]} : vector<16x384xf32> to vector<16x128xf32>
    %106 = arith.addf %104, %105 : vector<16x128xf32>
    %107 = arith.negf %106 : vector<16x128xf32>
    %108 = math.exp %107 : vector<16x128xf32>
    %cst_28 = arith.constant 1.000000e+00 : f32
    %109 = vector.broadcast %cst_28 : f32 to vector<16x128xf32>
    %110 = arith.addf %109, %108 : vector<16x128xf32>
    %111 = arith.divf %109, %110 : vector<16x128xf32>
    %112 = vector.extract_strided_slice %99 {offsets = [0, 128], sizes = [16, 128], strides = [1, 1]} : vector<16x384xf32> to vector<16x128xf32>
    %113 = vector.extract_strided_slice %103 {offsets = [0, 128], sizes = [16, 128], strides = [1, 1]} : vector<16x384xf32> to vector<16x128xf32>
    %114 = arith.addf %112, %113 : vector<16x128xf32>
    %115 = arith.negf %114 : vector<16x128xf32>
    %116 = math.exp %115 : vector<16x128xf32>
    %cst_29 = arith.constant 1.000000e+00 : f32
    %117 = vector.broadcast %cst_29 : f32 to vector<16x128xf32>
    %118 = arith.addf %117, %116 : vector<16x128xf32>
    %119 = arith.divf %117, %118 : vector<16x128xf32>
    %120 = vector.extract_strided_slice %99 {offsets = [0, 256], sizes = [16, 128], strides = [1, 1]} : vector<16x384xf32> to vector<16x128xf32>
    %121 = vector.extract_strided_slice %103 {offsets = [0, 256], sizes = [16, 128], strides = [1, 1]} : vector<16x384xf32> to vector<16x128xf32>
    %122 = arith.mulf %111, %121 : vector<16x128xf32>
    %123 = arith.addf %120, %122 : vector<16x128xf32>
    %124 = math.tanh %123 : vector<16x128xf32>
    %cst_30 = arith.constant 1.000000e+00 : f32
    %125 = vector.broadcast %cst_30 : f32 to vector<16x128xf32>
    %126 = arith.subf %125, %119 : vector<16x128xf32>
    %127 = arith.mulf %126, %124 : vector<16x128xf32>
    %128 = arith.mulf %119, %92 : vector<16x128xf32>
    %129 = arith.addf %127, %128 : vector<16x128xf32>
    %130 = vector.broadcast %98 : i32 to vector<16x1xi32>
    %131 = arith.cmpi slt, %130, %11 : vector<16x1xi32>
    %132 = vector.shape_cast %131 : vector<16x1xi1> to vector<16x1xi1>
    %133 = vector.broadcast %132 : vector<16x1xi1> to vector<16x128xi1>
    %134 = arith.select %133, %129, %92 : vector<16x128xi1>, vector<16x128xf32>
    %cst_31 = arith.constant 0.000000e+00 : f32
    %135 = vector.shape_cast %131 : vector<16x1xi1> to vector<16x1xi1>
    %136 = vector.broadcast %135 : vector<16x1xi1> to vector<16x128xi1>
    %137 = vector.broadcast %cst_31 : f32 to vector<16x128xf32>
    %138 = arith.select %136, %129, %137 : vector<16x128xi1>, vector<16x128xf32>
    %c8_i32_32 = arith.constant 8 : i32
    %139 = arith.muli %arg0, %c8_i32_32 : i32
    %c3_i32 = arith.constant 3 : i32
    %140 = arith.addi %139, %c3_i32 : i32
    %141 = vector.extract_strided_slice %8 {offsets = [48, 0], sizes = [16, 384], strides = [1, 1]} : vector<128x384xf32> to vector<16x384xf32>
    %142 = arith.truncf %134 : vector<16x128xf32> to vector<16x128xbf16>
    %cst_33 = arith.constant dense<0.000000e+00> : vector<16x384xf32>
    %143 = tpu.matmul %142, %9, %cst_33 {dimension_numbers = #tpu.dot_dimension_numbers<[1], [0], [0], [1], [0, 0, 1, 1], [], []>} : vector<16x128xbf16>, vector<128x384xbf16>, vector<16x384xf32> -> vector<16x384xf32>
    %144 = vector.broadcast %10 : vector<1x384xf32> to vector<16x384xf32>
    %145 = arith.addf %143, %144 : vector<16x384xf32>
    %146 = vector.extract_strided_slice %141 {offsets = [0, 0], sizes = [16, 128], strides = [1, 1]} : vector<16x384xf32> to vector<16x128xf32>
    %147 = vector.extract_strided_slice %145 {offsets = [0, 0], sizes = [16, 128], strides = [1, 1]} : vector<16x384xf32> to vector<16x128xf32>
    %148 = arith.addf %146, %147 : vector<16x128xf32>
    %149 = arith.negf %148 : vector<16x128xf32>
    %150 = math.exp %149 : vector<16x128xf32>
    %cst_34 = arith.constant 1.000000e+00 : f32
    %151 = vector.broadcast %cst_34 : f32 to vector<16x128xf32>
    %152 = arith.addf %151, %150 : vector<16x128xf32>
    %153 = arith.divf %151, %152 : vector<16x128xf32>
    %154 = vector.extract_strided_slice %141 {offsets = [0, 128], sizes = [16, 128], strides = [1, 1]} : vector<16x384xf32> to vector<16x128xf32>
    %155 = vector.extract_strided_slice %145 {offsets = [0, 128], sizes = [16, 128], strides = [1, 1]} : vector<16x384xf32> to vector<16x128xf32>
    %156 = arith.addf %154, %155 : vector<16x128xf32>
    %157 = arith.negf %156 : vector<16x128xf32>
    %158 = math.exp %157 : vector<16x128xf32>
    %cst_35 = arith.constant 1.000000e+00 : f32
    %159 = vector.broadcast %cst_35 : f32 to vector<16x128xf32>
    %160 = arith.addf %159, %158 : vector<16x128xf32>
    %161 = arith.divf %159, %160 : vector<16x128xf32>
    %162 = vector.extract_strided_slice %141 {offsets = [0, 256], sizes = [16, 128], strides = [1, 1]} : vector<16x384xf32> to vector<16x128xf32>
    %163 = vector.extract_strided_slice %145 {offsets = [0, 256], sizes = [16, 128], strides = [1, 1]} : vector<16x384xf32> to vector<16x128xf32>
    %164 = arith.mulf %153, %163 : vector<16x128xf32>
    %165 = arith.addf %162, %164 : vector<16x128xf32>
    %166 = math.tanh %165 : vector<16x128xf32>
    %cst_36 = arith.constant 1.000000e+00 : f32
    %167 = vector.broadcast %cst_36 : f32 to vector<16x128xf32>
    %168 = arith.subf %167, %161 : vector<16x128xf32>
    %169 = arith.mulf %168, %166 : vector<16x128xf32>
    %170 = arith.mulf %161, %134 : vector<16x128xf32>
    %171 = arith.addf %169, %170 : vector<16x128xf32>
    %172 = vector.broadcast %140 : i32 to vector<16x1xi32>
    %173 = arith.cmpi slt, %172, %11 : vector<16x1xi32>
    %174 = vector.shape_cast %173 : vector<16x1xi1> to vector<16x1xi1>
    %175 = vector.broadcast %174 : vector<16x1xi1> to vector<16x128xi1>
    %176 = arith.select %175, %171, %134 : vector<16x128xi1>, vector<16x128xf32>
    %cst_37 = arith.constant 0.000000e+00 : f32
    %177 = vector.shape_cast %173 : vector<16x1xi1> to vector<16x1xi1>
    %178 = vector.broadcast %177 : vector<16x1xi1> to vector<16x128xi1>
    %179 = vector.broadcast %cst_37 : f32 to vector<16x128xf32>
    %180 = arith.select %178, %171, %179 : vector<16x128xi1>, vector<16x128xf32>
    %c8_i32_38 = arith.constant 8 : i32
    %181 = arith.muli %arg0, %c8_i32_38 : i32
    %c4_i32 = arith.constant 4 : i32
    %182 = arith.addi %181, %c4_i32 : i32
    %183 = vector.extract_strided_slice %8 {offsets = [64, 0], sizes = [16, 384], strides = [1, 1]} : vector<128x384xf32> to vector<16x384xf32>
    %184 = arith.truncf %176 : vector<16x128xf32> to vector<16x128xbf16>
    %cst_39 = arith.constant dense<0.000000e+00> : vector<16x384xf32>
    %185 = tpu.matmul %184, %9, %cst_39 {dimension_numbers = #tpu.dot_dimension_numbers<[1], [0], [0], [1], [0, 0, 1, 1], [], []>} : vector<16x128xbf16>, vector<128x384xbf16>, vector<16x384xf32> -> vector<16x384xf32>
    %186 = vector.broadcast %10 : vector<1x384xf32> to vector<16x384xf32>
    %187 = arith.addf %185, %186 : vector<16x384xf32>
    %188 = vector.extract_strided_slice %183 {offsets = [0, 0], sizes = [16, 128], strides = [1, 1]} : vector<16x384xf32> to vector<16x128xf32>
    %189 = vector.extract_strided_slice %187 {offsets = [0, 0], sizes = [16, 128], strides = [1, 1]} : vector<16x384xf32> to vector<16x128xf32>
    %190 = arith.addf %188, %189 : vector<16x128xf32>
    %191 = arith.negf %190 : vector<16x128xf32>
    %192 = math.exp %191 : vector<16x128xf32>
    %cst_40 = arith.constant 1.000000e+00 : f32
    %193 = vector.broadcast %cst_40 : f32 to vector<16x128xf32>
    %194 = arith.addf %193, %192 : vector<16x128xf32>
    %195 = arith.divf %193, %194 : vector<16x128xf32>
    %196 = vector.extract_strided_slice %183 {offsets = [0, 128], sizes = [16, 128], strides = [1, 1]} : vector<16x384xf32> to vector<16x128xf32>
    %197 = vector.extract_strided_slice %187 {offsets = [0, 128], sizes = [16, 128], strides = [1, 1]} : vector<16x384xf32> to vector<16x128xf32>
    %198 = arith.addf %196, %197 : vector<16x128xf32>
    %199 = arith.negf %198 : vector<16x128xf32>
    %200 = math.exp %199 : vector<16x128xf32>
    %cst_41 = arith.constant 1.000000e+00 : f32
    %201 = vector.broadcast %cst_41 : f32 to vector<16x128xf32>
    %202 = arith.addf %201, %200 : vector<16x128xf32>
    %203 = arith.divf %201, %202 : vector<16x128xf32>
    %204 = vector.extract_strided_slice %183 {offsets = [0, 256], sizes = [16, 128], strides = [1, 1]} : vector<16x384xf32> to vector<16x128xf32>
    %205 = vector.extract_strided_slice %187 {offsets = [0, 256], sizes = [16, 128], strides = [1, 1]} : vector<16x384xf32> to vector<16x128xf32>
    %206 = arith.mulf %195, %205 : vector<16x128xf32>
    %207 = arith.addf %204, %206 : vector<16x128xf32>
    %208 = math.tanh %207 : vector<16x128xf32>
    %cst_42 = arith.constant 1.000000e+00 : f32
    %209 = vector.broadcast %cst_42 : f32 to vector<16x128xf32>
    %210 = arith.subf %209, %203 : vector<16x128xf32>
    %211 = arith.mulf %210, %208 : vector<16x128xf32>
    %212 = arith.mulf %203, %176 : vector<16x128xf32>
    %213 = arith.addf %211, %212 : vector<16x128xf32>
    %214 = vector.broadcast %182 : i32 to vector<16x1xi32>
    %215 = arith.cmpi slt, %214, %11 : vector<16x1xi32>
    %216 = vector.shape_cast %215 : vector<16x1xi1> to vector<16x1xi1>
    %217 = vector.broadcast %216 : vector<16x1xi1> to vector<16x128xi1>
    %218 = arith.select %217, %213, %176 : vector<16x128xi1>, vector<16x128xf32>
    %cst_43 = arith.constant 0.000000e+00 : f32
    %219 = vector.shape_cast %215 : vector<16x1xi1> to vector<16x1xi1>
    %220 = vector.broadcast %219 : vector<16x1xi1> to vector<16x128xi1>
    %221 = vector.broadcast %cst_43 : f32 to vector<16x128xf32>
    %222 = arith.select %220, %213, %221 : vector<16x128xi1>, vector<16x128xf32>
    %c8_i32_44 = arith.constant 8 : i32
    %223 = arith.muli %arg0, %c8_i32_44 : i32
    %c5_i32 = arith.constant 5 : i32
    %224 = arith.addi %223, %c5_i32 : i32
    %225 = vector.extract_strided_slice %8 {offsets = [80, 0], sizes = [16, 384], strides = [1, 1]} : vector<128x384xf32> to vector<16x384xf32>
    %226 = arith.truncf %218 : vector<16x128xf32> to vector<16x128xbf16>
    %cst_45 = arith.constant dense<0.000000e+00> : vector<16x384xf32>
    %227 = tpu.matmul %226, %9, %cst_45 {dimension_numbers = #tpu.dot_dimension_numbers<[1], [0], [0], [1], [0, 0, 1, 1], [], []>} : vector<16x128xbf16>, vector<128x384xbf16>, vector<16x384xf32> -> vector<16x384xf32>
    %228 = vector.broadcast %10 : vector<1x384xf32> to vector<16x384xf32>
    %229 = arith.addf %227, %228 : vector<16x384xf32>
    %230 = vector.extract_strided_slice %225 {offsets = [0, 0], sizes = [16, 128], strides = [1, 1]} : vector<16x384xf32> to vector<16x128xf32>
    %231 = vector.extract_strided_slice %229 {offsets = [0, 0], sizes = [16, 128], strides = [1, 1]} : vector<16x384xf32> to vector<16x128xf32>
    %232 = arith.addf %230, %231 : vector<16x128xf32>
    %233 = arith.negf %232 : vector<16x128xf32>
    %234 = math.exp %233 : vector<16x128xf32>
    %cst_46 = arith.constant 1.000000e+00 : f32
    %235 = vector.broadcast %cst_46 : f32 to vector<16x128xf32>
    %236 = arith.addf %235, %234 : vector<16x128xf32>
    %237 = arith.divf %235, %236 : vector<16x128xf32>
    %238 = vector.extract_strided_slice %225 {offsets = [0, 128], sizes = [16, 128], strides = [1, 1]} : vector<16x384xf32> to vector<16x128xf32>
    %239 = vector.extract_strided_slice %229 {offsets = [0, 128], sizes = [16, 128], strides = [1, 1]} : vector<16x384xf32> to vector<16x128xf32>
    %240 = arith.addf %238, %239 : vector<16x128xf32>
    %241 = arith.negf %240 : vector<16x128xf32>
    %242 = math.exp %241 : vector<16x128xf32>
    %cst_47 = arith.constant 1.000000e+00 : f32
    %243 = vector.broadcast %cst_47 : f32 to vector<16x128xf32>
    %244 = arith.addf %243, %242 : vector<16x128xf32>
    %245 = arith.divf %243, %244 : vector<16x128xf32>
    %246 = vector.extract_strided_slice %225 {offsets = [0, 256], sizes = [16, 128], strides = [1, 1]} : vector<16x384xf32> to vector<16x128xf32>
    %247 = vector.extract_strided_slice %229 {offsets = [0, 256], sizes = [16, 128], strides = [1, 1]} : vector<16x384xf32> to vector<16x128xf32>
    %248 = arith.mulf %237, %247 : vector<16x128xf32>
    %249 = arith.addf %246, %248 : vector<16x128xf32>
    %250 = math.tanh %249 : vector<16x128xf32>
    %cst_48 = arith.constant 1.000000e+00 : f32
    %251 = vector.broadcast %cst_48 : f32 to vector<16x128xf32>
    %252 = arith.subf %251, %245 : vector<16x128xf32>
    %253 = arith.mulf %252, %250 : vector<16x128xf32>
    %254 = arith.mulf %245, %218 : vector<16x128xf32>
    %255 = arith.addf %253, %254 : vector<16x128xf32>
    %256 = vector.broadcast %224 : i32 to vector<16x1xi32>
    %257 = arith.cmpi slt, %256, %11 : vector<16x1xi32>
    %258 = vector.shape_cast %257 : vector<16x1xi1> to vector<16x1xi1>
    %259 = vector.broadcast %258 : vector<16x1xi1> to vector<16x128xi1>
    %260 = arith.select %259, %255, %218 : vector<16x128xi1>, vector<16x128xf32>
    %cst_49 = arith.constant 0.000000e+00 : f32
    %261 = vector.shape_cast %257 : vector<16x1xi1> to vector<16x1xi1>
    %262 = vector.broadcast %261 : vector<16x1xi1> to vector<16x128xi1>
    %263 = vector.broadcast %cst_49 : f32 to vector<16x128xf32>
    %264 = arith.select %262, %255, %263 : vector<16x128xi1>, vector<16x128xf32>
    %c8_i32_50 = arith.constant 8 : i32
    %265 = arith.muli %arg0, %c8_i32_50 : i32
    %c6_i32 = arith.constant 6 : i32
    %266 = arith.addi %265, %c6_i32 : i32
    %267 = vector.extract_strided_slice %8 {offsets = [96, 0], sizes = [16, 384], strides = [1, 1]} : vector<128x384xf32> to vector<16x384xf32>
    %268 = arith.truncf %260 : vector<16x128xf32> to vector<16x128xbf16>
    %cst_51 = arith.constant dense<0.000000e+00> : vector<16x384xf32>
    %269 = tpu.matmul %268, %9, %cst_51 {dimension_numbers = #tpu.dot_dimension_numbers<[1], [0], [0], [1], [0, 0, 1, 1], [], []>} : vector<16x128xbf16>, vector<128x384xbf16>, vector<16x384xf32> -> vector<16x384xf32>
    %270 = vector.broadcast %10 : vector<1x384xf32> to vector<16x384xf32>
    %271 = arith.addf %269, %270 : vector<16x384xf32>
    %272 = vector.extract_strided_slice %267 {offsets = [0, 0], sizes = [16, 128], strides = [1, 1]} : vector<16x384xf32> to vector<16x128xf32>
    %273 = vector.extract_strided_slice %271 {offsets = [0, 0], sizes = [16, 128], strides = [1, 1]} : vector<16x384xf32> to vector<16x128xf32>
    %274 = arith.addf %272, %273 : vector<16x128xf32>
    %275 = arith.negf %274 : vector<16x128xf32>
    %276 = math.exp %275 : vector<16x128xf32>
    %cst_52 = arith.constant 1.000000e+00 : f32
    %277 = vector.broadcast %cst_52 : f32 to vector<16x128xf32>
    %278 = arith.addf %277, %276 : vector<16x128xf32>
    %279 = arith.divf %277, %278 : vector<16x128xf32>
    %280 = vector.extract_strided_slice %267 {offsets = [0, 128], sizes = [16, 128], strides = [1, 1]} : vector<16x384xf32> to vector<16x128xf32>
    %281 = vector.extract_strided_slice %271 {offsets = [0, 128], sizes = [16, 128], strides = [1, 1]} : vector<16x384xf32> to vector<16x128xf32>
    %282 = arith.addf %280, %281 : vector<16x128xf32>
    %283 = arith.negf %282 : vector<16x128xf32>
    %284 = math.exp %283 : vector<16x128xf32>
    %cst_53 = arith.constant 1.000000e+00 : f32
    %285 = vector.broadcast %cst_53 : f32 to vector<16x128xf32>
    %286 = arith.addf %285, %284 : vector<16x128xf32>
    %287 = arith.divf %285, %286 : vector<16x128xf32>
    %288 = vector.extract_strided_slice %267 {offsets = [0, 256], sizes = [16, 128], strides = [1, 1]} : vector<16x384xf32> to vector<16x128xf32>
    %289 = vector.extract_strided_slice %271 {offsets = [0, 256], sizes = [16, 128], strides = [1, 1]} : vector<16x384xf32> to vector<16x128xf32>
    %290 = arith.mulf %279, %289 : vector<16x128xf32>
    %291 = arith.addf %288, %290 : vector<16x128xf32>
    %292 = math.tanh %291 : vector<16x128xf32>
    %cst_54 = arith.constant 1.000000e+00 : f32
    %293 = vector.broadcast %cst_54 : f32 to vector<16x128xf32>
    %294 = arith.subf %293, %287 : vector<16x128xf32>
    %295 = arith.mulf %294, %292 : vector<16x128xf32>
    %296 = arith.mulf %287, %260 : vector<16x128xf32>
    %297 = arith.addf %295, %296 : vector<16x128xf32>
    %298 = vector.broadcast %266 : i32 to vector<16x1xi32>
    %299 = arith.cmpi slt, %298, %11 : vector<16x1xi32>
    %300 = vector.shape_cast %299 : vector<16x1xi1> to vector<16x1xi1>
    %301 = vector.broadcast %300 : vector<16x1xi1> to vector<16x128xi1>
    %302 = arith.select %301, %297, %260 : vector<16x128xi1>, vector<16x128xf32>
    %cst_55 = arith.constant 0.000000e+00 : f32
    %303 = vector.shape_cast %299 : vector<16x1xi1> to vector<16x1xi1>
    %304 = vector.broadcast %303 : vector<16x1xi1> to vector<16x128xi1>
    %305 = vector.broadcast %cst_55 : f32 to vector<16x128xf32>
    %306 = arith.select %304, %297, %305 : vector<16x128xi1>, vector<16x128xf32>
    %c8_i32_56 = arith.constant 8 : i32
    %307 = arith.muli %arg0, %c8_i32_56 : i32
    %c7_i32 = arith.constant 7 : i32
    %308 = arith.addi %307, %c7_i32 : i32
    %309 = vector.extract_strided_slice %8 {offsets = [112, 0], sizes = [16, 384], strides = [1, 1]} : vector<128x384xf32> to vector<16x384xf32>
    %310 = arith.truncf %302 : vector<16x128xf32> to vector<16x128xbf16>
    %cst_57 = arith.constant dense<0.000000e+00> : vector<16x384xf32>
    %311 = tpu.matmul %310, %9, %cst_57 {dimension_numbers = #tpu.dot_dimension_numbers<[1], [0], [0], [1], [0, 0, 1, 1], [], []>} : vector<16x128xbf16>, vector<128x384xbf16>, vector<16x384xf32> -> vector<16x384xf32>
    %312 = vector.broadcast %10 : vector<1x384xf32> to vector<16x384xf32>
    %313 = arith.addf %311, %312 : vector<16x384xf32>
    %314 = vector.extract_strided_slice %309 {offsets = [0, 0], sizes = [16, 128], strides = [1, 1]} : vector<16x384xf32> to vector<16x128xf32>
    %315 = vector.extract_strided_slice %313 {offsets = [0, 0], sizes = [16, 128], strides = [1, 1]} : vector<16x384xf32> to vector<16x128xf32>
    %316 = arith.addf %314, %315 : vector<16x128xf32>
    %317 = arith.negf %316 : vector<16x128xf32>
    %318 = math.exp %317 : vector<16x128xf32>
    %cst_58 = arith.constant 1.000000e+00 : f32
    %319 = vector.broadcast %cst_58 : f32 to vector<16x128xf32>
    %320 = arith.addf %319, %318 : vector<16x128xf32>
    %321 = arith.divf %319, %320 : vector<16x128xf32>
    %322 = vector.extract_strided_slice %309 {offsets = [0, 128], sizes = [16, 128], strides = [1, 1]} : vector<16x384xf32> to vector<16x128xf32>
    %323 = vector.extract_strided_slice %313 {offsets = [0, 128], sizes = [16, 128], strides = [1, 1]} : vector<16x384xf32> to vector<16x128xf32>
    %324 = arith.addf %322, %323 : vector<16x128xf32>
    %325 = arith.negf %324 : vector<16x128xf32>
    %326 = math.exp %325 : vector<16x128xf32>
    %cst_59 = arith.constant 1.000000e+00 : f32
    %327 = vector.broadcast %cst_59 : f32 to vector<16x128xf32>
    %328 = arith.addf %327, %326 : vector<16x128xf32>
    %329 = arith.divf %327, %328 : vector<16x128xf32>
    %330 = vector.extract_strided_slice %309 {offsets = [0, 256], sizes = [16, 128], strides = [1, 1]} : vector<16x384xf32> to vector<16x128xf32>
    %331 = vector.extract_strided_slice %313 {offsets = [0, 256], sizes = [16, 128], strides = [1, 1]} : vector<16x384xf32> to vector<16x128xf32>
    %332 = arith.mulf %321, %331 : vector<16x128xf32>
    %333 = arith.addf %330, %332 : vector<16x128xf32>
    %334 = math.tanh %333 : vector<16x128xf32>
    %cst_60 = arith.constant 1.000000e+00 : f32
    %335 = vector.broadcast %cst_60 : f32 to vector<16x128xf32>
    %336 = arith.subf %335, %329 : vector<16x128xf32>
    %337 = arith.mulf %336, %334 : vector<16x128xf32>
    %338 = arith.mulf %329, %302 : vector<16x128xf32>
    %339 = arith.addf %337, %338 : vector<16x128xf32>
    %340 = vector.broadcast %308 : i32 to vector<16x1xi32>
    %341 = arith.cmpi slt, %340, %11 : vector<16x1xi32>
    %342 = vector.shape_cast %341 : vector<16x1xi1> to vector<16x1xi1>
    %343 = vector.broadcast %342 : vector<16x1xi1> to vector<16x128xi1>
    %344 = arith.select %343, %339, %302 : vector<16x128xi1>, vector<16x128xf32>
    %cst_61 = arith.constant 0.000000e+00 : f32
    %345 = vector.shape_cast %341 : vector<16x1xi1> to vector<16x1xi1>
    %346 = vector.broadcast %345 : vector<16x1xi1> to vector<16x128xi1>
    %347 = vector.broadcast %cst_61 : f32 to vector<16x128xf32>
    %348 = arith.select %346, %339, %347 : vector<16x128xi1>, vector<16x128xf32>
    %349 = vector.shape_cast %54 : vector<16x128xf32> to vector<16x1x128xf32>
    %350 = vector.shape_cast %96 : vector<16x128xf32> to vector<16x1x128xf32>
    %351 = vector.shape_cast %138 : vector<16x128xf32> to vector<16x1x128xf32>
    %352 = vector.shape_cast %180 : vector<16x128xf32> to vector<16x1x128xf32>
    %353 = vector.shape_cast %222 : vector<16x128xf32> to vector<16x1x128xf32>
    %354 = vector.shape_cast %264 : vector<16x128xf32> to vector<16x1x128xf32>
    %355 = vector.shape_cast %306 : vector<16x128xf32> to vector<16x1x128xf32>
    %356 = vector.shape_cast %348 : vector<16x128xf32> to vector<16x1x128xf32>
    %357 = tpu.concatenate %349, %350, %351, %352, %353, %354, %355, %356 in 1 : vector<16x1x128xf32>, vector<16x1x128xf32>, vector<16x1x128xf32>, vector<16x1x128xf32>, vector<16x1x128xf32>, vector<16x1x128xf32>, vector<16x1x128xf32>, vector<16x1x128xf32> -> vector<16x8x128xf32>
    %358 = arith.truncf %357 : vector<16x8x128xf32> to vector<16x8x128xbf16>
    %c0_62 = arith.constant 0 : index
    %c0_63 = arith.constant 0 : index
    %c0_64 = arith.constant 0 : index
    %359 = vector.load %arg7[%c0_62, %c0_63, %c0_64] : memref<16x8x128xbf16, #tpu.memory_space<vmem>>, vector<16x8x128xbf16>
    tpu.vector_store %arg7[%c0_62, %c0_63, %c0_64], %358 {strides = array<i32>} : memref<16x8x128xbf16, #tpu.memory_space<vmem>>, vector<16x8x128xbf16>,
    %c0_65 = arith.constant 0 : index
    %c0_66 = arith.constant 0 : index
    %360 = vector.load %arg8[%c0_65, %c0_66] : memref<16x128xf32, #tpu.memory_space<vmem>>, vector<16x128xf32>
    tpu.vector_store %arg8[%c0_65, %c0_66], %344 {strides = array<i32>} : memref<16x128xf32, #tpu.memory_space<vmem>>, vector<16x128xf32>,
    return
  }
  func.func @transform_0(%arg0: i32) -> (i32, i32) {
    %c0_i32 = arith.constant 0 : i32
    %c0_i32_0 = arith.constant 0 : i32
    %c0_i32_1 = arith.constant 0 : i32
    return %c0_i32, %c0_i32_0 : i32, i32
  }
  func.func @transform_1(%arg0: i32) -> (i32, i32) {
    %c0_i32 = arith.constant 0 : i32
    %c0_i32_0 = arith.constant 0 : i32
    return %arg0, %c0_i32 : i32, i32
  }
  func.func @transform_2(%arg0: i32) -> (i32, i32) {
    %c0_i32 = arith.constant 0 : i32
    %c0_i32_0 = arith.constant 0 : i32
    %c0_i32_1 = arith.constant 0 : i32
    return %c0_i32, %c0_i32_0 : i32, i32
  }
  func.func @transform_3(%arg0: i32) -> (i32, i32) {
    %c0_i32 = arith.constant 0 : i32
    %c0_i32_0 = arith.constant 0 : i32
    %c0_i32_1 = arith.constant 0 : i32
    return %c0_i32, %c0_i32_0 : i32, i32
  }
  func.func @transform_4(%arg0: i32) -> (i32, i32) {
    %c0_i32 = arith.constant 0 : i32
    %c0_i32_0 = arith.constant 0 : i32
    %c0_i32_1 = arith.constant 0 : i32
    return %c0_i32, %c0_i32_0 : i32, i32
  }
  func.func @transform_5(%arg0: i32) -> (i32, i32) {
    %c0_i32 = arith.constant 0 : i32
    %c0_i32_0 = arith.constant 0 : i32
    %c0_i32_1 = arith.constant 0 : i32
    return %c0_i32, %c0_i32_0 : i32, i32
  }
  func.func @transform_6(%arg0: i32) -> (i32, i32, i32) {
    %c0_i32 = arith.constant 0 : i32
    %c0_i32_0 = arith.constant 0 : i32
    %c0_i32_1 = arith.constant 0 : i32
    return %c0_i32, %arg0, %c0_i32_0 : i32, i32, i32
  }
  func.func @transform_7(%arg0: i32) -> (i32, i32) {
    %c0_i32 = arith.constant 0 : i32
    %c0_i32_0 = arith.constant 0 : i32
    %c0_i32_1 = arith.constant 0 : i32
    return %c0_i32, %c0_i32_0 : i32, i32
  }
}

</mosaic_0001>

<llo_original>
// kernel: tpu_custom_call.1
$region0: #{tpu_custom_call.1}
  #allocation0 [shape = 'u32[]', space=smem, size = 0x4, offset = 0x4, fixed_abs, tag = 'smem constant byte address 0x4 - core index']
  #allocation1 [shape = 'u32[144,128]{1,0:T(1,128)}', space=vmem, size = 0x12000, scoped, tag = 'internal scratch']
  %s0 = inlined_call_operand.vmem [shape: s32[16,1], index: 0, kind: input, shape index: {}]
  %s1 = inlined_call_operand.hbm [shape: bf16[128,128], index: 1, kind: input, shape index: {}]
  %s2 = inlined_call_operand.hbm [shape: bf16[128,384], index: 2, kind: input, shape index: {}]
  %s3 = inlined_call_operand.hbm [shape: bf16[128,384], index: 3, kind: input, shape index: {}]
  %s4 = inlined_call_operand.vmem [shape: f32[1,384], index: 4, kind: input, shape index: {}]
  %s5 = inlined_call_operand.vmem [shape: f32[1,384], index: 5, kind: input, shape index: {}]
  %s6 = inlined_call_operand.hbm [shape: bf16[16,8,128], index: 6, kind: output, shape index: {0}]
  %s7 = inlined_call_operand.hbm [shape: f32[16,128], index: 7, kind: output, shape index: {1}]
  %8 = xla_tuple %s6, %s7
  %s9 = sld [smem:[#allocation0]]
  $region58: #{tpu_custom_call.1} parent=0
    _
  %s11 = ssub.s32 1, %s9
  %s12 = scalar_select 0, %s11, %s9
  $region1: #{tpu_custom_call.1} parent=0
    #allocation2 [shape = 'u8[32768]{0}', space=vmem, size = 0x8000, scoped, tag = 'input window, operand 1, single buffered']
    #allocation3 [shape = 's32[1]{0}', space=sflag, size = 0x4, scoped, tag = 'scoped memory for tpu_custom_call.1']
    #allocation4 [shape = 's32[1]{0}', space=sflag, size = 0x4, scoped, tag = 'scoped memory for tpu_custom_call.1']
    #allocation5 [shape = 'u8[98304]{0}', space=vmem, size = 0x18000, scoped, tag = 'input window, operand 2, single buffered']
    #allocation6 [shape = 's32[1]{0}', space=sflag, size = 0x4, scoped, tag = 'scoped memory for tpu_custom_call.1']
    #allocation7 [shape = 'u8[98304]{0}', space=vmem, size = 0x18000, scoped, tag = 'input window, operand 3, single buffered']
    #allocation8 [shape = 'u8[32768]{0}', space=vmem, size = 0x8000, scoped, tag = 'output window, operand 0, single buffered']
    #allocation9 [shape = 'u8[8192]{0}', space=vmem, size = 0x2000, scoped, tag = 'output window, operand 1, single buffered']
    #allocation10 [shape = 's32[1]{0}', space=sflag, size = 0x4, scoped, tag = 'scoped memory for tpu_custom_call.1']
    %13 = vsyncpa [#allocation3], 0
    %14 = vsyncpa [#allocation6], 0
    %15 = vsyncpa [#allocation4], 0
    %16 = vsyncpa [#allocation10], 0
    // Predicated region
    $region2: #{tpu_custom_call.1} parent=1 // pred_check
      _
    $region3: #{tpu_custom_call.1} parent=1 // pred_check_branch
      %18 = sbr.rel (0) target = $region5
    $region4: #{tpu_custom_call.1} parent=1 // pred_region
      _
    $region5: #{tpu_custom_call.1} parent=1 // pred_fallthru
      _
    // Predicated region
    $region6: #{tpu_custom_call.1} parent=1 // pred_check
      _
    $region7: #{tpu_custom_call.1} parent=1 // pred_check_branch
      %20 = sbr.rel (0) target = $region9
    $region8: #{tpu_custom_call.1} parent=1 // pred_region
      %s22 = ssub.s32 1024, 1024
      %23 = vsyncadd [#allocation3], %s22
      %s24 = sshll.u32 [#allocation2], 4
      %s25 = int_to_ptr.vmem [resolvable:$true] %s24
      %30 = dma.hbm_to_vmem [thread:$0]  %s1, 1024, %s25, [#allocation3], 64, 64, 4
    $region9: #{tpu_custom_call.1} parent=1 // pred_fallthru
      _
    // Predicated region
    $region10: #{tpu_custom_call.1} parent=1 // pred_check
      _
    $region11: #{tpu_custom_call.1} parent=1 // pred_check_branch
      %32 = sbr.rel (0) target = $region13
    $region12: #{tpu_custom_call.1} parent=1 // pred_region
      %s34 = ssub.s32 3072, 3072
      %35 = vsyncadd [#allocation6], %s34
      %s36 = sshll.u32 [#allocation5], 4
      %s37 = int_to_ptr.vmem [resolvable:$true] %s36
      %42 = dma.hbm_to_vmem [thread:$0]  %s2, 3072, %s37, [#allocation6], 192, 192, 12
    $region13: #{tpu_custom_call.1} parent=1 // pred_fallthru
      _
    // Predicated region
    $region14: #{tpu_custom_call.1} parent=1 // pred_check
      _
    $region15: #{tpu_custom_call.1} parent=1 // pred_check_branch
      %44 = sbr.rel (0) target = $region17
    $region16: #{tpu_custom_call.1} parent=1 // pred_region
      %s46 = ssub.s32 3072, 3072
      %47 = vsyncadd [#allocation6], %s46
      %s48 = sshll.u32 [#allocation7], 4
      %s49 = int_to_ptr.vmem [resolvable:$true] %s48
      %54 = dma.hbm_to_vmem [thread:$0]  %s3, 3072, %s49, [#allocation6], 192, 192, 12
    $region17: #{tpu_custom_call.1} parent=1 // pred_fallthru
      _
    // Predicated region
    $region18: #{tpu_custom_call.1} parent=1 // pred_check
      _
    $region19: #{tpu_custom_call.1} parent=1 // pred_check_branch
      %56 = sbr.rel (0) target = $region21
    $region20: #{tpu_custom_call.1} parent=1 // pred_region
      _
    $region21: #{tpu_custom_call.1} parent=1 // pred_fallthru
      _
    // Predicated region
    $region22: #{tpu_custom_call.1} parent=1 // pred_check
      _
    $region23: #{tpu_custom_call.1} parent=1 // pred_check_branch
      %58 = sbr.rel (0) target = $region25
    $region24: #{tpu_custom_call.1} parent=1 // pred_region
      _
    $region25: #{tpu_custom_call.1} parent=1 // pred_fallthru
      _
    // Predicated region
    $region26: #{tpu_custom_call.1} parent=1 // pred_check
      _
    $region27: #{tpu_custom_call.1} parent=1 // pred_check_branch
      %60 = sbr.rel (0) target = $region29
    $region28: #{tpu_custom_call.1} parent=1 // pred_region
      %61 = dma.done [#allocation3], 1024
    $region29: #{tpu_custom_call.1} parent=1 // pred_fallthru
      _
    // Predicated region
    $region30: #{tpu_custom_call.1} parent=1 // pred_check
      _
    $region31: #{tpu_custom_call.1} parent=1 // pred_check_branch
      %63 = sbr.rel (0) target = $region33
    $region32: #{tpu_custom_call.1} parent=1 // pred_region
      %64 = dma.done [#allocation6], 3072
    $region33: #{tpu_custom_call.1} parent=1 // pred_fallthru
      _
    // Predicated region
    $region34: #{tpu_custom_call.1} parent=1 // pred_check
      _
    $region35: #{tpu_custom_call.1} parent=1 // pred_check_branch
      %66 = sbr.rel (0) target = $region37
    $region36: #{tpu_custom_call.1} parent=1 // pred_region
      %67 = dma.done [#allocation6], 3072
    $region37: #{tpu_custom_call.1} parent=1 // pred_fallthru
      _
    %p69 = scmp.eq.s32.totalorder 0, 0
    // Predicated region
    $region38: #{tpu_custom_call.1} parent=1 // pred_check
      %p70 = pneg %p69
    $region39: #{tpu_custom_call.1} parent=1 // pred_check_branch
      %72 = sbr.rel (%p70) target = $region41
    $region40: #{tpu_custom_call.1} parent=1 // pred_region
      %73 = vst [vmem:[#allocation9] sm:$0xff] 0.0
      %74 = vst [vmem:[#allocation9 + $0x8] sm:$0xff] 0.0
    $region41: #{tpu_custom_call.1} parent=1 // pred_fallthru
      _
    %v75 = vld [vmem:[#allocation2] sm:$0xf]
    %v76 = vld [vmem:[#allocation2 + $0x4] sm:$0xf]
    %v77 = vld [vmem:[#allocation2 + $0x8] sm:$0xf]
    %v78 = vld [vmem:[#allocation2 + $0xc] sm:$0xf]
    %v79 = vld [vmem:[#allocation2 + $0x10] sm:$0xf]
    %v80 = vld [vmem:[#allocation2 + $0x14] sm:$0xf]
    %v81 = vld [vmem:[#allocation2 + $0x18] sm:$0xf]
    %v82 = vld [vmem:[#allocation2 + $0x1c] sm:$0xf]
    %v83 = vld [vmem:[#allocation2 + $0x20] sm:$0xf]
    %v84 = vld [vmem:[#allocation2 + $0x24] sm:$0xf]
    %v85 = vld [vmem:[#allocation2 + $0x28] sm:$0xf]
    %v86 = vld [vmem:[#allocation2 + $0x2c] sm:$0xf]
    %v87 = vld [vmem:[#allocation2 + $0x30] sm:$0xf]
    %v88 = vld [vmem:[#allocation2 + $0x34] sm:$0xf]
    %v89 = vld [vmem:[#allocation2 + $0x38] sm:$0xf]
    %v90 = vld [vmem:[#allocation2 + $0x3c] sm:$0xf]
    %v91 = vld [vmem:[#allocation5] sm:$0xff]
    %v92 = vld [vmem:[#allocation5 + $0x8] sm:$0xf]
    %v93 = vld [vmem:[#allocation5 + $0xc] sm:$0xff]
    %v94 = vld [vmem:[#allocation5 + $0x14] sm:$0xf]
    %v95 = vld [vmem:[#allocation5 + $0x18] sm:$0xff]
    %v96 = vld [vmem:[#allocation5 + $0x20] sm:$0xf]
    %v97 = vld [vmem:[#allocation5 + $0x24] sm:$0xff]
    %v98 = vld [vmem:[#allocation5 + $0x2c] sm:$0xf]
    %v99 = vld [vmem:[#allocation5 + $0x30] sm:$0xff]
    %v100 = vld [vmem:[#allocation5 + $0x38] sm:$0xf]
    %v101 = vld [vmem:[#allocation5 + $0x3c] sm:$0xff]
    %v102 = vld [vmem:[#allocation5 + $0x44] sm:$0xf]
    %v103 = vld [vmem:[#allocation5 + $0x48] sm:$0xff]
    %v104 = vld [vmem:[#allocation5 + $0x50] sm:$0xf]
    %v105 = vld [vmem:[#allocation5 + $0x54] sm:$0xff]
    %v106 = vld [vmem:[#allocation5 + $0x5c] sm:$0xf]
    %v107 = vld [vmem:[#allocation5 + $0x60] sm:$0xff]
    %v108 = vld [vmem:[#allocation5 + $0x68] sm:$0xf]
    %v109 = vld [vmem:[#allocation5 + $0x6c] sm:$0xff]
    %v110 = vld [vmem:[#allocation5 + $0x74] sm:$0xf]
    %v111 = vld [vmem:[#allocation5 + $0x78] sm:$0xff]
    %v112 = vld [vmem:[#allocation5 + $0x80] sm:$0xf]
    %v113 = vld [vmem:[#allocation5 + $0x84] sm:$0xff]
    %v114 = vld [vmem:[#allocation5 + $0x8c] sm:$0xf]
    %v115 = vld [vmem:[#allocation5 + $0x90] sm:$0xff]
    %v116 = vld [vmem:[#allocation5 + $0x98] sm:$0xf]
    %v117 = vld [vmem:[#allocation5 + $0x9c] sm:$0xff]
    %v118 = vld [vmem:[#allocation5 + $0xa4] sm:$0xf]
    %v119 = vld [vmem:[#allocation5 + $0xa8] sm:$0xff]
    %v120 = vld [vmem:[#allocation5 + $0xb0] sm:$0xf]
    %v121 = vld [vmem:[#allocation5 + $0xb4] sm:$0xff]
    %v122 = vld [vmem:[#allocation5 + $0xbc] sm:$0xf]
    %v123 = vld [vmem:[%s4] sm:$0x7]
    %v125 = vlaneseq
    %v126 = vshrl.u32 %v125, 7
    %v127 = vsub.s32 0, %v126
    %v128 = vrot.slane %v123, %v127
    %v129 = vlaneseq
    %v130 = vshrl.u32 %v129, 7
    %v131 = vsub.s32 1, %v130
    %v132 = vrot.slane %v123, %v131
    %v133 = vlaneseq
    %v134 = vshrl.u32 %v133, 7
    %v135 = vsub.s32 2, %v134
    %v136 = vrot.slane %v123, %v135
    %v156 = vunpack.c.l.b16 %v75
    %v157 = vunpack.c.l.b16 %v76
    %v158 = vunpack.c.l.b16 %v77
    %v159 = vunpack.c.l.b16 %v78
    %v160 = vunpack.c.l.b16 %v79
    %v161 = vunpack.c.l.b16 %v80
    %v162 = vunpack.c.l.b16 %v81
    %v163 = vunpack.c.l.b16 %v82
    %v164 = vunpack.c.l.b16 %v83
    %v165 = vunpack.c.l.b16 %v84
    %v166 = vunpack.c.l.b16 %v85
    %v167 = vunpack.c.l.b16 %v86
    %v168 = vunpack.c.l.b16 %v87
    %v169 = vunpack.c.l.b16 %v88
    %v170 = vunpack.c.l.b16 %v89
    %v171 = vunpack.c.l.b16 %v90
    %v172 = vpack.c.b16 %v157, %v156
    %v173 = vpack.c.b16 %v159, %v158
    %v174 = vpack.c.b16 %v161, %v160
    %v175 = vpack.c.b16 %v163, %v162
    %v176 = vpack.c.b16 %v165, %v164
    %v177 = vpack.c.b16 %v167, %v166
    %v178 = vpack.c.b16 %v169, %v168
    %v179 = vpack.c.b16 %v171, %v170
    %v220 = vunpack.c.l.b16 %v91
    %v221 = vunpack.c.h.b16 %v91
    %v222 = vunpack.c.l.b16 %v92
    %v223 = vunpack.c.l.b16 %v93
    %v224 = vunpack.c.h.b16 %v93
    %v225 = vunpack.c.l.b16 %v94
    %v226 = vunpack.c.l.b16 %v95
    %v227 = vunpack.c.h.b16 %v95
    %v228 = vunpack.c.l.b16 %v96
    %v229 = vunpack.c.l.b16 %v97
    %v230 = vunpack.c.h.b16 %v97
    %v231 = vunpack.c.l.b16 %v98
    %v232 = vunpack.c.l.b16 %v99
    %v233 = vunpack.c.h.b16 %v99
    %v234 = vunpack.c.l.b16 %v100
    %v235 = vunpack.c.l.b16 %v101
    %v236 = vunpack.c.h.b16 %v101
    %v237 = vunpack.c.l.b16 %v102
    %v238 = vunpack.c.l.b16 %v103
    %v239 = vunpack.c.h.b16 %v103
    %v240 = vunpack.c.l.b16 %v104
    %v241 = vunpack.c.l.b16 %v105
    %v242 = vunpack.c.h.b16 %v105
    %v243 = vunpack.c.l.b16 %v106
    %v244 = vunpack.c.l.b16 %v107
    %v245 = vunpack.c.h.b16 %v107
    %v246 = vunpack.c.l.b16 %v108
    %v247 = vunpack.c.l.b16 %v109
    %v248 = vunpack.c.h.b16 %v109
    %v249 = vunpack.c.l.b16 %v110
    %v250 = vunpack.c.l.b16 %v111
    %v251 = vunpack.c.h.b16 %v111
    %v252 = vunpack.c.l.b16 %v112
    %v253 = vunpack.c.l.b16 %v113
    %v254 = vunpack.c.h.b16 %v113
    %v255 = vunpack.c.l.b16 %v114
    %v256 = vunpack.c.l.b16 %v115
    %v257 = vunpack.c.h.b16 %v115
    %v258 = vunpack.c.l.b16 %v116
    %v259 = vunpack.c.l.b16 %v117
    %v260 = vunpack.c.h.b16 %v117
    %v261 = vunpack.c.l.b16 %v118
    %v262 = vunpack.c.l.b16 %v119
    %v263 = vunpack.c.h.b16 %v119
    %v264 = vunpack.c.l.b16 %v120
    %v265 = vunpack.c.l.b16 %v121
    %v266 = vunpack.c.h.b16 %v121
    %v267 = vunpack.c.l.b16 %v122
    %v268 = vpack.c.b16 %v223, %v220
    %v269 = vpack.c.b16 %v224, %v221
    %v270 = vpack.c.b16 %v225, %v222
    %v271 = vpack.c.b16 %v229, %v226
    %v272 = vpack.c.b16 %v230, %v227
    %v273 = vpack.c.b16 %v231, %v228
    %v274 = vpack.c.b16 %v235, %v232
    %v275 = vpack.c.b16 %v236, %v233
    %v276 = vpack.c.b16 %v237, %v234
    %v277 = vpack.c.b16 %v241, %v238
    %v278 = vpack.c.b16 %v242, %v239
    %v279 = vpack.c.b16 %v243, %v240
    %v280 = vpack.c.b16 %v247, %v244
    %v281 = vpack.c.b16 %v248, %v245
    %v282 = vpack.c.b16 %v249, %v246
    %v283 = vpack.c.b16 %v253, %v250
    %v284 = vpack.c.b16 %v254, %v251
    %v285 = vpack.c.b16 %v255, %v252
    %v286 = vpack.c.b16 %v259, %v256
    %v287 = vpack.c.b16 %v260, %v257
    %v288 = vpack.c.b16 %v261, %v258
    %v289 = vpack.c.b16 %v265, %v262
    %v290 = vpack.c.b16 %v266, %v263
    %v291 = vpack.c.b16 %v267, %v264
    %316 = vmatprep.subr.bf16.mxu0 %v269
    %317 = vmatpush1.bf16.msra.mxu0 %v268
    %318 = vmatprep.subr.bf16.mxu0 %v272
    %319 = vmatpush1.bf16.msra.mxu0 %v271
    %320 = vmatprep.subr.bf16.mxu0 %v275
    %321 = vmatpush1.bf16.msra.mxu0 %v274
    %322 = vmatprep.subr.bf16.mxu0 %v278
    %323 = vmatpush1.bf16.msra.mxu0 %v277
    %324 = vmatprep.subr.bf16.mxu0 %v281
    %325 = vmatpush1.bf16.msra.mxu0 %v280
    %326 = vmatprep.subr.bf16.mxu0 %v284
    %327 = vmatpush1.bf16.msra.mxu0 %v283
    %328 = vmatprep.subr.bf16.mxu0 %v287
    %329 = vmatpush1.bf16.msra.mxu0 %v286
    %330 = vmatprep.subr.bf16.mxu0 %v290
    %331 = vmatpush1.bf16.msra.mxu0 %v289
    %332 = vmatprep.subr.bf16.mxu0 0
    %333 = vmatpush1.bf16.msra.mxu0 0
    %334 = vmatprep.subr.bf16.mxu0 0
    %335 = vmatpush1.bf16.msra.mxu0 0
    %336 = vmatprep.subr.bf16.mxu0 0
    %337 = vmatpush1.bf16.msra.mxu0 0
    %338 = vmatprep.subr.bf16.mxu0 0
    %339 = vmatpush1.bf16.msra.mxu0 0
    %340 = vmatprep.subr.bf16.mxu0 0
    %341 = vmatpush1.bf16.msra.mxu0 0
    %342 = vmatprep.subr.bf16.mxu0 0
    %343 = vmatpush1.bf16.msra.mxu0 0
    %344 = vmatprep.subr.bf16.mxu0 0
    %345 = vmatpush1.bf16.msra.mxu0 0
    %346 = vmatprep.subr.bf16.mxu0 0
    %347 = vmatpush1.bf16.msra.mxu0 0
    %348 = vmatprep.mubr.bf16.mxu0 0
    %349 = vmatmul.mubr.bf16.gmra.mrb[0].mxu0 %v172
    %v350 = vpop.f32.mrb[0].mxu0
    %v351 = vadd.f32 %v128, %v350
    %v352 = vpop.f32.mrb[0].mxu0
    %v353 = vadd.f32 %v132, %v352
    %v354 = vpop.f32.mrb[0].mxu0
    %v355 = vadd.f32 %v128, %v354
    %v356 = vpop.f32.mrb[0].mxu0
    %v357 = vadd.f32 %v132, %v356
    %358 = vmatprep.mubr.bf16.mxu0 0
    %359 = vmatmul.mubr.bf16.gmra.mrb[0].mxu0 %v173
    %v360 = vpop.f32.mrb[0].mxu0
    %v361 = vadd.f32 %v128, %v360
    %v362 = vpop.f32.mrb[0].mxu0
    %v363 = vadd.f32 %v132, %v362
    %v364 = vpop.f32.mrb[0].mxu0
    %v365 = vadd.f32 %v128, %v364
    %v366 = vpop.f32.mrb[0].mxu0
    %v367 = vadd.f32 %v132, %v366
    %368 = vmatprep.mubr.bf16.mxu0 0
    %369 = vmatmul.mubr.bf16.gmra.mrb[0].mxu0 %v174
    %v370 = vpop.f32.mrb[0].mxu0
    %v371 = vadd.f32 %v128, %v370
    %v372 = vpop.f32.mrb[0].mxu0
    %v373 = vadd.f32 %v132, %v372
    %v374 = vpop.f32.mrb[0].mxu0
    %v375 = vadd.f32 %v128, %v374
    %v376 = vpop.f32.mrb[0].mxu0
    %v377 = vadd.f32 %v132, %v376
    %378 = vmatprep.mubr.bf16.mxu0 0
    %379 = vmatmul.mubr.bf16.gmra.mrb[0].mxu0 %v175
    %v380 = vpop.f32.mrb[0].mxu0
    %v381 = vadd.f32 %v128, %v380
    %v382 = vpop.f32.mrb[0].mxu0
    %v383 = vadd.f32 %v132, %v382
    %v384 = vpop.f32.mrb[0].mxu0
    %v385 = vadd.f32 %v128, %v384
    %v386 = vpop.f32.mrb[0].mxu0
    %v387 = vadd.f32 %v132, %v386
    %388 = vmatprep.mubr.bf16.mxu0 0
    %389 = vmatmul.mubr.bf16.gmra.mrb[0].mxu0 %v176
    %v390 = vpop.f32.mrb[0].mxu0
    %v391 = vadd.f32 %v128, %v390
    %v392 = vpop.f32.mrb[0].mxu0
    %v393 = vadd.f32 %v132, %v392
    %v394 = vpop.f32.mrb[0].mxu0
    %v395 = vadd.f32 %v128, %v394
    %v396 = vpop.f32.mrb[0].mxu0
    %v397 = vadd.f32 %v132, %v396
    %398 = vmatprep.mubr.bf16.mxu0 0
    %399 = vmatmul.mubr.bf16.gmra.mrb[0].mxu0 %v177
    %v400 = vpop.f32.mrb[0].mxu0
    %v401 = vadd.f32 %v128, %v400
    %v402 = vpop.f32.mrb[0].mxu0
    %v403 = vadd.f32 %v132, %v402
    %v404 = vpop.f32.mrb[0].mxu0
    %v405 = vadd.f32 %v128, %v404
    %v406 = vpop.f32.mrb[0].mxu0
    %v407 = vadd.f32 %v132, %v406
    %408 = vmatprep.mubr.bf16.mxu0 0
    %409 = vmatmul.mubr.bf16.gmra.mrb[0].mxu0 %v178
    %v410 = vpop.f32.mrb[0].mxu0
    %v411 = vadd.f32 %v128, %v410
    %v412 = vpop.f32.mrb[0].mxu0
    %v413 = vadd.f32 %v132, %v412
    %v414 = vpop.f32.mrb[0].mxu0
    %v415 = vadd.f32 %v128, %v414
    %v416 = vpop.f32.mrb[0].mxu0
    %v417 = vadd.f32 %v132, %v416
    %418 = vmatprep.mubr.bf16.mxu0 0
    %419 = vmatmul.mubr.bf16.gmra.mrb[0].mxu0 %v179
    %v420 = vpop.f32.mrb[0].mxu0
    %v421 = vadd.f32 %v128, %v420
    %v422 = vpop.f32.mrb[0].mxu0
    %v423 = vadd.f32 %v132, %v422
    %v424 = vpop.f32.mrb[0].mxu0
    %v425 = vadd.f32 %v128, %v424
    %v426 = vpop.f32.mrb[0].mxu0
    %v427 = vadd.f32 %v132, %v426
    %428 = vdwg.mxu0
    %429 = vmatprep.subr.bf16.mxu0 0
    %430 = vmatpush1.bf16.msra.mxu0 %v270
    %431 = vmatprep.subr.bf16.mxu0 0
    %432 = vmatpush1.bf16.msra.mxu0 %v273
    %433 = vmatprep.subr.bf16.mxu0 0
    %434 = vmatpush1.bf16.msra.mxu0 %v276
    %435 = vmatprep.subr.bf16.mxu0 0
    %436 = vmatpush1.bf16.msra.mxu0 %v279
    %437 = vmatprep.subr.bf16.mxu0 0
    %438 = vmatpush1.bf16.msra.mxu0 %v282
    %439 = vmatprep.subr.bf16.mxu0 0
    %440 = vmatpush1.bf16.msra.mxu0 %v285
    %441 = vmatprep.subr.bf16.mxu0 0
    %442 = vmatpush1.bf16.msra.mxu0 %v288
    %443 = vmatprep.subr.bf16.mxu0 0
    %444 = vmatpush1.bf16.msra.mxu0 %v291
    %445 = vmatprep.subr.bf16.mxu0 0
    %446 = vmatpush1.bf16.msra.mxu0 0
    %447 = vmatprep.subr.bf16.mxu0 0
    %448 = vmatpush1.bf16.msra.mxu0 0
    %449 = vmatprep.subr.bf16.mxu0 0
    %450 = vmatpush1.bf16.msra.mxu0 0
    %451 = vmatprep.subr.bf16.mxu0 0
    %452 = vmatpush1.bf16.msra.mxu0 0
    %453 = vmatprep.subr.bf16.mxu0 0
    %454 = vmatpush1.bf16.msra.mxu0 0
    %455 = vmatprep.subr.bf16.mxu0 0
    %456 = vmatpush1.bf16.msra.mxu0 0
    %457 = vmatprep.subr.bf16.mxu0 0
    %458 = vmatpush1.bf16.msra.mxu0 0
    %459 = vmatprep.subr.bf16.mxu0 0
    %460 = vmatpush1.bf16.msra.mxu0 0
    %461 = vmatprep.mubr.bf16.mxu0 0
    %462 = vmatmul.mubr.bf16.gmra.mrb[0].mxu0 %v172
    %v463 = vpop.f32.mrb[0].mxu0
    %v464 = vadd.f32 %v136, %v463
    %v465 = vpop.f32.mrb[0].mxu0
    %v466 = vpop.f32.mrb[0].mxu0
    %v467 = vadd.f32 %v136, %v466
    %v468 = vpop.f32.mrb[0].mxu0
    %469 = vmatprep.mubr.bf16.mxu0 0
    %470 = vmatmul.mubr.bf16.gmra.mrb[0].mxu0 %v173
    %v471 = vpop.f32.mrb[0].mxu0
    %v472 = vadd.f32 %v136, %v471
    %v473 = vpop.f32.mrb[0].mxu0
    %v474 = vpop.f32.mrb[0].mxu0
    %v475 = vadd.f32 %v136, %v474
    %v476 = vpop.f32.mrb[0].mxu0
    %477 = vmatprep.mubr.bf16.mxu0 0
    %478 = vmatmul.mubr.bf16.gmra.mrb[0].mxu0 %v174
    %v479 = vpop.f32.mrb[0].mxu0
    %v480 = vadd.f32 %v136, %v479
    %v481 = vpop.f32.mrb[0].mxu0
    %v482 = vpop.f32.mrb[0].mxu0
    %v483 = vadd.f32 %v136, %v482
    %v484 = vpop.f32.mrb[0].mxu0
    %485 = vmatprep.mubr.bf16.mxu0 0
    %486 = vmatmul.mubr.bf16.gmra.mrb[0].mxu0 %v175
    %v487 = vpop.f32.mrb[0].mxu0
    %v488 = vadd.f32 %v136, %v487
    %v489 = vpop.f32.mrb[0].mxu0
    %v490 = vpop.f32.mrb[0].mxu0
    %v491 = vadd.f32 %v136, %v490
    %v492 = vpop.f32.mrb[0].mxu0
    %493 = vmatprep.mubr.bf16.mxu0 0
    %494 = vmatmul.mubr.bf16.gmra.mrb[0].mxu0 %v176
    %v495 = vpop.f32.mrb[0].mxu0
    %v496 = vadd.f32 %v136, %v495
    %v497 = vpop.f32.mrb[0].mxu0
    %v498 = vpop.f32.mrb[0].mxu0
    %v499 = vadd.f32 %v136, %v498
    %v500 = vpop.f32.mrb[0].mxu0
    %501 = vmatprep.mubr.bf16.mxu0 0
    %502 = vmatmul.mubr.bf16.gmra.mrb[0].mxu0 %v177
    %v503 = vpop.f32.mrb[0].mxu0
    %v504 = vadd.f32 %v136, %v503
    %v505 = vpop.f32.mrb[0].mxu0
    %v506 = vpop.f32.mrb[0].mxu0
    %v507 = vadd.f32 %v136, %v506
    %v508 = vpop.f32.mrb[0].mxu0
    %509 = vmatprep.mubr.bf16.mxu0 0
    %510 = vmatmul.mubr.bf16.gmra.mrb[0].mxu0 %v178
    %v511 = vpop.f32.mrb[0].mxu0
    %v512 = vadd.f32 %v136, %v511
    %v513 = vpop.f32.mrb[0].mxu0
    %v514 = vpop.f32.mrb[0].mxu0
    %v515 = vadd.f32 %v136, %v514
    %v516 = vpop.f32.mrb[0].mxu0
    %517 = vmatprep.mubr.bf16.mxu0 0
    %518 = vmatmul.mubr.bf16.gmra.mrb[0].mxu0 %v179
    %v519 = vpop.f32.mrb[0].mxu0
    %v520 = vadd.f32 %v136, %v519
    %v521 = vpop.f32.mrb[0].mxu0
    %v522 = vpop.f32.mrb[0].mxu0
    %v523 = vadd.f32 %v136, %v522
    %v524 = vpop.f32.mrb[0].mxu0
    %525 = vdwg.mxu0
    %v526 = vld [vmem:[#allocation7] sm:$0xff]
    %v527 = vld [vmem:[#allocation7 + $0x8] sm:$0xf]
    %v528 = vld [vmem:[#allocation7 + $0xc] sm:$0xff]
    %v529 = vld [vmem:[#allocation7 + $0x14] sm:$0xf]
    %v530 = vld [vmem:[#allocation7 + $0x18] sm:$0xff]
    %v531 = vld [vmem:[#allocation7 + $0x20] sm:$0xf]
    %v532 = vld [vmem:[#allocation7 + $0x24] sm:$0xff]
    %v533 = vld [vmem:[#allocation7 + $0x2c] sm:$0xf]
    %v534 = vld [vmem:[#allocation7 + $0x30] sm:$0xff]
    %v535 = vld [vmem:[#allocation7 + $0x38] sm:$0xf]
    %v536 = vld [vmem:[#allocation7 + $0x3c] sm:$0xff]
    %v537 = vld [vmem:[#allocation7 + $0x44] sm:$0xf]
    %v538 = vld [vmem:[#allocation7 + $0x48] sm:$0xff]
    %v539 = vld [vmem:[#allocation7 + $0x50] sm:$0xf]
    %v540 = vld [vmem:[#allocation7 + $0x54] sm:$0xff]
    %v541 = vld [vmem:[#allocation7 + $0x5c] sm:$0xf]
    %v542 = vld [vmem:[#allocation7 + $0x60] sm:$0xff]
    %v543 = vld [vmem:[#allocation7 + $0x68] sm:$0xf]
    %v544 = vld [vmem:[#allocation7 + $0x6c] sm:$0xff]
    %v545 = vld [vmem:[#allocation7 + $0x74] sm:$0xf]
    %v546 = vld [vmem:[#allocation7 + $0x78] sm:$0xff]
    %v547 = vld [vmem:[#allocation7 + $0x80] sm:$0xf]
    %v548 = vld [vmem:[#allocation7 + $0x84] sm:$0xff]
    %v549 = vld [vmem:[#allocation7 + $0x8c] sm:$0xf]
    %v550 = vld [vmem:[#allocation7 + $0x90] sm:$0xff]
    %v551 = vld [vmem:[#allocation7 + $0x98] sm:$0xf]
    %v552 = vld [vmem:[#allocation7 + $0x9c] sm:$0xff]
    %v553 = vld [vmem:[#allocation7 + $0xa4] sm:$0xf]
    %v554 = vld [vmem:[#allocation7 + $0xa8] sm:$0xff]
    %v555 = vld [vmem:[#allocation7 + $0xb0] sm:$0xf]
    %v556 = vld [vmem:[#allocation7 + $0xb4] sm:$0xff]
    %v557 = vld [vmem:[#allocation7 + $0xbc] sm:$0xf]
    %v558 = vld [vmem:[%s5] sm:$0x7]
    %v559 = vld [vmem:[%s0] sm:$0xff]
    %v560 = vld [vmem:[%s0 + $0x8] sm:$0xff]
    %v561 = vld [vmem:[#allocation9] sm:$0xff]
    %v562 = vld [vmem:[#allocation9 + $0x8] sm:$0xff]
    %s563 = smul.u32 0, 8
    %v564 = vpack.c.bf16 %v562, %v561
    %v566 = vlaneseq
    %v567 = vshrl.u32 %v566, 7
    %v568 = vsub.s32 0, %v567
    %v569 = vrot.slane %v558, %v568
    %v570 = vlaneseq
    %v571 = vshrl.u32 %v570, 7
    %v572 = vsub.s32 1, %v571
    %v573 = vrot.slane %v558, %v572
    %v574 = vlaneseq
    %v575 = vshrl.u32 %v574, 7
    %v576 = vsub.s32 2, %v575
    %v577 = vrot.slane %v558, %v576
    %v613 = vunpack.c.l.b16 %v526
    %v614 = vunpack.c.h.b16 %v526
    %v615 = vunpack.c.l.b16 %v527
    %v616 = vunpack.c.l.b16 %v528
    %v617 = vunpack.c.h.b16 %v528
    %v618 = vunpack.c.l.b16 %v529
    %v619 = vunpack.c.l.b16 %v530
    %v620 = vunpack.c.h.b16 %v530
    %v621 = vunpack.c.l.b16 %v531
    %v622 = vunpack.c.l.b16 %v532
    %v623 = vunpack.c.h.b16 %v532
    %v624 = vunpack.c.l.b16 %v533
    %v625 = vunpack.c.l.b16 %v534
    %v626 = vunpack.c.h.b16 %v534
    %v627 = vunpack.c.l.b16 %v535
    %v628 = vunpack.c.l.b16 %v536
    %v629 = vunpack.c.h.b16 %v536
    %v630 = vunpack.c.l.b16 %v537
    %v631 = vunpack.c.l.b16 %v538
    %v632 = vunpack.c.h.b16 %v538
    %v633 = vunpack.c.l.b16 %v539
    %v634 = vunpack.c.l.b16 %v540
    %v635 = vunpack.c.h.b16 %v540
    %v636 = vunpack.c.l.b16 %v541
    %v637 = vunpack.c.l.b16 %v542
    %v638 = vunpack.c.h.b16 %v542
    %v639 = vunpack.c.l.b16 %v543
    %v640 = vunpack.c.l.b16 %v544
    %v641 = vunpack.c.h.b16 %v544
    %v642 = vunpack.c.l.b16 %v545
    %v643 = vunpack.c.l.b16 %v546
    %v644 = vunpack.c.h.b16 %v546
    %v645 = vunpack.c.l.b16 %v547
    %v646 = vunpack.c.l.b16 %v548
    %v647 = vunpack.c.h.b16 %v548
    %v648 = vunpack.c.l.b16 %v549
    %v649 = vunpack.c.l.b16 %v550
    %v650 = vunpack.c.h.b16 %v550
    %v651 = vunpack.c.l.b16 %v551
    %v652 = vunpack.c.l.b16 %v552
    %v653 = vunpack.c.h.b16 %v552
    %v654 = vunpack.c.l.b16 %v553
    %v655 = vunpack.c.l.b16 %v554
    %v656 = vunpack.c.h.b16 %v554
    %v657 = vunpack.c.l.b16 %v555
    %v658 = vunpack.c.l.b16 %v556
    %v659 = vunpack.c.h.b16 %v556
    %v660 = vunpack.c.l.b16 %v557
    %v661 = vpack.c.b16 %v616, %v613
    %v662 = vpack.c.b16 %v617, %v614
    %v663 = vpack.c.b16 %v618, %v615
    %v664 = vpack.c.b16 %v622, %v619
    %v665 = vpack.c.b16 %v623, %v620
    %v666 = vpack.c.b16 %v624, %v621
    %v667 = vpack.c.b16 %v628, %v625
    %v668 = vpack.c.b16 %v629, %v626
    %v669 = vpack.c.b16 %v630, %v627
    %v670 = vpack.c.b16 %v634, %v631
    %v671 = vpack.c.b16 %v635, %v632
    %v672 = vpack.c.b16 %v636, %v633
    %v673 = vpack.c.b16 %v640, %v637
    %v674 = vpack.c.b16 %v641, %v638
    %v675 = vpack.c.b16 %v642, %v639
    %v676 = vpack.c.b16 %v646, %v643
    %v677 = vpack.c.b16 %v647, %v644
    %v678 = vpack.c.b16 %v648, %v645
    %v679 = vpack.c.b16 %v652, %v649
    %v680 = vpack.c.b16 %v653, %v650
    %v681 = vpack.c.b16 %v654, %v651
    %v682 = vpack.c.b16 %v658, %v655
    %v683 = vpack.c.b16 %v659, %v656
    %v684 = vpack.c.b16 %v660, %v657
    %709 = vmatprep.subr.bf16.mxu0 %v662
    %710 = vmatpush1.bf16.msra.mxu0 %v661
    %711 = vmatprep.subr.bf16.mxu0 %v665
    %712 = vmatpush1.bf16.msra.mxu0 %v664
    %713 = vmatprep.subr.bf16.mxu0 %v668
    %714 = vmatpush1.bf16.msra.mxu0 %v667
    %715 = vmatprep.subr.bf16.mxu0 %v671
    %716 = vmatpush1.bf16.msra.mxu0 %v670
    %717 = vmatprep.subr.bf16.mxu0 %v674
    %718 = vmatpush1.bf16.msra.mxu0 %v673
    %719 = vmatprep.subr.bf16.mxu0 %v677
    %720 = vmatpush1.bf16.msra.mxu0 %v676
    %721 = vmatprep.subr.bf16.mxu0 %v680
    %722 = vmatpush1.bf16.msra.mxu0 %v679
    %723 = vmatprep.subr.bf16.mxu0 %v683
    %724 = vmatpush1.bf16.msra.mxu0 %v682
    %725 = vmatprep.subr.bf16.mxu0 0
    %726 = vmatpush1.bf16.msra.mxu0 0
    %727 = vmatprep.subr.bf16.mxu0 0
    %728 = vmatpush1.bf16.msra.mxu0 0
    %729 = vmatprep.subr.bf16.mxu0 0
    %730 = vmatpush1.bf16.msra.mxu0 0
    %731 = vmatprep.subr.bf16.mxu0 0
    %732 = vmatpush1.bf16.msra.mxu0 0
    %733 = vmatprep.subr.bf16.mxu0 0
    %734 = vmatpush1.bf16.msra.mxu0 0
    %735 = vmatprep.subr.bf16.mxu0 0
    %736 = vmatpush1.bf16.msra.mxu0 0
    %737 = vmatprep.subr.bf16.mxu0 0
    %738 = vmatpush1.bf16.msra.mxu0 0
    %739 = vmatprep.subr.bf16.mxu0 0
    %740 = vmatpush1.bf16.msra.mxu0 0
    %741 = vmatprep.mubr.bf16.mxu0 0
    %742 = vmatmul.mubr.bf16.gmra.mrb[0].mxu0 %v564
    %v743 = vpop.f32.mrb[0].mxu0
    %v744 = vadd.f32 %v569, %v743
    %v745 = vpop.f32.mrb[0].mxu0
    %v746 = vadd.f32 %v573, %v745
    %v747 = vpop.f32.mrb[0].mxu0
    %v748 = vadd.f32 %v569, %v747
    %v749 = vpop.f32.mrb[0].mxu0
    %v750 = vadd.f32 %v573, %v749
    %751 = vdwg.mxu0
    %752 = vmatprep.subr.bf16.mxu0 0
    %753 = vmatpush1.bf16.msra.mxu0 %v663
    %754 = vmatprep.subr.bf16.mxu0 0
    %755 = vmatpush1.bf16.msra.mxu0 %v666
    %756 = vmatprep.subr.bf16.mxu0 0
    %757 = vmatpush1.bf16.msra.mxu0 %v669
    %758 = vmatprep.subr.bf16.mxu0 0
    %759 = vmatpush1.bf16.msra.mxu0 %v672
    %760 = vmatprep.subr.bf16.mxu0 0
    %761 = vmatpush1.bf16.msra.mxu0 %v675
    %762 = vmatprep.subr.bf16.mxu0 0
    %763 = vmatpush1.bf16.msra.mxu0 %v678
    %764 = vmatprep.subr.bf16.mxu0 0
    %765 = vmatpush1.bf16.msra.mxu0 %v681
    %766 = vmatprep.subr.bf16.mxu0 0
    %767 = vmatpush1.bf16.msra.mxu0 %v684
    %768 = vmatprep.subr.bf16.mxu0 0
    %769 = vmatpush1.bf16.msra.mxu0 0
    %770 = vmatprep.subr.bf16.mxu0 0
    %771 = vmatpush1.bf16.msra.mxu0 0
    %772 = vmatprep.subr.bf16.mxu0 0
    %773 = vmatpush1.bf16.msra.mxu0 0
    %774 = vmatprep.subr.bf16.mxu0 0
    %775 = vmatpush1.bf16.msra.mxu0 0
    %776 = vmatprep.subr.bf16.mxu0 0
    %777 = vmatpush1.bf16.msra.mxu0 0
    %778 = vmatprep.subr.bf16.mxu0 0
    %779 = vmatpush1.bf16.msra.mxu0 0
    %780 = vmatprep.subr.bf16.mxu0 0
    %781 = vmatpush1.bf16.msra.mxu0 0
    %782 = vmatprep.subr.bf16.mxu0 0
    %783 = vmatpush1.bf16.msra.mxu0 0
    %784 = vmatprep.mubr.bf16.mxu0 0
    %785 = vmatmul.mubr.bf16.gmra.mrb[0].mxu0 %v564
    %v786 = vpop.f32.mrb[0].mxu0
    %v787 = vadd.f32 %v577, %v786
    %v788 = vpop.f32.mrb[0].mxu0
    %v789 = vpop.f32.mrb[0].mxu0
    %v790 = vadd.f32 %v577, %v789
    %v791 = vpop.f32.mrb[0].mxu0
    %792 = vdwg.mxu0
    %v793 = vadd.f32 %v351, %v744
    %v794 = vadd.f32 %v355, %v748
    %v795 = vxor.u32 %v793, 2147483648
    %v796 = vxor.u32 %v794, 2147483648
    %v797 = vmul.f32 %v795, 1.442695
    %v798 = vpow.pop %v797
    %v799 = vmul.f32 %v796, 1.442695
    %v800 = vpow.pop %v799
    %v801 = vadd.f32 %v798, 1.0
    %v802 = vadd.f32 %v800, 1.0
    %v803 = vrcp.pop %v801
    %v804 = vmul.f32 1.0, %v803
    %v805 = vrcp.pop %v802
    %v806 = vmul.f32 1.0, %v805
    %v807 = vadd.f32 %v353, %v746
    %v808 = vadd.f32 %v357, %v750
    %v809 = vxor.u32 %v807, 2147483648
    %v810 = vxor.u32 %v808, 2147483648
    %v811 = vmul.f32 %v809, 1.442695
    %v812 = vpow.pop %v811
    %v813 = vmul.f32 %v810, 1.442695
    %v814 = vpow.pop %v813
    %v815 = vadd.f32 %v812, 1.0
    %v816 = vadd.f32 %v814, 1.0
    %v817 = vrcp.pop %v815
    %v818 = vmul.f32 1.0, %v817
    %v819 = vrcp.pop %v816
    %v820 = vmul.f32 1.0, %v819
    %v821 = vmul.f32 %v804, %v787
    %v822 = vmul.f32 %v806, %v790
    %v823 = vadd.f32 %v464, %v821
    %v824 = vadd.f32 %v467, %v822
    %v825 = vtanh.pop %v823
    %v826 = vtanh.pop %v824
    %v827 = vsub.f32 1.0, %v818
    %v828 = vsub.f32 1.0, %v820
    %v829 = vmul.f32 %v827, %v825
    %v830 = vmul.f32 %v828, %v826
    %v831 = vmul.f32 %v818, %v561
    %v832 = vmul.f32 %v820, %v562
    %v833 = vadd.f32 %v829, %v831
    %v834 = vadd.f32 %v830, %v832
    %v835 = vstv %s563
    %vm836 = vcmp.lt.s32.totalorder %v835, %v559
    %vm837 = vcmp.lt.s32.totalorder %v835, %v560
    %v838 = vsel %vm836, 1, 0
    %v839 = vsel %vm837, 1, 0
    %840 = vset.pattern.permute.xlu0 0
    %841 = vperm.xlu0 %840, %v838
    %v842 = vpop.permute.xlu0 %841
    %843 = vset.pattern.permute.xlu0 0
    %844 = vperm.xlu0 %843, %v839
    %v845 = vpop.permute.xlu0 %844
    %vm846 = vcmp.eq.s32.totalorder %v842, 1
    %vm847 = vcmp.eq.s32.totalorder %v845, 1
    %v848 = vsel %vm846, %v833, %v561
    %v849 = vsel %vm847, %v834, %v562
    %v850 = vsel %vm846, %v833, 0.0
    %v851 = vsel %vm847, %v834, 0.0
    %s852 = sadd.s32 %s563, 1
    %v853 = vpack.c.bf16 %v849, %v848
    %854 = vmatprep.subr.bf16.mxu0 %v662
    %855 = vmatpush1.bf16.msra.mxu0 %v661
    %856 = vmatprep.subr.bf16.mxu0 %v665
    %857 = vmatpush1.bf16.msra.mxu0 %v664
    %858 = vmatprep.subr.bf16.mxu0 %v668
    %859 = vmatpush1.bf16.msra.mxu0 %v667
    %860 = vmatprep.subr.bf16.mxu0 %v671
    %861 = vmatpush1.bf16.msra.mxu0 %v670
    %862 = vmatprep.subr.bf16.mxu0 %v674
    %863 = vmatpush1.bf16.msra.mxu0 %v673
    %864 = vmatprep.subr.bf16.mxu0 %v677
    %865 = vmatpush1.bf16.msra.mxu0 %v676
    %866 = vmatprep.subr.bf16.mxu0 %v680
    %867 = vmatpush1.bf16.msra.mxu0 %v679
    %868 = vmatprep.subr.bf16.mxu0 %v683
    %869 = vmatpush1.bf16.msra.mxu0 %v682
    %870 = vmatprep.subr.bf16.mxu0 0
    %871 = vmatpush1.bf16.msra.mxu0 0
    %872 = vmatprep.subr.bf16.mxu0 0
    %873 = vmatpush1.bf16.msra.mxu0 0
    %874 = vmatprep.subr.bf16.mxu0 0
    %875 = vmatpush1.bf16.msra.mxu0 0
    %876 = vmatprep.subr.bf16.mxu0 0
    %877 = vmatpush1.bf16.msra.mxu0 0
    %878 = vmatprep.subr.bf16.mxu0 0
    %879 = vmatpush1.bf16.msra.mxu0 0
    %880 = vmatprep.subr.bf16.mxu0 0
    %881 = vmatpush1.bf16.msra.mxu0 0
    %882 = vmatprep.subr.bf16.mxu0 0
    %883 = vmatpush1.bf16.msra.mxu0 0
    %884 = vmatprep.subr.bf16.mxu0 0
    %885 = vmatpush1.bf16.msra.mxu0 0
    %886 = vmatprep.mubr.bf16.mxu0 0
    %887 = vmatmul.mubr.bf16.gmra.mrb[0].mxu0 %v853
    %v888 = vpop.f32.mrb[0].mxu0
    %v889 = vadd.f32 %v569, %v888
    %v890 = vpop.f32.mrb[0].mxu0
    %v891 = vadd.f32 %v573, %v890
    %v892 = vpop.f32.mrb[0].mxu0
    %v893 = vadd.f32 %v569, %v892
    %v894 = vpop.f32.mrb[0].mxu0
    %v895 = vadd.f32 %v573, %v894
    %896 = vdwg.mxu0
    %897 = vmatprep.subr.bf16.mxu0 0
    %898 = vmatpush1.bf16.msra.mxu0 %v663
    %899 = vmatprep.subr.bf16.mxu0 0
    %900 = vmatpush1.bf16.msra.mxu0 %v666
    %901 = vmatprep.subr.bf16.mxu0 0
    %902 = vmatpush1.bf16.msra.mxu0 %v669
    %903 = vmatprep.subr.bf16.mxu0 0
    %904 = vmatpush1.bf16.msra.mxu0 %v672
    %905 = vmatprep.subr.bf16.mxu0 0
    %906 = vmatpush1.bf16.msra.mxu0 %v675
    %907 = vmatprep.subr.bf16.mxu0 0
    %908 = vmatpush1.bf16.msra.mxu0 %v678
    %909 = vmatprep.subr.bf16.mxu0 0
    %910 = vmatpush1.bf16.msra.mxu0 %v681
    %911 = vmatprep.subr.bf16.mxu0 0
    %912 = vmatpush1.bf16.msra.mxu0 %v684
    %913 = vmatprep.subr.bf16.mxu0 0
    %914 = vmatpush1.bf16.msra.mxu0 0
    %915 = vmatprep.subr.bf16.mxu0 0
    %916 = vmatpush1.bf16.msra.mxu0 0
    %917 = vmatprep.subr.bf16.mxu0 0
    %918 = vmatpush1.bf16.msra.mxu0 0
    %919 = vmatprep.subr.bf16.mxu0 0
    %920 = vmatpush1.bf16.msra.mxu0 0
    %921 = vmatprep.subr.bf16.mxu0 0
    %922 = vmatpush1.bf16.msra.mxu0 0
    %923 = vmatprep.subr.bf16.mxu0 0
    %924 = vmatpush1.bf16.msra.mxu0 0
    %925 = vmatprep.subr.bf16.mxu0 0
    %926 = vmatpush1.bf16.msra.mxu0 0
    %927 = vmatprep.subr.bf16.mxu0 0
    %928 = vmatpush1.bf16.msra.mxu0 0
    %929 = vmatprep.mubr.bf16.mxu0 0
    %930 = vmatmul.mubr.bf16.gmra.mrb[0].mxu0 %v853
    %v931 = vpop.f32.mrb[0].mxu0
    %v932 = vadd.f32 %v577, %v931
    %v933 = vpop.f32.mrb[0].mxu0
    %v934 = vpop.f32.mrb[0].mxu0
    %v935 = vadd.f32 %v577, %v934
    %v936 = vpop.f32.mrb[0].mxu0
    %937 = vdwg.mxu0
    %v938 = vadd.f32 %v361, %v889
    %v939 = vadd.f32 %v365, %v893
    %v940 = vxor.u32 %v938, 2147483648
    %v941 = vxor.u32 %v939, 2147483648
    %v942 = vmul.f32 %v940, 1.442695
    %v943 = vpow.pop %v942
    %v944 = vmul.f32 %v941, 1.442695
    %v945 = vpow.pop %v944
    %v946 = vadd.f32 %v943, 1.0
    %v947 = vadd.f32 %v945, 1.0
    %v948 = vrcp.pop %v946
    %v949 = vmul.f32 1.0, %v948
    %v950 = vrcp.pop %v947
    %v951 = vmul.f32 1.0, %v950
    %v952 = vadd.f32 %v363, %v891
    %v953 = vadd.f32 %v367, %v895
    %v954 = vxor.u32 %v952, 2147483648
    %v955 = vxor.u32 %v953, 2147483648
    %v956 = vmul.f32 %v954, 1.442695
    %v957 = vpow.pop %v956
    %v958 = vmul.f32 %v955, 1.442695
    %v959 = vpow.pop %v958
    %v960 = vadd.f32 %v957, 1.0
    %v961 = vadd.f32 %v959, 1.0
    %v962 = vrcp.pop %v960
    %v963 = vmul.f32 1.0, %v962
    %v964 = vrcp.pop %v961
    %v965 = vmul.f32 1.0, %v964
    %v966 = vmul.f32 %v949, %v932
    %v967 = vmul.f32 %v951, %v935
    %v968 = vadd.f32 %v472, %v966
    %v969 = vadd.f32 %v475, %v967
    %v970 = vtanh.pop %v968
    %v971 = vtanh.pop %v969
    %v972 = vsub.f32 1.0, %v963
    %v973 = vsub.f32 1.0, %v965
    %v974 = vmul.f32 %v972, %v970
    %v975 = vmul.f32 %v973, %v971
    %v976 = vmul.f32 %v963, %v848
    %v977 = vmul.f32 %v965, %v849
    %v978 = vadd.f32 %v974, %v976
    %v979 = vadd.f32 %v975, %v977
    %v980 = vstv %s852
    %vm981 = vcmp.lt.s32.totalorder %v980, %v559
    %vm982 = vcmp.lt.s32.totalorder %v980, %v560
    %v983 = vsel %vm981, 1, 0
    %v984 = vsel %vm982, 1, 0
    %985 = vset.pattern.permute.xlu0 0
    %986 = vperm.xlu0 %985, %v983
    %v987 = vpop.permute.xlu0 %986
    %988 = vset.pattern.permute.xlu0 0
    %989 = vperm.xlu0 %988, %v984
    %v990 = vpop.permute.xlu0 %989
    %vm991 = vcmp.eq.s32.totalorder %v987, 1
    %vm992 = vcmp.eq.s32.totalorder %v990, 1
    %v993 = vsel %vm991, %v978, %v848
    %v994 = vsel %vm992, %v979, %v849
    %v995 = vsel %vm991, %v978, 0.0
    %v996 = vsel %vm992, %v979, 0.0
    %s997 = sadd.s32 %s563, 2
    %v998 = vpack.c.bf16 %v994, %v993
    %999 = vmatprep.subr.bf16.mxu0 %v662
    %1000 = vmatpush1.bf16.msra.mxu0 %v661
    %1001 = vmatprep.subr.bf16.mxu0 %v665
    %1002 = vmatpush1.bf16.msra.mxu0 %v664
    %1003 = vmatprep.subr.bf16.mxu0 %v668
    %1004 = vmatpush1.bf16.msra.mxu0 %v667
    %1005 = vmatprep.subr.bf16.mxu0 %v671
    %1006 = vmatpush1.bf16.msra.mxu0 %v670
    %1007 = vmatprep.subr.bf16.mxu0 %v674
    %1008 = vmatpush1.bf16.msra.mxu0 %v673
    %1009 = vmatprep.subr.bf16.mxu0 %v677
    %1010 = vmatpush1.bf16.msra.mxu0 %v676
    %1011 = vmatprep.subr.bf16.mxu0 %v680
    %1012 = vmatpush1.bf16.msra.mxu0 %v679
    %1013 = vmatprep.subr.bf16.mxu0 %v683
    %1014 = vmatpush1.bf16.msra.mxu0 %v682
    %1015 = vmatprep.subr.bf16.mxu0 0
    %1016 = vmatpush1.bf16.msra.mxu0 0
    %1017 = vmatprep.subr.bf16.mxu0 0
    %1018 = vmatpush1.bf16.msra.mxu0 0
    %1019 = vmatprep.subr.bf16.mxu0 0
    %1020 = vmatpush1.bf16.msra.mxu0 0
    %1021 = vmatprep.subr.bf16.mxu0 0
    %1022 = vmatpush1.bf16.msra.mxu0 0
    %1023 = vmatprep.subr.bf16.mxu0 0
    %1024 = vmatpush1.bf16.msra.mxu0 0
    %1025 = vmatprep.subr.bf16.mxu0 0
    %1026 = vmatpush1.bf16.msra.mxu0 0
    %1027 = vmatprep.subr.bf16.mxu0 0
    %1028 = vmatpush1.bf16.msra.mxu0 0
    %1029 = vmatprep.subr.bf16.mxu0 0
    %1030 = vmatpush1.bf16.msra.mxu0 0
    %1031 = vmatprep.mubr.bf16.mxu0 0
    %1032 = vmatmul.mubr.bf16.gmra.mrb[0].mxu0 %v998
    %v1033 = vpop.f32.mrb[0].mxu0
    %v1034 = vadd.f32 %v569, %v1033
    %v1035 = vpop.f32.mrb[0].mxu0
    %v1036 = vadd.f32 %v573, %v1035
    %v1037 = vpop.f32.mrb[0].mxu0
    %v1038 = vadd.f32 %v569, %v1037
    %v1039 = vpop.f32.mrb[0].mxu0
    %v1040 = vadd.f32 %v573, %v1039
    %1041 = vdwg.mxu0
    %1042 = vmatprep.subr.bf16.mxu0 0
    %1043 = vmatpush1.bf16.msra.mxu0 %v663
    %1044 = vmatprep.subr.bf16.mxu0 0
    %1045 = vmatpush1.bf16.msra.mxu0 %v666
    %1046 = vmatprep.subr.bf16.mxu0 0
    %1047 = vmatpush1.bf16.msra.mxu0 %v669
    %1048 = vmatprep.subr.bf16.mxu0 0
    %1049 = vmatpush1.bf16.msra.mxu0 %v672
    %1050 = vmatprep.subr.bf16.mxu0 0
    %1051 = vmatpush1.bf16.msra.mxu0 %v675
    %1052 = vmatprep.subr.bf16.mxu0 0
    %1053 = vmatpush1.bf16.msra.mxu0 %v678
    %1054 = vmatprep.subr.bf16.mxu0 0
    %1055 = vmatpush1.bf16.msra.mxu0 %v681
    %1056 = vmatprep.subr.bf16.mxu0 0
    %1057 = vmatpush1.bf16.msra.mxu0 %v684
    %1058 = vmatprep.subr.bf16.mxu0 0
    %1059 = vmatpush1.bf16.msra.mxu0 0
    %1060 = vmatprep.subr.bf16.mxu0 0
    %1061 = vmatpush1.bf16.msra.mxu0 0
    %1062 = vmatprep.subr.bf16.mxu0 0
    %1063 = vmatpush1.bf16.msra.mxu0 0
    %1064 = vmatprep.subr.bf16.mxu0 0
    %1065 = vmatpush1.bf16.msra.mxu0 0
    %1066 = vmatprep.subr.bf16.mxu0 0
    %1067 = vmatpush1.bf16.msra.mxu0 0
    %1068 = vmatprep.subr.bf16.mxu0 0
    %1069 = vmatpush1.bf16.msra.mxu0 0
    %1070 = vmatprep.subr.bf16.mxu0 0
    %1071 = vmatpush1.bf16.msra.mxu0 0
    %1072 = vmatprep.subr.bf16.mxu0 0
    %1073 = vmatpush1.bf16.msra.mxu0 0
    %1074 = vmatprep.mubr.bf16.mxu0 0
    %1075 = vmatmul.mubr.bf16.gmra.mrb[0].mxu0 %v998
    %v1076 = vpop.f32.mrb[0].mxu0
    %v1077 = vadd.f32 %v577, %v1076
    %v1078 = vpop.f32.mrb[0].mxu0
    %v1079 = vpop.f32.mrb[0].mxu0
    %v1080 = vadd.f32 %v577, %v1079
    %v1081 = vpop.f32.mrb[0].mxu0
    %1082 = vdwg.mxu0
    %v1083 = vadd.f32 %v371, %v1034
    %v1084 = vadd.f32 %v375, %v1038
    %v1085 = vxor.u32 %v1083, 2147483648
    %v1086 = vxor.u32 %v1084, 2147483648
    %v1087 = vmul.f32 %v1085, 1.442695
    %v1088 = vpow.pop %v1087
    %v1089 = vmul.f32 %v1086, 1.442695
    %v1090 = vpow.pop %v1089
    %v1091 = vadd.f32 %v1088, 1.0
    %v1092 = vadd.f32 %v1090, 1.0
    %v1093 = vrcp.pop %v1091
    %v1094 = vmul.f32 1.0, %v1093
    %v1095 = vrcp.pop %v1092
    %v1096 = vmul.f32 1.0, %v1095
    %v1097 = vadd.f32 %v373, %v1036
    %v1098 = vadd.f32 %v377, %v1040
    %v1099 = vxor.u32 %v1097, 2147483648
    %v1100 = vxor.u32 %v1098, 2147483648
    %v1101 = vmul.f32 %v1099, 1.442695
    %v1102 = vpow.pop %v1101
    %v1103 = vmul.f32 %v1100, 1.442695
    %v1104 = vpow.pop %v1103
    %v1105 = vadd.f32 %v1102, 1.0
    %v1106 = vadd.f32 %v1104, 1.0
    %v1107 = vrcp.pop %v1105
    %v1108 = vmul.f32 1.0, %v1107
    %v1109 = vrcp.pop %v1106
    %v1110 = vmul.f32 1.0, %v1109
    %v1111 = vmul.f32 %v1094, %v1077
    %v1112 = vmul.f32 %v1096, %v1080
    %v1113 = vadd.f32 %v480, %v1111
    %v1114 = vadd.f32 %v483, %v1112
    %v1115 = vtanh.pop %v1113
    %v1116 = vtanh.pop %v1114
    %v1117 = vsub.f32 1.0, %v1108
    %v1118 = vsub.f32 1.0, %v1110
    %v1119 = vmul.f32 %v1117, %v1115
    %v1120 = vmul.f32 %v1118, %v1116
    %v1121 = vmul.f32 %v1108, %v993
    %v1122 = vmul.f32 %v1110, %v994
    %v1123 = vadd.f32 %v1119, %v1121
    %v1124 = vadd.f32 %v1120, %v1122
    %v1125 = vstv %s997
    %vm1126 = vcmp.lt.s32.totalorder %v1125, %v559
    %vm1127 = vcmp.lt.s32.totalorder %v1125, %v560
    %v1128 = vsel %vm1126, 1, 0
    %v1129 = vsel %vm1127, 1, 0
    %1130 = vset.pattern.permute.xlu0 0
    %1131 = vperm.xlu0 %1130, %v1128
    %v1132 = vpop.permute.xlu0 %1131
    %1133 = vset.pattern.permute.xlu0 0
    %1134 = vperm.xlu0 %1133, %v1129
    %v1135 = vpop.permute.xlu0 %1134
    %vm1136 = vcmp.eq.s32.totalorder %v1132, 1
    %vm1137 = vcmp.eq.s32.totalorder %v1135, 1
    %v1138 = vsel %vm1136, %v1123, %v993
    %v1139 = vsel %vm1137, %v1124, %v994
    %v1140 = vsel %vm1136, %v1123, 0.0
    %v1141 = vsel %vm1137, %v1124, 0.0
    %s1142 = sadd.s32 %s563, 3
    %v1143 = vpack.c.bf16 %v1139, %v1138
    %1144 = vmatprep.subr.bf16.mxu0 %v662
    %1145 = vmatpush1.bf16.msra.mxu0 %v661
    %1146 = vmatprep.subr.bf16.mxu0 %v665
    %1147 = vmatpush1.bf16.msra.mxu0 %v664
    %1148 = vmatprep.subr.bf16.mxu0 %v668
    %1149 = vmatpush1.bf16.msra.mxu0 %v667
    %1150 = vmatprep.subr.bf16.mxu0 %v671
    %1151 = vmatpush1.bf16.msra.mxu0 %v670
    %1152 = vmatprep.subr.bf16.mxu0 %v674
    %1153 = vmatpush1.bf16.msra.mxu0 %v673
    %1154 = vmatprep.subr.bf16.mxu0 %v677
    %1155 = vmatpush1.bf16.msra.mxu0 %v676
    %1156 = vmatprep.subr.bf16.mxu0 %v680
    %1157 = vmatpush1.bf16.msra.mxu0 %v679
    %1158 = vmatprep.subr.bf16.mxu0 %v683
    %1159 = vmatpush1.bf16.msra.mxu0 %v682
    %1160 = vmatprep.subr.bf16.mxu0 0
    %1161 = vmatpush1.bf16.msra.mxu0 0
    %1162 = vmatprep.subr.bf16.mxu0 0
    %1163 = vmatpush1.bf16.msra.mxu0 0
    %1164 = vmatprep.subr.bf16.mxu0 0
    %1165 = vmatpush1.bf16.msra.mxu0 0
    %1166 = vmatprep.subr.bf16.mxu0 0
    %1167 = vmatpush1.bf16.msra.mxu0 0
    %1168 = vmatprep.subr.bf16.mxu0 0
    %1169 = vmatpush1.bf16.msra.mxu0 0
    %1170 = vmatprep.subr.bf16.mxu0 0
    %1171 = vmatpush1.bf16.msra.mxu0 0
    %1172 = vmatprep.subr.bf16.mxu0 0
    %1173 = vmatpush1.bf16.msra.mxu0 0
    %1174 = vmatprep.subr.bf16.mxu0 0
    %1175 = vmatpush1.bf16.msra.mxu0 0
    %1176 = vmatprep.mubr.bf16.mxu0 0
    %1177 = vmatmul.mubr.bf16.gmra.mrb[0].mxu0 %v1143
    %v1178 = vpop.f32.mrb[0].mxu0
    %v1179 = vadd.f32 %v569, %v1178
    %v1180 = vpop.f32.mrb[0].mxu0
    %v1181 = vadd.f32 %v573, %v1180
    %v1182 = vpop.f32.mrb[0].mxu0
    %v1183 = vadd.f32 %v569, %v1182
    %v1184 = vpop.f32.mrb[0].mxu0
    %v1185 = vadd.f32 %v573, %v1184
    %1186 = vdwg.mxu0
    %1187 = vmatprep.subr.bf16.mxu0 0
    %1188 = vmatpush1.bf16.msra.mxu0 %v663
    %1189 = vmatprep.subr.bf16.mxu0 0
    %1190 = vmatpush1.bf16.msra.mxu0 %v666
    %1191 = vmatprep.subr.bf16.mxu0 0
    %1192 = vmatpush1.bf16.msra.mxu0 %v669
    %1193 = vmatprep.subr.bf16.mxu0 0
    %1194 = vmatpush1.bf16.msra.mxu0 %v672
    %1195 = vmatprep.subr.bf16.mxu0 0
    %1196 = vmatpush1.bf16.msra.mxu0 %v675
    %1197 = vmatprep.subr.bf16.mxu0 0
    %1198 = vmatpush1.bf16.msra.mxu0 %v678
    %1199 = vmatprep.subr.bf16.mxu0 0
    %1200 = vmatpush1.bf16.msra.mxu0 %v681
    %1201 = vmatprep.subr.bf16.mxu0 0
    %1202 = vmatpush1.bf16.msra.mxu0 %v684
    %1203 = vmatprep.subr.bf16.mxu0 0
    %1204 = vmatpush1.bf16.msra.mxu0 0
    %1205 = vmatprep.subr.bf16.mxu0 0
    %1206 = vmatpush1.bf16.msra.mxu0 0
    %1207 = vmatprep.subr.bf16.mxu0 0
    %1208 = vmatpush1.bf16.msra.mxu0 0
    %1209 = vmatprep.subr.bf16.mxu0 0
    %1210 = vmatpush1.bf16.msra.mxu0 0
    %1211 = vmatprep.subr.bf16.mxu0 0
    %1212 = vmatpush1.bf16.msra.mxu0 0
    %1213 = vmatprep.subr.bf16.mxu0 0
    %1214 = vmatpush1.bf16.msra.mxu0 0
    %1215 = vmatprep.subr.bf16.mxu0 0
    %1216 = vmatpush1.bf16.msra.mxu0 0
    %1217 = vmatprep.subr.bf16.mxu0 0
    %1218 = vmatpush1.bf16.msra.mxu0 0
    %1219 = vmatprep.mubr.bf16.mxu0 0
    %1220 = vmatmul.mubr.bf16.gmra.mrb[0].mxu0 %v1143
    %v1221 = vpop.f32.mrb[0].mxu0
    %v1222 = vadd.f32 %v577, %v1221
    %v1223 = vpop.f32.mrb[0].mxu0
    %v1224 = vpop.f32.mrb[0].mxu0
    %v1225 = vadd.f32 %v577, %v1224
    %v1226 = vpop.f32.mrb[0].mxu0
    %1227 = vdwg.mxu0
    %v1228 = vadd.f32 %v381, %v1179
    %v1229 = vadd.f32 %v385, %v1183
    %v1230 = vxor.u32 %v1228, 2147483648
    %v1231 = vxor.u32 %v1229, 2147483648
    %v1232 = vmul.f32 %v1230, 1.442695
    %v1233 = vpow.pop %v1232
    %v1234 = vmul.f32 %v1231, 1.442695
    %v1235 = vpow.pop %v1234
    %v1236 = vadd.f32 %v1233, 1.0
    %v1237 = vadd.f32 %v1235, 1.0
    %v1238 = vrcp.pop %v1236
    %v1239 = vmul.f32 1.0, %v1238
    %v1240 = vrcp.pop %v1237
    %v1241 = vmul.f32 1.0, %v1240
    %v1242 = vadd.f32 %v383, %v1181
    %v1243 = vadd.f32 %v387, %v1185
    %v1244 = vxor.u32 %v1242, 2147483648
    %v1245 = vxor.u32 %v1243, 2147483648
    %v1246 = vmul.f32 %v1244, 1.442695
    %v1247 = vpow.pop %v1246
    %v1248 = vmul.f32 %v1245, 1.442695
    %v1249 = vpow.pop %v1248
    %v1250 = vadd.f32 %v1247, 1.0
    %v1251 = vadd.f32 %v1249, 1.0
    %v1252 = vrcp.pop %v1250
    %v1253 = vmul.f32 1.0, %v1252
    %v1254 = vrcp.pop %v1251
    %v1255 = vmul.f32 1.0, %v1254
    %v1256 = vmul.f32 %v1239, %v1222
    %v1257 = vmul.f32 %v1241, %v1225
    %v1258 = vadd.f32 %v488, %v1256
    %v1259 = vadd.f32 %v491, %v1257
    %v1260 = vtanh.pop %v1258
    %v1261 = vtanh.pop %v1259
    %v1262 = vsub.f32 1.0, %v1253
    %v1263 = vsub.f32 1.0, %v1255
    %v1264 = vmul.f32 %v1262, %v1260
    %v1265 = vmul.f32 %v1263, %v1261
    %v1266 = vmul.f32 %v1253, %v1138
    %v1267 = vmul.f32 %v1255, %v1139
    %v1268 = vadd.f32 %v1264, %v1266
    %v1269 = vadd.f32 %v1265, %v1267
    %v1270 = vstv %s1142
    %vm1271 = vcmp.lt.s32.totalorder %v1270, %v559
    %vm1272 = vcmp.lt.s32.totalorder %v1270, %v560
    %v1273 = vsel %vm1271, 1, 0
    %v1274 = vsel %vm1272, 1, 0
    %1275 = vset.pattern.permute.xlu0 0
    %1276 = vperm.xlu0 %1275, %v1273
    %v1277 = vpop.permute.xlu0 %1276
    %1278 = vset.pattern.permute.xlu0 0
    %1279 = vperm.xlu0 %1278, %v1274
    %v1280 = vpop.permute.xlu0 %1279
    %vm1281 = vcmp.eq.s32.totalorder %v1277, 1
    %vm1282 = vcmp.eq.s32.totalorder %v1280, 1
    %v1283 = vsel %vm1281, %v1268, %v1138
    %v1284 = vsel %vm1282, %v1269, %v1139
    %v1285 = vsel %vm1281, %v1268, 0.0
    %v1286 = vsel %vm1282, %v1269, 0.0
    %s1287 = sadd.s32 %s563, 4
    %v1288 = vpack.c.bf16 %v1284, %v1283
    %1289 = vmatprep.subr.bf16.mxu0 %v662
    %1290 = vmatpush1.bf16.msra.mxu0 %v661
    %1291 = vmatprep.subr.bf16.mxu0 %v665
    %1292 = vmatpush1.bf16.msra.mxu0 %v664
    %1293 = vmatprep.subr.bf16.mxu0 %v668
    %1294 = vmatpush1.bf16.msra.mxu0 %v667
    %1295 = vmatprep.subr.bf16.mxu0 %v671
    %1296 = vmatpush1.bf16.msra.mxu0 %v670
    %1297 = vmatprep.subr.bf16.mxu0 %v674
    %1298 = vmatpush1.bf16.msra.mxu0 %v673
    %1299 = vmatprep.subr.bf16.mxu0 %v677
    %1300 = vmatpush1.bf16.msra.mxu0 %v676
    %1301 = vmatprep.subr.bf16.mxu0 %v680
    %1302 = vmatpush1.bf16.msra.mxu0 %v679
    %1303 = vmatprep.subr.bf16.mxu0 %v683
    %1304 = vmatpush1.bf16.msra.mxu0 %v682
    %1305 = vmatprep.subr.bf16.mxu0 0
    %1306 = vmatpush1.bf16.msra.mxu0 0
    %1307 = vmatprep.subr.bf16.mxu0 0
    %1308 = vmatpush1.bf16.msra.mxu0 0
    %1309 = vmatprep.subr.bf16.mxu0 0
    %1310 = vmatpush1.bf16.msra.mxu0 0
    %1311 = vmatprep.subr.bf16.mxu0 0
    %1312 = vmatpush1.bf16.msra.mxu0 0
    %1313 = vmatprep.subr.bf16.mxu0 0
    %1314 = vmatpush1.bf16.msra.mxu0 0
    %1315 = vmatprep.subr.bf16.mxu0 0
    %1316 = vmatpush1.bf16.msra.mxu0 0
    %1317 = vmatprep.subr.bf16.mxu0 0
    %1318 = vmatpush1.bf16.msra.mxu0 0
    %1319 = vmatprep.subr.bf16.mxu0 0
    %1320 = vmatpush1.bf16.msra.mxu0 0
    %1321 = vmatprep.mubr.bf16.mxu0 0
    %1322 = vmatmul.mubr.bf16.gmra.mrb[0].mxu0 %v1288
    %v1323 = vpop.f32.mrb[0].mxu0
    %v1324 = vadd.f32 %v569, %v1323
    %v1325 = vpop.f32.mrb[0].mxu0
    %v1326 = vadd.f32 %v573, %v1325
    %v1327 = vpop.f32.mrb[0].mxu0
    %v1328 = vadd.f32 %v569, %v1327
    %v1329 = vpop.f32.mrb[0].mxu0
    %v1330 = vadd.f32 %v573, %v1329
    %1331 = vdwg.mxu0
    %1332 = vmatprep.subr.bf16.mxu0 0
    %1333 = vmatpush1.bf16.msra.mxu0 %v663
    %1334 = vmatprep.subr.bf16.mxu0 0
    %1335 = vmatpush1.bf16.msra.mxu0 %v666
    %1336 = vmatprep.subr.bf16.mxu0 0
    %1337 = vmatpush1.bf16.msra.mxu0 %v669
    %1338 = vmatprep.subr.bf16.mxu0 0
    %1339 = vmatpush1.bf16.msra.mxu0 %v672
    %1340 = vmatprep.subr.bf16.mxu0 0
    %1341 = vmatpush1.bf16.msra.mxu0 %v675
    %1342 = vmatprep.subr.bf16.mxu0 0
    %1343 = vmatpush1.bf16.msra.mxu0 %v678
    %1344 = vmatprep.subr.bf16.mxu0 0
    %1345 = vmatpush1.bf16.msra.mxu0 %v681
    %1346 = vmatprep.subr.bf16.mxu0 0
    %1347 = vmatpush1.bf16.msra.mxu0 %v684
    %1348 = vmatprep.subr.bf16.mxu0 0
    %1349 = vmatpush1.bf16.msra.mxu0 0
    %1350 = vmatprep.subr.bf16.mxu0 0
    %1351 = vmatpush1.bf16.msra.mxu0 0
    %1352 = vmatprep.subr.bf16.mxu0 0
    %1353 = vmatpush1.bf16.msra.mxu0 0
    %1354 = vmatprep.subr.bf16.mxu0 0
    %1355 = vmatpush1.bf16.msra.mxu0 0
    %1356 = vmatprep.subr.bf16.mxu0 0
    %1357 = vmatpush1.bf16.msra.mxu0 0
    %1358 = vmatprep.subr.bf16.mxu0 0
    %1359 = vmatpush1.bf16.msra.mxu0 0
    %1360 = vmatprep.subr.bf16.mxu0 0
    %1361 = vmatpush1.bf16.msra.mxu0 0
    %1362 = vmatprep.subr.bf16.mxu0 0
    %1363 = vmatpush1.bf16.msra.mxu0 0
    %1364 = vmatprep.mubr.bf16.mxu0 0
    %1365 = vmatmul.mubr.bf16.gmra.mrb[0].mxu0 %v1288
    %v1366 = vpop.f32.mrb[0].mxu0
    %v1367 = vadd.f32 %v577, %v1366
    %v1368 = vpop.f32.mrb[0].mxu0
    %v1369 = vpop.f32.mrb[0].mxu0
    %v1370 = vadd.f32 %v577, %v1369
    %v1371 = vpop.f32.mrb[0].mxu0
    %1372 = vdwg.mxu0
    %v1373 = vadd.f32 %v391, %v1324
    %v1374 = vadd.f32 %v395, %v1328
    %v1375 = vxor.u32 %v1373, 2147483648
    %v1376 = vxor.u32 %v1374, 2147483648
    %v1377 = vmul.f32 %v1375, 1.442695
    %v1378 = vpow.pop %v1377
    %v1379 = vmul.f32 %v1376, 1.442695
    %v1380 = vpow.pop %v1379
    %v1381 = vadd.f32 %v1378, 1.0
    %v1382 = vadd.f32 %v1380, 1.0
    %v1383 = vrcp.pop %v1381
    %v1384 = vmul.f32 1.0, %v1383
    %v1385 = vrcp.pop %v1382
    %v1386 = vmul.f32 1.0, %v1385
    %v1387 = vadd.f32 %v393, %v1326
    %v1388 = vadd.f32 %v397, %v1330
    %v1389 = vxor.u32 %v1387, 2147483648
    %v1390 = vxor.u32 %v1388, 2147483648
    %v1391 = vmul.f32 %v1389, 1.442695
    %v1392 = vpow.pop %v1391
    %v1393 = vmul.f32 %v1390, 1.442695
    %v1394 = vpow.pop %v1393
    %v1395 = vadd.f32 %v1392, 1.0
    %v1396 = vadd.f32 %v1394, 1.0
    %v1397 = vrcp.pop %v1395
    %v1398 = vmul.f32 1.0, %v1397
    %v1399 = vrcp.pop %v1396
    %v1400 = vmul.f32 1.0, %v1399
    %v1401 = vmul.f32 %v1384, %v1367
    %v1402 = vmul.f32 %v1386, %v1370
    %v1403 = vadd.f32 %v496, %v1401
    %v1404 = vadd.f32 %v499, %v1402
    %v1405 = vtanh.pop %v1403
    %v1406 = vtanh.pop %v1404
    %v1407 = vsub.f32 1.0, %v1398
    %v1408 = vsub.f32 1.0, %v1400
    %v1409 = vmul.f32 %v1407, %v1405
    %v1410 = vmul.f32 %v1408, %v1406
    %v1411 = vmul.f32 %v1398, %v1283
    %v1412 = vmul.f32 %v1400, %v1284
    %v1413 = vadd.f32 %v1409, %v1411
    %v1414 = vadd.f32 %v1410, %v1412
    %v1415 = vstv %s1287
    %vm1416 = vcmp.lt.s32.totalorder %v1415, %v559
    %vm1417 = vcmp.lt.s32.totalorder %v1415, %v560
    %v1418 = vsel %vm1416, 1, 0
    %v1419 = vsel %vm1417, 1, 0
    %1420 = vset.pattern.permute.xlu0 0
    %1421 = vperm.xlu0 %1420, %v1418
    %v1422 = vpop.permute.xlu0 %1421
    %1423 = vset.pattern.permute.xlu0 0
    %1424 = vperm.xlu0 %1423, %v1419
    %v1425 = vpop.permute.xlu0 %1424
    %vm1426 = vcmp.eq.s32.totalorder %v1422, 1
    %vm1427 = vcmp.eq.s32.totalorder %v1425, 1
    %v1428 = vsel %vm1426, %v1413, %v1283
    %v1429 = vsel %vm1427, %v1414, %v1284
    %v1430 = vsel %vm1426, %v1413, 0.0
    %v1431 = vsel %vm1427, %v1414, 0.0
    %s1432 = sadd.s32 %s563, 5
    %v1433 = vpack.c.bf16 %v1429, %v1428
    %1434 = vmatprep.subr.bf16.mxu0 %v662
    %1435 = vmatpush1.bf16.msra.mxu0 %v661
    %1436 = vmatprep.subr.bf16.mxu0 %v665
    %1437 = vmatpush1.bf16.msra.mxu0 %v664
    %1438 = vmatprep.subr.bf16.mxu0 %v668
    %1439 = vmatpush1.bf16.msra.mxu0 %v667
    %1440 = vmatprep.subr.bf16.mxu0 %v671
    %1441 = vmatpush1.bf16.msra.mxu0 %v670
    %1442 = vmatprep.subr.bf16.mxu0 %v674
    %1443 = vmatpush1.bf16.msra.mxu0 %v673
    %1444 = vmatprep.subr.bf16.mxu0 %v677
    %1445 = vmatpush1.bf16.msra.mxu0 %v676
    %1446 = vmatprep.subr.bf16.mxu0 %v680
    %1447 = vmatpush1.bf16.msra.mxu0 %v679
    %1448 = vmatprep.subr.bf16.mxu0 %v683
    %1449 = vmatpush1.bf16.msra.mxu0 %v682
    %1450 = vmatprep.subr.bf16.mxu0 0
    %1451 = vmatpush1.bf16.msra.mxu0 0
    %1452 = vmatprep.subr.bf16.mxu0 0
    %1453 = vmatpush1.bf16.msra.mxu0 0
    %1454 = vmatprep.subr.bf16.mxu0 0
    %1455 = vmatpush1.bf16.msra.mxu0 0
    %1456 = vmatprep.subr.bf16.mxu0 0
    %1457 = vmatpush1.bf16.msra.mxu0 0
    %1458 = vmatprep.subr.bf16.mxu0 0
    %1459 = vmatpush1.bf16.msra.mxu0 0
    %1460 = vmatprep.subr.bf16.mxu0 0
    %1461 = vmatpush1.bf16.msra.mxu0 0
    %1462 = vmatprep.subr.bf16.mxu0 0
    %1463 = vmatpush1.bf16.msra.mxu0 0
    %1464 = vmatprep.subr.bf16.mxu0 0
    %1465 = vmatpush1.bf16.msra.mxu0 0
    %1466 = vmatprep.mubr.bf16.mxu0 0
    %1467 = vmatmul.mubr.bf16.gmra.mrb[0].mxu0 %v1433
    %v1468 = vpop.f32.mrb[0].mxu0
    %v1469 = vadd.f32 %v569, %v1468
    %v1470 = vpop.f32.mrb[0].mxu0
    %v1471 = vadd.f32 %v573, %v1470
    %v1472 = vpop.f32.mrb[0].mxu0
    %v1473 = vadd.f32 %v569, %v1472
    %v1474 = vpop.f32.mrb[0].mxu0
    %v1475 = vadd.f32 %v573, %v1474
    %1476 = vdwg.mxu0
    %1477 = vmatprep.subr.bf16.mxu0 0
    %1478 = vmatpush1.bf16.msra.mxu0 %v663
    %1479 = vmatprep.subr.bf16.mxu0 0
    %1480 = vmatpush1.bf16.msra.mxu0 %v666
    %1481 = vmatprep.subr.bf16.mxu0 0
    %1482 = vmatpush1.bf16.msra.mxu0 %v669
    %1483 = vmatprep.subr.bf16.mxu0 0
    %1484 = vmatpush1.bf16.msra.mxu0 %v672
    %1485 = vmatprep.subr.bf16.mxu0 0
    %1486 = vmatpush1.bf16.msra.mxu0 %v675
    %1487 = vmatprep.subr.bf16.mxu0 0
    %1488 = vmatpush1.bf16.msra.mxu0 %v678
    %1489 = vmatprep.subr.bf16.mxu0 0
    %1490 = vmatpush1.bf16.msra.mxu0 %v681
    %1491 = vmatprep.subr.bf16.mxu0 0
    %1492 = vmatpush1.bf16.msra.mxu0 %v684
    %1493 = vmatprep.subr.bf16.mxu0 0
    %1494 = vmatpush1.bf16.msra.mxu0 0
    %1495 = vmatprep.subr.bf16.mxu0 0
    %1496 = vmatpush1.bf16.msra.mxu0 0
    %1497 = vmatprep.subr.bf16.mxu0 0
    %1498 = vmatpush1.bf16.msra.mxu0 0
    %1499 = vmatprep.subr.bf16.mxu0 0
    %1500 = vmatpush1.bf16.msra.mxu0 0
    %1501 = vmatprep.subr.bf16.mxu0 0
    %1502 = vmatpush1.bf16.msra.mxu0 0
    %1503 = vmatprep.subr.bf16.mxu0 0
    %1504 = vmatpush1.bf16.msra.mxu0 0
    %1505 = vmatprep.subr.bf16.mxu0 0
    %1506 = vmatpush1.bf16.msra.mxu0 0
    %1507 = vmatprep.subr.bf16.mxu0 0
    %1508 = vmatpush1.bf16.msra.mxu0 0
    %1509 = vmatprep.mubr.bf16.mxu0 0
    %1510 = vmatmul.mubr.bf16.gmra.mrb[0].mxu0 %v1433
    %v1511 = vpop.f32.mrb[0].mxu0
    %v1512 = vadd.f32 %v577, %v1511
    %v1513 = vpop.f32.mrb[0].mxu0
    %v1514 = vpop.f32.mrb[0].mxu0
    %v1515 = vadd.f32 %v577, %v1514
    %v1516 = vpop.f32.mrb[0].mxu0
    %1517 = vdwg.mxu0
    %v1518 = vadd.f32 %v401, %v1469
    %v1519 = vadd.f32 %v405, %v1473
    %v1520 = vxor.u32 %v1518, 2147483648
    %v1521 = vxor.u32 %v1519, 2147483648
    %v1522 = vmul.f32 %v1520, 1.442695
    %v1523 = vpow.pop %v1522
    %v1524 = vmul.f32 %v1521, 1.442695
    %v1525 = vpow.pop %v1524
    %v1526 = vadd.f32 %v1523, 1.0
    %v1527 = vadd.f32 %v1525, 1.0
    %v1528 = vrcp.pop %v1526
    %v1529 = vmul.f32 1.0, %v1528
    %v1530 = vrcp.pop %v1527
    %v1531 = vmul.f32 1.0, %v1530
    %v1532 = vadd.f32 %v403, %v1471
    %v1533 = vadd.f32 %v407, %v1475
    %v1534 = vxor.u32 %v1532, 2147483648
    %v1535 = vxor.u32 %v1533, 2147483648
    %v1536 = vmul.f32 %v1534, 1.442695
    %v1537 = vpow.pop %v1536
    %v1538 = vmul.f32 %v1535, 1.442695
    %v1539 = vpow.pop %v1538
    %v1540 = vadd.f32 %v1537, 1.0
    %v1541 = vadd.f32 %v1539, 1.0
    %v1542 = vrcp.pop %v1540
    %v1543 = vmul.f32 1.0, %v1542
    %v1544 = vrcp.pop %v1541
    %v1545 = vmul.f32 1.0, %v1544
    %v1546 = vmul.f32 %v1529, %v1512
    %v1547 = vmul.f32 %v1531, %v1515
    %v1548 = vadd.f32 %v504, %v1546
    %v1549 = vadd.f32 %v507, %v1547
    %v1550 = vtanh.pop %v1548
    %v1551 = vtanh.pop %v1549
    %v1552 = vsub.f32 1.0, %v1543
    %v1553 = vsub.f32 1.0, %v1545
    %v1554 = vmul.f32 %v1552, %v1550
    %v1555 = vmul.f32 %v1553, %v1551
    %v1556 = vmul.f32 %v1543, %v1428
    %v1557 = vmul.f32 %v1545, %v1429
    %v1558 = vadd.f32 %v1554, %v1556
    %v1559 = vadd.f32 %v1555, %v1557
    %v1560 = vstv %s1432
    %vm1561 = vcmp.lt.s32.totalorder %v1560, %v559
    %vm1562 = vcmp.lt.s32.totalorder %v1560, %v560
    %v1563 = vsel %vm1561, 1, 0
    %v1564 = vsel %vm1562, 1, 0
    %1565 = vset.pattern.permute.xlu0 0
    %1566 = vperm.xlu0 %1565, %v1563
    %v1567 = vpop.permute.xlu0 %1566
    %1568 = vset.pattern.permute.xlu0 0
    %1569 = vperm.xlu0 %1568, %v1564
    %v1570 = vpop.permute.xlu0 %1569
    %vm1571 = vcmp.eq.s32.totalorder %v1567, 1
    %vm1572 = vcmp.eq.s32.totalorder %v1570, 1
    %v1573 = vsel %vm1571, %v1558, %v1428
    %v1574 = vsel %vm1572, %v1559, %v1429
    %v1575 = vsel %vm1571, %v1558, 0.0
    %v1576 = vsel %vm1572, %v1559, 0.0
    %s1577 = sadd.s32 %s563, 6
    %v1578 = vpack.c.bf16 %v1574, %v1573
    %1579 = vmatprep.subr.bf16.mxu0 %v662
    %1580 = vmatpush1.bf16.msra.mxu0 %v661
    %1581 = vmatprep.subr.bf16.mxu0 %v665
    %1582 = vmatpush1.bf16.msra.mxu0 %v664
    %1583 = vmatprep.subr.bf16.mxu0 %v668
    %1584 = vmatpush1.bf16.msra.mxu0 %v667
    %1585 = vmatprep.subr.bf16.mxu0 %v671
    %1586 = vmatpush1.bf16.msra.mxu0 %v670
    %1587 = vmatprep.subr.bf16.mxu0 %v674
    %1588 = vmatpush1.bf16.msra.mxu0 %v673
    %1589 = vmatprep.subr.bf16.mxu0 %v677
    %1590 = vmatpush1.bf16.msra.mxu0 %v676
    %1591 = vmatprep.subr.bf16.mxu0 %v680
    %1592 = vmatpush1.bf16.msra.mxu0 %v679
    %1593 = vmatprep.subr.bf16.mxu0 %v683
    %1594 = vmatpush1.bf16.msra.mxu0 %v682
    %1595 = vmatprep.subr.bf16.mxu0 0
    %1596 = vmatpush1.bf16.msra.mxu0 0
    %1597 = vmatprep.subr.bf16.mxu0 0
    %1598 = vmatpush1.bf16.msra.mxu0 0
    %1599 = vmatprep.subr.bf16.mxu0 0
    %1600 = vmatpush1.bf16.msra.mxu0 0
    %1601 = vmatprep.subr.bf16.mxu0 0
    %1602 = vmatpush1.bf16.msra.mxu0 0
    %1603 = vmatprep.subr.bf16.mxu0 0
    %1604 = vmatpush1.bf16.msra.mxu0 0
    %1605 = vmatprep.subr.bf16.mxu0 0
    %1606 = vmatpush1.bf16.msra.mxu0 0
    %1607 = vmatprep.subr.bf16.mxu0 0
    %1608 = vmatpush1.bf16.msra.mxu0 0
    %1609 = vmatprep.subr.bf16.mxu0 0
    %1610 = vmatpush1.bf16.msra.mxu0 0
    %1611 = vmatprep.mubr.bf16.mxu0 0
    %1612 = vmatmul.mubr.bf16.gmra.mrb[0].mxu0 %v1578
    %v1613 = vpop.f32.mrb[0].mxu0
    %v1614 = vadd.f32 %v569, %v1613
    %v1615 = vpop.f32.mrb[0].mxu0
    %v1616 = vadd.f32 %v573, %v1615
    %v1617 = vpop.f32.mrb[0].mxu0
    %v1618 = vadd.f32 %v569, %v1617
    %v1619 = vpop.f32.mrb[0].mxu0
    %v1620 = vadd.f32 %v573, %v1619
    %1621 = vdwg.mxu0
    %1622 = vmatprep.subr.bf16.mxu0 0
    %1623 = vmatpush1.bf16.msra.mxu0 %v663
    %1624 = vmatprep.subr.bf16.mxu0 0
    %1625 = vmatpush1.bf16.msra.mxu0 %v666
    %1626 = vmatprep.subr.bf16.mxu0 0
    %1627 = vmatpush1.bf16.msra.mxu0 %v669
    %1628 = vmatprep.subr.bf16.mxu0 0
    %1629 = vmatpush1.bf16.msra.mxu0 %v672
    %1630 = vmatprep.subr.bf16.mxu0 0
    %1631 = vmatpush1.bf16.msra.mxu0 %v675
    %1632 = vmatprep.subr.bf16.mxu0 0
    %1633 = vmatpush1.bf16.msra.mxu0 %v678
    %1634 = vmatprep.subr.bf16.mxu0 0
    %1635 = vmatpush1.bf16.msra.mxu0 %v681
    %1636 = vmatprep.subr.bf16.mxu0 0
    %1637 = vmatpush1.bf16.msra.mxu0 %v684
    %1638 = vmatprep.subr.bf16.mxu0 0
    %1639 = vmatpush1.bf16.msra.mxu0 0
    %1640 = vmatprep.subr.bf16.mxu0 0
    %1641 = vmatpush1.bf16.msra.mxu0 0
    %1642 = vmatprep.subr.bf16.mxu0 0
    %1643 = vmatpush1.bf16.msra.mxu0 0
    %1644 = vmatprep.subr.bf16.mxu0 0
    %1645 = vmatpush1.bf16.msra.mxu0 0
    %1646 = vmatprep.subr.bf16.mxu0 0
    %1647 = vmatpush1.bf16.msra.mxu0 0
    %1648 = vmatprep.subr.bf16.mxu0 0
    %1649 = vmatpush1.bf16.msra.mxu0 0
    %1650 = vmatprep.subr.bf16.mxu0 0
    %1651 = vmatpush1.bf16.msra.mxu0 0
    %1652 = vmatprep.subr.bf16.mxu0 0
    %1653 = vmatpush1.bf16.msra.mxu0 0
    %1654 = vmatprep.mubr.bf16.mxu0 0
    %1655 = vmatmul.mubr.bf16.gmra.mrb[0].mxu0 %v1578
    %v1656 = vpop.f32.mrb[0].mxu0
    %v1657 = vadd.f32 %v577, %v1656
    %v1658 = vpop.f32.mrb[0].mxu0
    %v1659 = vpop.f32.mrb[0].mxu0
    %v1660 = vadd.f32 %v577, %v1659
    %v1661 = vpop.f32.mrb[0].mxu0
    %1662 = vdwg.mxu0
    %v1663 = vadd.f32 %v411, %v1614
    %v1664 = vadd.f32 %v415, %v1618
    %v1665 = vxor.u32 %v1663, 2147483648
    %v1666 = vxor.u32 %v1664, 2147483648
    %v1667 = vmul.f32 %v1665, 1.442695
    %v1668 = vpow.pop %v1667
    %v1669 = vmul.f32 %v1666, 1.442695
    %v1670 = vpow.pop %v1669
    %v1671 = vadd.f32 %v1668, 1.0
    %v1672 = vadd.f32 %v1670, 1.0
    %v1673 = vrcp.pop %v1671
    %v1674 = vmul.f32 1.0, %v1673
    %v1675 = vrcp.pop %v1672
    %v1676 = vmul.f32 1.0, %v1675
    %v1677 = vadd.f32 %v413, %v1616
    %v1678 = vadd.f32 %v417, %v1620
    %v1679 = vxor.u32 %v1677, 2147483648
    %v1680 = vxor.u32 %v1678, 2147483648
    %v1681 = vmul.f32 %v1679, 1.442695
    %v1682 = vpow.pop %v1681
    %v1683 = vmul.f32 %v1680, 1.442695
    %v1684 = vpow.pop %v1683
    %v1685 = vadd.f32 %v1682, 1.0
    %v1686 = vadd.f32 %v1684, 1.0
    %v1687 = vrcp.pop %v1685
    %v1688 = vmul.f32 1.0, %v1687
    %v1689 = vrcp.pop %v1686
    %v1690 = vmul.f32 1.0, %v1689
    %v1691 = vmul.f32 %v1674, %v1657
    %v1692 = vmul.f32 %v1676, %v1660
    %v1693 = vadd.f32 %v512, %v1691
    %v1694 = vadd.f32 %v515, %v1692
    %v1695 = vtanh.pop %v1693
    %v1696 = vtanh.pop %v1694
    %v1697 = vsub.f32 1.0, %v1688
    %v1698 = vsub.f32 1.0, %v1690
    %v1699 = vmul.f32 %v1697, %v1695
    %v1700 = vmul.f32 %v1698, %v1696
    %v1701 = vmul.f32 %v1688, %v1573
    %v1702 = vmul.f32 %v1690, %v1574
    %v1703 = vadd.f32 %v1699, %v1701
    %v1704 = vadd.f32 %v1700, %v1702
    %v1705 = vstv %s1577
    %vm1706 = vcmp.lt.s32.totalorder %v1705, %v559
    %vm1707 = vcmp.lt.s32.totalorder %v1705, %v560
    %v1708 = vsel %vm1706, 1, 0
    %v1709 = vsel %vm1707, 1, 0
    %1710 = vset.pattern.permute.xlu0 0
    %1711 = vperm.xlu0 %1710, %v1708
    %v1712 = vpop.permute.xlu0 %1711
    %1713 = vset.pattern.permute.xlu0 0
    %1714 = vperm.xlu0 %1713, %v1709
    %v1715 = vpop.permute.xlu0 %1714
    %vm1716 = vcmp.eq.s32.totalorder %v1712, 1
    %vm1717 = vcmp.eq.s32.totalorder %v1715, 1
    %v1718 = vsel %vm1716, %v1703, %v1573
    %v1719 = vsel %vm1717, %v1704, %v1574
    %v1720 = vsel %vm1716, %v1703, 0.0
    %v1721 = vsel %vm1717, %v1704, 0.0
    %s1722 = sadd.s32 %s563, 7
    %v1723 = vpack.c.bf16 %v1719, %v1718
    %1724 = vmatprep.subr.bf16.mxu0 %v662
    %1725 = vmatpush1.bf16.msra.mxu0 %v661
    %1726 = vmatprep.subr.bf16.mxu0 %v665
    %1727 = vmatpush1.bf16.msra.mxu0 %v664
    %1728 = vmatprep.subr.bf16.mxu0 %v668
    %1729 = vmatpush1.bf16.msra.mxu0 %v667
    %1730 = vmatprep.subr.bf16.mxu0 %v671
    %1731 = vmatpush1.bf16.msra.mxu0 %v670
    %1732 = vmatprep.subr.bf16.mxu0 %v674
    %1733 = vmatpush1.bf16.msra.mxu0 %v673
    %1734 = vmatprep.subr.bf16.mxu0 %v677
    %1735 = vmatpush1.bf16.msra.mxu0 %v676
    %1736 = vmatprep.subr.bf16.mxu0 %v680
    %1737 = vmatpush1.bf16.msra.mxu0 %v679
    %1738 = vmatprep.subr.bf16.mxu0 %v683
    %1739 = vmatpush1.bf16.msra.mxu0 %v682
    %1740 = vmatprep.subr.bf16.mxu0 0
    %1741 = vmatpush1.bf16.msra.mxu0 0
    %1742 = vmatprep.subr.bf16.mxu0 0
    %1743 = vmatpush1.bf16.msra.mxu0 0
    %1744 = vmatprep.subr.bf16.mxu0 0
    %1745 = vmatpush1.bf16.msra.mxu0 0
    %1746 = vmatprep.subr.bf16.mxu0 0
    %1747 = vmatpush1.bf16.msra.mxu0 0
    %1748 = vmatprep.subr.bf16.mxu0 0
    %1749 = vmatpush1.bf16.msra.mxu0 0
    %1750 = vmatprep.subr.bf16.mxu0 0
    %1751 = vmatpush1.bf16.msra.mxu0 0
    %1752 = vmatprep.subr.bf16.mxu0 0
    %1753 = vmatpush1.bf16.msra.mxu0 0
    %1754 = vmatprep.subr.bf16.mxu0 0
    %1755 = vmatpush1.bf16.msra.mxu0 0
    %1756 = vmatprep.mubr.bf16.mxu0 0
    %1757 = vmatmul.mubr.bf16.gmra.mrb[0].mxu0 %v1723
    %v1758 = vpop.f32.mrb[0].mxu0
    %v1759 = vadd.f32 %v569, %v1758
    %v1760 = vpop.f32.mrb[0].mxu0
    %v1761 = vadd.f32 %v573, %v1760
    %v1762 = vpop.f32.mrb[0].mxu0
    %v1763 = vadd.f32 %v569, %v1762
    %v1764 = vpop.f32.mrb[0].mxu0
    %v1765 = vadd.f32 %v573, %v1764
    %1766 = vdwg.mxu0
    %1767 = vmatprep.subr.bf16.mxu0 0
    %1768 = vmatpush1.bf16.msra.mxu0 %v663
    %1769 = vmatprep.subr.bf16.mxu0 0
    %1770 = vmatpush1.bf16.msra.mxu0 %v666
    %1771 = vmatprep.subr.bf16.mxu0 0
    %1772 = vmatpush1.bf16.msra.mxu0 %v669
    %1773 = vmatprep.subr.bf16.mxu0 0
    %1774 = vmatpush1.bf16.msra.mxu0 %v672
    %1775 = vmatprep.subr.bf16.mxu0 0
    %1776 = vmatpush1.bf16.msra.mxu0 %v675
    %1777 = vmatprep.subr.bf16.mxu0 0
    %1778 = vmatpush1.bf16.msra.mxu0 %v678
    %1779 = vmatprep.subr.bf16.mxu0 0
    %1780 = vmatpush1.bf16.msra.mxu0 %v681
    %1781 = vmatprep.subr.bf16.mxu0 0
    %1782 = vmatpush1.bf16.msra.mxu0 %v684
    %1783 = vmatprep.subr.bf16.mxu0 0
    %1784 = vmatpush1.bf16.msra.mxu0 0
    %1785 = vmatprep.subr.bf16.mxu0 0
    %1786 = vmatpush1.bf16.msra.mxu0 0
    %1787 = vmatprep.subr.bf16.mxu0 0
    %1788 = vmatpush1.bf16.msra.mxu0 0
    %1789 = vmatprep.subr.bf16.mxu0 0
    %1790 = vmatpush1.bf16.msra.mxu0 0
    %1791 = vmatprep.subr.bf16.mxu0 0
    %1792 = vmatpush1.bf16.msra.mxu0 0
    %1793 = vmatprep.subr.bf16.mxu0 0
    %1794 = vmatpush1.bf16.msra.mxu0 0
    %1795 = vmatprep.subr.bf16.mxu0 0
    %1796 = vmatpush1.bf16.msra.mxu0 0
    %1797 = vmatprep.subr.bf16.mxu0 0
    %1798 = vmatpush1.bf16.msra.mxu0 0
    %1799 = vmatprep.mubr.bf16.mxu0 0
    %1800 = vmatmul.mubr.bf16.gmra.mrb[0].mxu0 %v1723
    %v1801 = vpop.f32.mrb[0].mxu0
    %v1802 = vadd.f32 %v577, %v1801
    %v1803 = vpop.f32.mrb[0].mxu0
    %v1804 = vpop.f32.mrb[0].mxu0
    %v1805 = vadd.f32 %v577, %v1804
    %v1806 = vpop.f32.mrb[0].mxu0
    %1807 = vdwg.mxu0
    %v1808 = vadd.f32 %v421, %v1759
    %v1809 = vadd.f32 %v425, %v1763
    %v1810 = vxor.u32 %v1808, 2147483648
    %v1811 = vxor.u32 %v1809, 2147483648
    %v1812 = vmul.f32 %v1810, 1.442695
    %v1813 = vpow.pop %v1812
    %v1814 = vmul.f32 %v1811, 1.442695
    %v1815 = vpow.pop %v1814
    %v1816 = vadd.f32 %v1813, 1.0
    %v1817 = vadd.f32 %v1815, 1.0
    %v1818 = vrcp.pop %v1816
    %v1819 = vmul.f32 1.0, %v1818
    %v1820 = vrcp.pop %v1817
    %v1821 = vmul.f32 1.0, %v1820
    %v1822 = vadd.f32 %v423, %v1761
    %v1823 = vadd.f32 %v427, %v1765
    %v1824 = vxor.u32 %v1822, 2147483648
    %v1825 = vxor.u32 %v1823, 2147483648
    %v1826 = vmul.f32 %v1824, 1.442695
    %v1827 = vpow.pop %v1826
    %v1828 = vmul.f32 %v1825, 1.442695
    %v1829 = vpow.pop %v1828
    %v1830 = vadd.f32 %v1827, 1.0
    %v1831 = vadd.f32 %v1829, 1.0
    %v1832 = vrcp.pop %v1830
    %v1833 = vmul.f32 1.0, %v1832
    %v1834 = vrcp.pop %v1831
    %v1835 = vmul.f32 1.0, %v1834
    %v1836 = vmul.f32 %v1819, %v1802
    %v1837 = vmul.f32 %v1821, %v1805
    %v1838 = vadd.f32 %v520, %v1836
    %v1839 = vadd.f32 %v523, %v1837
    %v1840 = vtanh.pop %v1838
    %v1841 = vtanh.pop %v1839
    %v1842 = vsub.f32 1.0, %v1833
    %v1843 = vsub.f32 1.0, %v1835
    %v1844 = vmul.f32 %v1842, %v1840
    %v1845 = vmul.f32 %v1843, %v1841
    %v1846 = vmul.f32 %v1833, %v1718
    %v1847 = vmul.f32 %v1835, %v1719
    %v1848 = vadd.f32 %v1844, %v1846
    %v1849 = vadd.f32 %v1845, %v1847
    %v1850 = vstv %s1722
    %vm1851 = vcmp.lt.s32.totalorder %v1850, %v559
    %vm1852 = vcmp.lt.s32.totalorder %v1850, %v560
    %v1853 = vsel %vm1851, 1, 0
    %v1854 = vsel %vm1852, 1, 0
    %1855 = vset.pattern.permute.xlu0 0
    %1856 = vperm.xlu0 %1855, %v1853
    %v1857 = vpop.permute.xlu0 %1856
    %1858 = vset.pattern.permute.xlu0 0
    %1859 = vperm.xlu0 %1858, %v1854
    %v1860 = vpop.permute.xlu0 %1859
    %vm1861 = vcmp.eq.s32.totalorder %v1857, 1
    %vm1862 = vcmp.eq.s32.totalorder %v1860, 1
    %v1863 = vsel %vm1861, %v1848, %v1718
    %v1864 = vsel %vm1862, %v1849, %v1719
    %v1865 = vsel %vm1861, %v1848, 0.0
    %v1866 = vsel %vm1862, %v1849, 0.0
    %v1869 = vcombine.high %v850, %v850
    %v1871 = vunpack.c.l.s4 1966171168
    %v1872 = vunpack.c.0.s8 %v1871
    %v1873 = vlaneseq
    %v1874 = vshrl.u32 %v1873, 7
    %v1875 = vsub.s32 %v1872, %v1874
    %v1876 = vrot.slane %v850, %v1875
    %v1878 = vunpack.c.l.s4 1966171168
    %v1879 = vunpack.c.0.s8 %v1878
    %v1880 = vlaneseq
    %v1881 = vshrl.u32 %v1880, 7
    %v1882 = vsub.s32 %v1879, %v1881
    %v1883 = vrot.slane %v1869, %v1882
    %v1884 = vcombine.high %v1876, %v1876
    %v1885 = vcombine.high %v1883, %v1883
    %v1887 = vunpack.c.l.s4 1966171168
    %v1888 = vunpack.c.0.s8 %v1887
    %v1889 = vlaneseq
    %v1890 = vshrl.u32 %v1889, 7
    %v1891 = vsub.s32 %v1888, %v1890
    %v1892 = vrot.slane %v1876, %v1891
    %v1894 = vunpack.c.l.s4 1966171168
    %v1895 = vunpack.c.0.s8 %v1894
    %v1896 = vlaneseq
    %v1897 = vshrl.u32 %v1896, 7
    %v1898 = vsub.s32 %v1895, %v1897
    %v1899 = vrot.slane %v1883, %v1898
    %v1901 = vunpack.c.l.s4 1966171168
    %v1902 = vunpack.c.0.s8 %v1901
    %v1903 = vlaneseq
    %v1904 = vshrl.u32 %v1903, 7
    %v1905 = vsub.s32 %v1902, %v1904
    %v1906 = vrot.slane %v1884, %v1905
    %v1908 = vunpack.c.l.s4 1966171168
    %v1909 = vunpack.c.0.s8 %v1908
    %v1910 = vlaneseq
    %v1911 = vshrl.u32 %v1910, 7
    %v1912 = vsub.s32 %v1909, %v1911
    %v1913 = vrot.slane %v1885, %v1912
    %v1914 = vcombine.high %v1892, %v1892
    %v1915 = vcombine.high %v1899, %v1899
    %v1916 = vcombine.high %v1906, %v1906
    %v1917 = vcombine.high %v1913, %v1913
    %v1918 = vcombine.high %v851, %v851
    %v1920 = vunpack.c.l.s4 1966171168
    %v1921 = vunpack.c.0.s8 %v1920
    %v1922 = vlaneseq
    %v1923 = vshrl.u32 %v1922, 7
    %v1924 = vsub.s32 %v1921, %v1923
    %v1925 = vrot.slane %v851, %v1924
    %v1927 = vunpack.c.l.s4 1966171168
    %v1928 = vunpack.c.0.s8 %v1927
    %v1929 = vlaneseq
    %v1930 = vshrl.u32 %v1929, 7
    %v1931 = vsub.s32 %v1928, %v1930
    %v1932 = vrot.slane %v1918, %v1931
    %v1933 = vcombine.high %v1925, %v1925
    %v1934 = vcombine.high %v1932, %v1932
    %v1936 = vunpack.c.l.s4 1966171168
    %v1937 = vunpack.c.0.s8 %v1936
    %v1938 = vlaneseq
    %v1939 = vshrl.u32 %v1938, 7
    %v1940 = vsub.s32 %v1937, %v1939
    %v1941 = vrot.slane %v1925, %v1940
    %v1943 = vunpack.c.l.s4 1966171168
    %v1944 = vunpack.c.0.s8 %v1943
    %v1945 = vlaneseq
    %v1946 = vshrl.u32 %v1945, 7
    %v1947 = vsub.s32 %v1944, %v1946
    %v1948 = vrot.slane %v1932, %v1947
    %v1950 = vunpack.c.l.s4 1966171168
    %v1951 = vunpack.c.0.s8 %v1950
    %v1952 = vlaneseq
    %v1953 = vshrl.u32 %v1952, 7
    %v1954 = vsub.s32 %v1951, %v1953
    %v1955 = vrot.slane %v1933, %v1954
    %v1957 = vunpack.c.l.s4 1966171168
    %v1958 = vunpack.c.0.s8 %v1957
    %v1959 = vlaneseq
    %v1960 = vshrl.u32 %v1959, 7
    %v1961 = vsub.s32 %v1958, %v1960
    %v1962 = vrot.slane %v1934, %v1961
    %v1963 = vcombine.high %v1941, %v1941
    %v1964 = vcombine.high %v1948, %v1948
    %v1965 = vcombine.high %v1955, %v1955
    %v1966 = vcombine.high %v1962, %v1962
    %v1985 = vcombine.high %v995, %v995
    %v1987 = vunpack.c.l.s4 1966171168
    %v1988 = vunpack.c.0.s8 %v1987
    %v1989 = vlaneseq
    %v1990 = vshrl.u32 %v1989, 7
    %v1991 = vsub.s32 %v1988, %v1990
    %v1992 = vrot.slane %v995, %v1991
    %v1994 = vunpack.c.l.s4 1966171168
    %v1995 = vunpack.c.0.s8 %v1994
    %v1996 = vlaneseq
    %v1997 = vshrl.u32 %v1996, 7
    %v1998 = vsub.s32 %v1995, %v1997
    %v1999 = vrot.slane %v1985, %v1998
    %v2000 = vcombine.high %v1992, %v1992
    %v2001 = vcombine.high %v1999, %v1999
    %v2003 = vunpack.c.l.s4 1966171168
    %v2004 = vunpack.c.0.s8 %v2003
    %v2005 = vlaneseq
    %v2006 = vshrl.u32 %v2005, 7
    %v2007 = vsub.s32 %v2004, %v2006
    %v2008 = vrot.slane %v1992, %v2007
    %v2010 = vunpack.c.l.s4 1966171168
    %v2011 = vunpack.c.0.s8 %v2010
    %v2012 = vlaneseq
    %v2013 = vshrl.u32 %v2012, 7
    %v2014 = vsub.s32 %v2011, %v2013
    %v2015 = vrot.slane %v1999, %v2014
    %v2017 = vunpack.c.l.s4 1966171168
    %v2018 = vunpack.c.0.s8 %v2017
    %v2019 = vlaneseq
    %v2020 = vshrl.u32 %v2019, 7
    %v2021 = vsub.s32 %v2018, %v2020
    %v2022 = vrot.slane %v2000, %v2021
    %v2024 = vunpack.c.l.s4 1966171168
    %v2025 = vunpack.c.0.s8 %v2024
    %v2026 = vlaneseq
    %v2027 = vshrl.u32 %v2026, 7
    %v2028 = vsub.s32 %v2025, %v2027
    %v2029 = vrot.slane %v2001, %v2028
    %v2030 = vcombine.high %v2008, %v2008
    %v2031 = vcombine.high %v2015, %v2015
    %v2032 = vcombine.high %v2022, %v2022
    %v2033 = vcombine.high %v2029, %v2029
    %v2034 = vcombine.high %v996, %v996
    %v2036 = vunpack.c.l.s4 1966171168
    %v2037 = vunpack.c.0.s8 %v2036
    %v2038 = vlaneseq
    %v2039 = vshrl.u32 %v2038, 7
    %v2040 = vsub.s32 %v2037, %v2039
    %v2041 = vrot.slane %v996, %v2040
    %v2043 = vunpack.c.l.s4 1966171168
    %v2044 = vunpack.c.0.s8 %v2043
    %v2045 = vlaneseq
    %v2046 = vshrl.u32 %v2045, 7
    %v2047 = vsub.s32 %v2044, %v2046
    %v2048 = vrot.slane %v2034, %v2047
    %v2049 = vcombine.high %v2041, %v2041
    %v2050 = vcombine.high %v2048, %v2048
    %v2052 = vunpack.c.l.s4 1966171168
    %v2053 = vunpack.c.0.s8 %v2052
    %v2054 = vlaneseq
    %v2055 = vshrl.u32 %v2054, 7
    %v2056 = vsub.s32 %v2053, %v2055
    %v2057 = vrot.slane %v2041, %v2056
    %v2059 = vunpack.c.l.s4 1966171168
    %v2060 = vunpack.c.0.s8 %v2059
    %v2061 = vlaneseq
    %v2062 = vshrl.u32 %v2061, 7
    %v2063 = vsub.s32 %v2060, %v2062
    %v2064 = vrot.slane %v2048, %v2063
    %v2066 = vunpack.c.l.s4 1966171168
    %v2067 = vunpack.c.0.s8 %v2066
    %v2068 = vlaneseq
    %v2069 = vshrl.u32 %v2068, 7
    %v2070 = vsub.s32 %v2067, %v2069
    %v2071 = vrot.slane %v2049, %v2070
    %v2073 = vunpack.c.l.s4 1966171168
    %v2074 = vunpack.c.0.s8 %v2073
    %v2075 = vlaneseq
    %v2076 = vshrl.u32 %v2075, 7
    %v2077 = vsub.s32 %v2074, %v2076
    %v2078 = vrot.slane %v2050, %v2077
    %v2079 = vcombine.high %v2057, %v2057
    %v2080 = vcombine.high %v2064, %v2064
    %v2081 = vcombine.high %v2071, %v2071
    %v2082 = vcombine.high %v2078, %v2078
    %v2085 = vcombine.high %v1140, %v1140
    %v2087 = vunpack.c.l.s4 1966171168
    %v2088 = vunpack.c.0.s8 %v2087
    %v2089 = vlaneseq
    %v2090 = vshrl.u32 %v2089, 7
    %v2091 = vsub.s32 %v2088, %v2090
    %v2092 = vrot.slane %v1140, %v2091
    %v2094 = vunpack.c.l.s4 1966171168
    %v2095 = vunpack.c.0.s8 %v2094
    %v2096 = vlaneseq
    %v2097 = vshrl.u32 %v2096, 7
    %v2098 = vsub.s32 %v2095, %v2097
    %v2099 = vrot.slane %v2085, %v2098
    %v2100 = vcombine.high %v2092, %v2092
    %v2101 = vcombine.high %v2099, %v2099
    %v2103 = vunpack.c.l.s4 1966171168
    %v2104 = vunpack.c.0.s8 %v2103
    %v2105 = vlaneseq
    %v2106 = vshrl.u32 %v2105, 7
    %v2107 = vsub.s32 %v2104, %v2106
    %v2108 = vrot.slane %v2092, %v2107
    %v2110 = vunpack.c.l.s4 1966171168
    %v2111 = vunpack.c.0.s8 %v2110
    %v2112 = vlaneseq
    %v2113 = vshrl.u32 %v2112, 7
    %v2114 = vsub.s32 %v2111, %v2113
    %v2115 = vrot.slane %v2099, %v2114
    %v2117 = vunpack.c.l.s4 1966171168
    %v2118 = vunpack.c.0.s8 %v2117
    %v2119 = vlaneseq
    %v2120 = vshrl.u32 %v2119, 7
    %v2121 = vsub.s32 %v2118, %v2120
    %v2122 = vrot.slane %v2100, %v2121
    %v2124 = vunpack.c.l.s4 1966171168
    %v2125 = vunpack.c.0.s8 %v2124
    %v2126 = vlaneseq
    %v2127 = vshrl.u32 %v2126, 7
    %v2128 = vsub.s32 %v2125, %v2127
    %v2129 = vrot.slane %v2101, %v2128
    %v2130 = vcombine.high %v2108, %v2108
    %v2131 = vcombine.high %v2115, %v2115
    %v2132 = vcombine.high %v2122, %v2122
    %v2133 = vcombine.high %v2129, %v2129
    %v2134 = vcombine.high %v1141, %v1141
    %v2136 = vunpack.c.l.s4 1966171168
    %v2137 = vunpack.c.0.s8 %v2136
    %v2138 = vlaneseq
    %v2139 = vshrl.u32 %v2138, 7
    %v2140 = vsub.s32 %v2137, %v2139
    %v2141 = vrot.slane %v1141, %v2140
    %v2143 = vunpack.c.l.s4 1966171168
    %v2144 = vunpack.c.0.s8 %v2143
    %v2145 = vlaneseq
    %v2146 = vshrl.u32 %v2145, 7
    %v2147 = vsub.s32 %v2144, %v2146
    %v2148 = vrot.slane %v2134, %v2147
    %v2149 = vcombine.high %v2141, %v2141
    %v2150 = vcombine.high %v2148, %v2148
    %v2152 = vunpack.c.l.s4 1966171168
    %v2153 = vunpack.c.0.s8 %v2152
    %v2154 = vlaneseq
    %v2155 = vshrl.u32 %v2154, 7
    %v2156 = vsub.s32 %v2153, %v2155
    %v2157 = vrot.slane %v2141, %v2156
    %v2159 = vunpack.c.l.s4 1966171168
    %v2160 = vunpack.c.0.s8 %v2159
    %v2161 = vlaneseq
    %v2162 = vshrl.u32 %v2161, 7
    %v2163 = vsub.s32 %v2160, %v2162
    %v2164 = vrot.slane %v2148, %v2163
    %v2166 = vunpack.c.l.s4 1966171168
    %v2167 = vunpack.c.0.s8 %v2166
    %v2168 = vlaneseq
    %v2169 = vshrl.u32 %v2168, 7
    %v2170 = vsub.s32 %v2167, %v2169
    %v2171 = vrot.slane %v2149, %v2170
    %v2173 = vunpack.c.l.s4 1966171168
    %v2174 = vunpack.c.0.s8 %v2173
    %v2175 = vlaneseq
    %v2176 = vshrl.u32 %v2175, 7
    %v2177 = vsub.s32 %v2174, %v2176
    %v2178 = vrot.slane %v2150, %v2177
    %v2179 = vcombine.high %v2157, %v2157
    %v2180 = vcombine.high %v2164, %v2164
    %v2181 = vcombine.high %v2171, %v2171
    %v2182 = vcombine.high %v2178, %v2178
    %v2185 = vcombine.high %v1285, %v1285
    %v2187 = vunpack.c.l.s4 1966171168
    %v2188 = vunpack.c.0.s8 %v2187
    %v2189 = vlaneseq
    %v2190 = vshrl.u32 %v2189, 7
    %v2191 = vsub.s32 %v2188, %v2190
    %v2192 = vrot.slane %v1285, %v2191
    %v2194 = vunpack.c.l.s4 1966171168
    %v2195 = vunpack.c.0.s8 %v2194
    %v2196 = vlaneseq
    %v2197 = vshrl.u32 %v2196, 7
    %v2198 = vsub.s32 %v2195, %v2197
    %v2199 = vrot.slane %v2185, %v2198
    %v2200 = vcombine.high %v2192, %v2192
    %v2201 = vcombine.high %v2199, %v2199
    %v2203 = vunpack.c.l.s4 1966171168
    %v2204 = vunpack.c.0.s8 %v2203
    %v2205 = vlaneseq
    %v2206 = vshrl.u32 %v2205, 7
    %v2207 = vsub.s32 %v2204, %v2206
    %v2208 = vrot.slane %v2192, %v2207
    %v2210 = vunpack.c.l.s4 1966171168
    %v2211 = vunpack.c.0.s8 %v2210
    %v2212 = vlaneseq
    %v2213 = vshrl.u32 %v2212, 7
    %v2214 = vsub.s32 %v2211, %v2213
    %v2215 = vrot.slane %v2199, %v2214
    %v2217 = vunpack.c.l.s4 1966171168
    %v2218 = vunpack.c.0.s8 %v2217
    %v2219 = vlaneseq
    %v2220 = vshrl.u32 %v2219, 7
    %v2221 = vsub.s32 %v2218, %v2220
    %v2222 = vrot.slane %v2200, %v2221
    %v2224 = vunpack.c.l.s4 1966171168
    %v2225 = vunpack.c.0.s8 %v2224
    %v2226 = vlaneseq
    %v2227 = vshrl.u32 %v2226, 7
    %v2228 = vsub.s32 %v2225, %v2227
    %v2229 = vrot.slane %v2201, %v2228
    %v2230 = vcombine.high %v2208, %v2208
    %v2231 = vcombine.high %v2215, %v2215
    %v2232 = vcombine.high %v2222, %v2222
    %v2233 = vcombine.high %v2229, %v2229
    %v2234 = vcombine.high %v1286, %v1286
    %v2236 = vunpack.c.l.s4 1966171168
    %v2237 = vunpack.c.0.s8 %v2236
    %v2238 = vlaneseq
    %v2239 = vshrl.u32 %v2238, 7
    %v2240 = vsub.s32 %v2237, %v2239
    %v2241 = vrot.slane %v1286, %v2240
    %v2243 = vunpack.c.l.s4 1966171168
    %v2244 = vunpack.c.0.s8 %v2243
    %v2245 = vlaneseq
    %v2246 = vshrl.u32 %v2245, 7
    %v2247 = vsub.s32 %v2244, %v2246
    %v2248 = vrot.slane %v2234, %v2247
    %v2249 = vcombine.high %v2241, %v2241
    %v2250 = vcombine.high %v2248, %v2248
    %v2252 = vunpack.c.l.s4 1966171168
    %v2253 = vunpack.c.0.s8 %v2252
    %v2254 = vlaneseq
    %v2255 = vshrl.u32 %v2254, 7
    %v2256 = vsub.s32 %v2253, %v2255
    %v2257 = vrot.slane %v2241, %v2256
    %v2259 = vunpack.c.l.s4 1966171168
    %v2260 = vunpack.c.0.s8 %v2259
    %v2261 = vlaneseq
    %v2262 = vshrl.u32 %v2261, 7
    %v2263 = vsub.s32 %v2260, %v2262
    %v2264 = vrot.slane %v2248, %v2263
    %v2266 = vunpack.c.l.s4 1966171168
    %v2267 = vunpack.c.0.s8 %v2266
    %v2268 = vlaneseq
    %v2269 = vshrl.u32 %v2268, 7
    %v2270 = vsub.s32 %v2267, %v2269
    %v2271 = vrot.slane %v2249, %v2270
    %v2273 = vunpack.c.l.s4 1966171168
    %v2274 = vunpack.c.0.s8 %v2273
    %v2275 = vlaneseq
    %v2276 = vshrl.u32 %v2275, 7
    %v2277 = vsub.s32 %v2274, %v2276
    %v2278 = vrot.slane %v2250, %v2277
    %v2279 = vcombine.high %v2257, %v2257
    %v2280 = vcombine.high %v2264, %v2264
    %v2281 = vcombine.high %v2271, %v2271
    %v2282 = vcombine.high %v2278, %v2278
    %v2285 = vcombine.high %v1430, %v1430
    %v2287 = vunpack.c.l.s4 1966171168
    %v2288 = vunpack.c.0.s8 %v2287
    %v2289 = vlaneseq
    %v2290 = vshrl.u32 %v2289, 7
    %v2291 = vsub.s32 %v2288, %v2290
    %v2292 = vrot.slane %v1430, %v2291
    %v2294 = vunpack.c.l.s4 1966171168
    %v2295 = vunpack.c.0.s8 %v2294
    %v2296 = vlaneseq
    %v2297 = vshrl.u32 %v2296, 7
    %v2298 = vsub.s32 %v2295, %v2297
    %v2299 = vrot.slane %v2285, %v2298
    %v2300 = vcombine.high %v2292, %v2292
    %v2301 = vcombine.high %v2299, %v2299
    %v2303 = vunpack.c.l.s4 1966171168
    %v2304 = vunpack.c.0.s8 %v2303
    %v2305 = vlaneseq
    %v2306 = vshrl.u32 %v2305, 7
    %v2307 = vsub.s32 %v2304, %v2306
    %v2308 = vrot.slane %v2292, %v2307
    %v2310 = vunpack.c.l.s4 1966171168
    %v2311 = vunpack.c.0.s8 %v2310
    %v2312 = vlaneseq
    %v2313 = vshrl.u32 %v2312, 7
    %v2314 = vsub.s32 %v2311, %v2313
    %v2315 = vrot.slane %v2299, %v2314
    %v2317 = vunpack.c.l.s4 1966171168
    %v2318 = vunpack.c.0.s8 %v2317
    %v2319 = vlaneseq
    %v2320 = vshrl.u32 %v2319, 7
    %v2321 = vsub.s32 %v2318, %v2320
    %v2322 = vrot.slane %v2300, %v2321
    %v2324 = vunpack.c.l.s4 1966171168
    %v2325 = vunpack.c.0.s8 %v2324
    %v2326 = vlaneseq
    %v2327 = vshrl.u32 %v2326, 7
    %v2328 = vsub.s32 %v2325, %v2327
    %v2329 = vrot.slane %v2301, %v2328
    %v2330 = vcombine.high %v2308, %v2308
    %v2331 = vcombine.high %v2315, %v2315
    %v2332 = vcombine.high %v2322, %v2322
    %v2333 = vcombine.high %v2329, %v2329
    %v2334 = vcombine.high %v1431, %v1431
    %v2336 = vunpack.c.l.s4 1966171168
    %v2337 = vunpack.c.0.s8 %v2336
    %v2338 = vlaneseq
    %v2339 = vshrl.u32 %v2338, 7
    %v2340 = vsub.s32 %v2337, %v2339
    %v2341 = vrot.slane %v1431, %v2340
    %v2343 = vunpack.c.l.s4 1966171168
    %v2344 = vunpack.c.0.s8 %v2343
    %v2345 = vlaneseq
    %v2346 = vshrl.u32 %v2345, 7
    %v2347 = vsub.s32 %v2344, %v2346
    %v2348 = vrot.slane %v2334, %v2347
    %v2349 = vcombine.high %v2341, %v2341
    %v2350 = vcombine.high %v2348, %v2348
    %v2352 = vunpack.c.l.s4 1966171168
    %v2353 = vunpack.c.0.s8 %v2352
    %v2354 = vlaneseq
    %v2355 = vshrl.u32 %v2354, 7
    %v2356 = vsub.s32 %v2353, %v2355
    %v2357 = vrot.slane %v2341, %v2356
    %v2359 = vunpack.c.l.s4 1966171168
    %v2360 = vunpack.c.0.s8 %v2359
    %v2361 = vlaneseq
    %v2362 = vshrl.u32 %v2361, 7
    %v2363 = vsub.s32 %v2360, %v2362
    %v2364 = vrot.slane %v2348, %v2363
    %v2366 = vunpack.c.l.s4 1966171168
    %v2367 = vunpack.c.0.s8 %v2366
    %v2368 = vlaneseq
    %v2369 = vshrl.u32 %v2368, 7
    %v2370 = vsub.s32 %v2367, %v2369
    %v2371 = vrot.slane %v2349, %v2370
    %v2373 = vunpack.c.l.s4 1966171168
    %v2374 = vunpack.c.0.s8 %v2373
    %v2375 = vlaneseq
    %v2376 = vshrl.u32 %v2375, 7
    %v2377 = vsub.s32 %v2374, %v2376
    %v2378 = vrot.slane %v2350, %v2377
    %v2379 = vcombine.high %v2357, %v2357
    %v2380 = vcombine.high %v2364, %v2364
    %v2381 = vcombine.high %v2371, %v2371
    %v2382 = vcombine.high %v2378, %v2378
    %v2385 = vcombine.high %v1575, %v1575
    %v2387 = vunpack.c.l.s4 1966171168
    %v2388 = vunpack.c.0.s8 %v2387
    %v2389 = vlaneseq
    %v2390 = vshrl.u32 %v2389, 7
    %v2391 = vsub.s32 %v2388, %v2390
    %v2392 = vrot.slane %v1575, %v2391
    %v2394 = vunpack.c.l.s4 1966171168
    %v2395 = vunpack.c.0.s8 %v2394
    %v2396 = vlaneseq
    %v2397 = vshrl.u32 %v2396, 7
    %v2398 = vsub.s32 %v2395, %v2397
    %v2399 = vrot.slane %v2385, %v2398
    %v2400 = vcombine.high %v2392, %v2392
    %v2401 = vcombine.high %v2399, %v2399
    %v2403 = vunpack.c.l.s4 1966171168
    %v2404 = vunpack.c.0.s8 %v2403
    %v2405 = vlaneseq
    %v2406 = vshrl.u32 %v2405, 7
    %v2407 = vsub.s32 %v2404, %v2406
    %v2408 = vrot.slane %v2392, %v2407
    %v2410 = vunpack.c.l.s4 1966171168
    %v2411 = vunpack.c.0.s8 %v2410
    %v2412 = vlaneseq
    %v2413 = vshrl.u32 %v2412, 7
    %v2414 = vsub.s32 %v2411, %v2413
    %v2415 = vrot.slane %v2399, %v2414
    %v2417 = vunpack.c.l.s4 1966171168
    %v2418 = vunpack.c.0.s8 %v2417
    %v2419 = vlaneseq
    %v2420 = vshrl.u32 %v2419, 7
    %v2421 = vsub.s32 %v2418, %v2420
    %v2422 = vrot.slane %v2400, %v2421
    %v2424 = vunpack.c.l.s4 1966171168
    %v2425 = vunpack.c.0.s8 %v2424
    %v2426 = vlaneseq
    %v2427 = vshrl.u32 %v2426, 7
    %v2428 = vsub.s32 %v2425, %v2427
    %v2429 = vrot.slane %v2401, %v2428
    %v2430 = vcombine.high %v2408, %v2408
    %v2431 = vcombine.high %v2415, %v2415
    %v2432 = vcombine.high %v2422, %v2422
    %v2433 = vcombine.high %v2429, %v2429
    %v2434 = vcombine.high %v1576, %v1576
    %v2436 = vunpack.c.l.s4 1966171168
    %v2437 = vunpack.c.0.s8 %v2436
    %v2438 = vlaneseq
    %v2439 = vshrl.u32 %v2438, 7
    %v2440 = vsub.s32 %v2437, %v2439
    %v2441 = vrot.slane %v1576, %v2440
    %v2443 = vunpack.c.l.s4 1966171168
    %v2444 = vunpack.c.0.s8 %v2443
    %v2445 = vlaneseq
    %v2446 = vshrl.u32 %v2445, 7
    %v2447 = vsub.s32 %v2444, %v2446
    %v2448 = vrot.slane %v2434, %v2447
    %v2449 = vcombine.high %v2441, %v2441
    %v2450 = vcombine.high %v2448, %v2448
    %v2452 = vunpack.c.l.s4 1966171168
    %v2453 = vunpack.c.0.s8 %v2452
    %v2454 = vlaneseq
    %v2455 = vshrl.u32 %v2454, 7
    %v2456 = vsub.s32 %v2453, %v2455
    %v2457 = vrot.slane %v2441, %v2456
    %v2459 = vunpack.c.l.s4 1966171168
    %v2460 = vunpack.c.0.s8 %v2459
    %v2461 = vlaneseq
    %v2462 = vshrl.u32 %v2461, 7
    %v2463 = vsub.s32 %v2460, %v2462
    %v2464 = vrot.slane %v2448, %v2463
    %v2466 = vunpack.c.l.s4 1966171168
    %v2467 = vunpack.c.0.s8 %v2466
    %v2468 = vlaneseq
    %v2469 = vshrl.u32 %v2468, 7
    %v2470 = vsub.s32 %v2467, %v2469
    %v2471 = vrot.slane %v2449, %v2470
    %v2473 = vunpack.c.l.s4 1966171168
    %v2474 = vunpack.c.0.s8 %v2473
    %v2475 = vlaneseq
    %v2476 = vshrl.u32 %v2475, 7
    %v2477 = vsub.s32 %v2474, %v2476
    %v2478 = vrot.slane %v2450, %v2477
    %v2479 = vcombine.high %v2457, %v2457
    %v2480 = vcombine.high %v2464, %v2464
    %v2481 = vcombine.high %v2471, %v2471
    %v2482 = vcombine.high %v2478, %v2478
    %v2485 = vcombine.high %v1720, %v1720
    %v2487 = vunpack.c.l.s4 1966171168
    %v2488 = vunpack.c.0.s8 %v2487
    %v2489 = vlaneseq
    %v2490 = vshrl.u32 %v2489, 7
    %v2491 = vsub.s32 %v2488, %v2490
    %v2492 = vrot.slane %v1720, %v2491
    %v2494 = vunpack.c.l.s4 1966171168
    %v2495 = vunpack.c.0.s8 %v2494
    %v2496 = vlaneseq
    %v2497 = vshrl.u32 %v2496, 7
    %v2498 = vsub.s32 %v2495, %v2497
    %v2499 = vrot.slane %v2485, %v2498
    %v2500 = vcombine.high %v2492, %v2492
    %v2501 = vcombine.high %v2499, %v2499
    %v2503 = vunpack.c.l.s4 1966171168
    %v2504 = vunpack.c.0.s8 %v2503
    %v2505 = vlaneseq
    %v2506 = vshrl.u32 %v2505, 7
    %v2507 = vsub.s32 %v2504, %v2506
    %v2508 = vrot.slane %v2492, %v2507
    %v2510 = vunpack.c.l.s4 1966171168
    %v2511 = vunpack.c.0.s8 %v2510
    %v2512 = vlaneseq
    %v2513 = vshrl.u32 %v2512, 7
    %v2514 = vsub.s32 %v2511, %v2513
    %v2515 = vrot.slane %v2499, %v2514
    %v2517 = vunpack.c.l.s4 1966171168
    %v2518 = vunpack.c.0.s8 %v2517
    %v2519 = vlaneseq
    %v2520 = vshrl.u32 %v2519, 7
    %v2521 = vsub.s32 %v2518, %v2520
    %v2522 = vrot.slane %v2500, %v2521
    %v2524 = vunpack.c.l.s4 1966171168
    %v2525 = vunpack.c.0.s8 %v2524
    %v2526 = vlaneseq
    %v2527 = vshrl.u32 %v2526, 7
    %v2528 = vsub.s32 %v2525, %v2527
    %v2529 = vrot.slane %v2501, %v2528
    %v2530 = vcombine.high %v2508, %v2508
    %v2531 = vcombine.high %v2515, %v2515
    %v2532 = vcombine.high %v2522, %v2522
    %v2533 = vcombine.high %v2529, %v2529
    %v2534 = vcombine.high %v1721, %v1721
    %v2536 = vunpack.c.l.s4 1966171168
    %v2537 = vunpack.c.0.s8 %v2536
    %v2538 = vlaneseq
    %v2539 = vshrl.u32 %v2538, 7
    %v2540 = vsub.s32 %v2537, %v2539
    %v2541 = vrot.slane %v1721, %v2540
    %v2543 = vunpack.c.l.s4 1966171168
    %v2544 = vunpack.c.0.s8 %v2543
    %v2545 = vlaneseq
    %v2546 = vshrl.u32 %v2545, 7
    %v2547 = vsub.s32 %v2544, %v2546
    %v2548 = vrot.slane %v2534, %v2547
    %v2549 = vcombine.high %v2541, %v2541
    %v2550 = vcombine.high %v2548, %v2548
    %v2552 = vunpack.c.l.s4 1966171168
    %v2553 = vunpack.c.0.s8 %v2552
    %v2554 = vlaneseq
    %v2555 = vshrl.u32 %v2554, 7
    %v2556 = vsub.s32 %v2553, %v2555
    %v2557 = vrot.slane %v2541, %v2556
    %v2559 = vunpack.c.l.s4 1966171168
    %v2560 = vunpack.c.0.s8 %v2559
    %v2561 = vlaneseq
    %v2562 = vshrl.u32 %v2561, 7
    %v2563 = vsub.s32 %v2560, %v2562
    %v2564 = vrot.slane %v2548, %v2563
    %v2566 = vunpack.c.l.s4 1966171168
    %v2567 = vunpack.c.0.s8 %v2566
    %v2568 = vlaneseq
    %v2569 = vshrl.u32 %v2568, 7
    %v2570 = vsub.s32 %v2567, %v2569
    %v2571 = vrot.slane %v2549, %v2570
    %v2573 = vunpack.c.l.s4 1966171168
    %v2574 = vunpack.c.0.s8 %v2573
    %v2575 = vlaneseq
    %v2576 = vshrl.u32 %v2575, 7
    %v2577 = vsub.s32 %v2574, %v2576
    %v2578 = vrot.slane %v2550, %v2577
    %v2579 = vcombine.high %v2557, %v2557
    %v2580 = vcombine.high %v2564, %v2564
    %v2581 = vcombine.high %v2571, %v2571
    %v2582 = vcombine.high %v2578, %v2578
    %v2585 = vcombine.high %v1865, %v1865
    %v2587 = vunpack.c.l.s4 1966171168
    %v2588 = vunpack.c.0.s8 %v2587
    %v2589 = vlaneseq
    %v2590 = vshrl.u32 %v2589, 7
    %v2591 = vsub.s32 %v2588, %v2590
    %v2592 = vrot.slane %v1865, %v2591
    %v2594 = vunpack.c.l.s4 1966171168
    %v2595 = vunpack.c.0.s8 %v2594
    %v2596 = vlaneseq
    %v2597 = vshrl.u32 %v2596, 7
    %v2598 = vsub.s32 %v2595, %v2597
    %v2599 = vrot.slane %v2585, %v2598
    %v2600 = vcombine.high %v2592, %v2592
    %v2601 = vcombine.high %v2599, %v2599
    %v2603 = vunpack.c.l.s4 1966171168
    %v2604 = vunpack.c.0.s8 %v2603
    %v2605 = vlaneseq
    %v2606 = vshrl.u32 %v2605, 7
    %v2607 = vsub.s32 %v2604, %v2606
    %v2608 = vrot.slane %v2592, %v2607
    %v2610 = vunpack.c.l.s4 1966171168
    %v2611 = vunpack.c.0.s8 %v2610
    %v2612 = vlaneseq
    %v2613 = vshrl.u32 %v2612, 7
    %v2614 = vsub.s32 %v2611, %v2613
    %v2615 = vrot.slane %v2599, %v2614
    %v2617 = vunpack.c.l.s4 1966171168
    %v2618 = vunpack.c.0.s8 %v2617
    %v2619 = vlaneseq
    %v2620 = vshrl.u32 %v2619, 7
    %v2621 = vsub.s32 %v2618, %v2620
    %v2622 = vrot.slane %v2600, %v2621
    %v2624 = vunpack.c.l.s4 1966171168
    %v2625 = vunpack.c.0.s8 %v2624
    %v2626 = vlaneseq
    %v2627 = vshrl.u32 %v2626, 7
    %v2628 = vsub.s32 %v2625, %v2627
    %v2629 = vrot.slane %v2601, %v2628
    %v2630 = vcombine.high %v2608, %v2608
    %v2631 = vcombine.high %v2615, %v2615
    %v2632 = vcombine.high %v2622, %v2622
    %v2633 = vcombine.high %v2629, %v2629
    %v2634 = vcombine.high %v1866, %v1866
    %v2636 = vunpack.c.l.s4 1966171168
    %v2637 = vunpack.c.0.s8 %v2636
    %v2638 = vlaneseq
    %v2639 = vshrl.u32 %v2638, 7
    %v2640 = vsub.s32 %v2637, %v2639
    %v2641 = vrot.slane %v1866, %v2640
    %v2643 = vunpack.c.l.s4 1966171168
    %v2644 = vunpack.c.0.s8 %v2643
    %v2645 = vlaneseq
    %v2646 = vshrl.u32 %v2645, 7
    %v2647 = vsub.s32 %v2644, %v2646
    %v2648 = vrot.slane %v2634, %v2647
    %v2649 = vcombine.high %v2641, %v2641
    %v2650 = vcombine.high %v2648, %v2648
    %v2652 = vunpack.c.l.s4 1966171168
    %v2653 = vunpack.c.0.s8 %v2652
    %v2654 = vlaneseq
    %v2655 = vshrl.u32 %v2654, 7
    %v2656 = vsub.s32 %v2653, %v2655
    %v2657 = vrot.slane %v2641, %v2656
    %v2659 = vunpack.c.l.s4 1966171168
    %v2660 = vunpack.c.0.s8 %v2659
    %v2661 = vlaneseq
    %v2662 = vshrl.u32 %v2661, 7
    %v2663 = vsub.s32 %v2660, %v2662
    %v2664 = vrot.slane %v2648, %v2663
    %v2666 = vunpack.c.l.s4 1966171168
    %v2667 = vunpack.c.0.s8 %v2666
    %v2668 = vlaneseq
    %v2669 = vshrl.u32 %v2668, 7
    %v2670 = vsub.s32 %v2667, %v2669
    %v2671 = vrot.slane %v2649, %v2670
    %v2673 = vunpack.c.l.s4 1966171168
    %v2674 = vunpack.c.0.s8 %v2673
    %v2675 = vlaneseq
    %v2676 = vshrl.u32 %v2675, 7
    %v2677 = vsub.s32 %v2674, %v2676
    %v2678 = vrot.slane %v2650, %v2677
    %v2679 = vcombine.high %v2657, %v2657
    %v2680 = vcombine.high %v2664, %v2664
    %v2681 = vcombine.high %v2671, %v2671
    %v2682 = vcombine.high %v2678, %v2678
    %v2683 = vlaneseq
    %v2684 = vshrl.u32 %v2683, 7
    %v2685 = vsub.s32 0, %v2684
    %v2686 = vrot.slane %v2008, %v2685
    %v2687 = vlaneseq
    %v2688 = vshrl.u32 %v2687, 7
    %v2689 = vsub.s32 0, %v2688
    %v2690 = vrot.slane %v2022, %v2689
    %v2691 = vlaneseq
    %v2692 = vshrl.u32 %v2691, 7
    %v2693 = vsub.s32 0, %v2692
    %v2694 = vrot.slane %v2030, %v2693
    %v2695 = vlaneseq
    %v2696 = vshrl.u32 %v2695, 7
    %v2697 = vsub.s32 0, %v2696
    %v2698 = vrot.slane %v2032, %v2697
    %v2699 = vlaneseq
    %v2700 = vshrl.u32 %v2699, 7
    %v2701 = vsub.s32 0, %v2700
    %v2702 = vrot.slane %v2015, %v2701
    %v2703 = vlaneseq
    %v2704 = vshrl.u32 %v2703, 7
    %v2705 = vsub.s32 0, %v2704
    %v2706 = vrot.slane %v2029, %v2705
    %v2707 = vlaneseq
    %v2708 = vshrl.u32 %v2707, 7
    %v2709 = vsub.s32 0, %v2708
    %v2710 = vrot.slane %v2031, %v2709
    %v2711 = vlaneseq
    %v2712 = vshrl.u32 %v2711, 7
    %v2713 = vsub.s32 0, %v2712
    %v2714 = vrot.slane %v2033, %v2713
    %v2715 = vlaneseq
    %v2716 = vshrl.u32 %v2715, 7
    %v2717 = vsub.s32 0, %v2716
    %v2718 = vrot.slane %v2057, %v2717
    %v2719 = vlaneseq
    %v2720 = vshrl.u32 %v2719, 7
    %v2721 = vsub.s32 0, %v2720
    %v2722 = vrot.slane %v2071, %v2721
    %v2723 = vlaneseq
    %v2724 = vshrl.u32 %v2723, 7
    %v2725 = vsub.s32 0, %v2724
    %v2726 = vrot.slane %v2079, %v2725
    %v2727 = vlaneseq
    %v2728 = vshrl.u32 %v2727, 7
    %v2729 = vsub.s32 0, %v2728
    %v2730 = vrot.slane %v2081, %v2729
    %v2731 = vlaneseq
    %v2732 = vshrl.u32 %v2731, 7
    %v2733 = vsub.s32 0, %v2732
    %v2734 = vrot.slane %v2064, %v2733
    %v2735 = vlaneseq
    %v2736 = vshrl.u32 %v2735, 7
    %v2737 = vsub.s32 0, %v2736
    %v2738 = vrot.slane %v2078, %v2737
    %v2739 = vlaneseq
    %v2740 = vshrl.u32 %v2739, 7
    %v2741 = vsub.s32 0, %v2740
    %v2742 = vrot.slane %v2080, %v2741
    %v2743 = vlaneseq
    %v2744 = vshrl.u32 %v2743, 7
    %v2745 = vsub.s32 0, %v2744
    %v2746 = vrot.slane %v2082, %v2745
    %v2763 = vlaneseq
    %v2764 = vshrl.u32 %v2763, 7
    %v2765 = vsub.s32 0, %v2764
    %v2766 = vrot.slane %v2108, %v2765
    %v2767 = vlaneseq
    %v2768 = vshrl.u32 %v2767, 7
    %v2769 = vsub.s32 0, %v2768
    %v2770 = vrot.slane %v2122, %v2769
    %v2771 = vlaneseq
    %v2772 = vshrl.u32 %v2771, 7
    %v2773 = vsub.s32 0, %v2772
    %v2774 = vrot.slane %v2130, %v2773
    %v2775 = vlaneseq
    %v2776 = vshrl.u32 %v2775, 7
    %v2777 = vsub.s32 0, %v2776
    %v2778 = vrot.slane %v2132, %v2777
    %v2779 = vlaneseq
    %v2780 = vshrl.u32 %v2779, 7
    %v2781 = vsub.s32 0, %v2780
    %v2782 = vrot.slane %v2115, %v2781
    %v2783 = vlaneseq
    %v2784 = vshrl.u32 %v2783, 7
    %v2785 = vsub.s32 0, %v2784
    %v2786 = vrot.slane %v2129, %v2785
    %v2787 = vlaneseq
    %v2788 = vshrl.u32 %v2787, 7
    %v2789 = vsub.s32 0, %v2788
    %v2790 = vrot.slane %v2131, %v2789
    %v2791 = vlaneseq
    %v2792 = vshrl.u32 %v2791, 7
    %v2793 = vsub.s32 0, %v2792
    %v2794 = vrot.slane %v2133, %v2793
    %v2795 = vlaneseq
    %v2796 = vshrl.u32 %v2795, 7
    %v2797 = vsub.s32 0, %v2796
    %v2798 = vrot.slane %v2157, %v2797
    %v2799 = vlaneseq
    %v2800 = vshrl.u32 %v2799, 7
    %v2801 = vsub.s32 0, %v2800
    %v2802 = vrot.slane %v2171, %v2801
    %v2803 = vlaneseq
    %v2804 = vshrl.u32 %v2803, 7
    %v2805 = vsub.s32 0, %v2804
    %v2806 = vrot.slane %v2179, %v2805
    %v2807 = vlaneseq
    %v2808 = vshrl.u32 %v2807, 7
    %v2809 = vsub.s32 0, %v2808
    %v2810 = vrot.slane %v2181, %v2809
    %v2811 = vlaneseq
    %v2812 = vshrl.u32 %v2811, 7
    %v2813 = vsub.s32 0, %v2812
    %v2814 = vrot.slane %v2164, %v2813
    %v2815 = vlaneseq
    %v2816 = vshrl.u32 %v2815, 7
    %v2817 = vsub.s32 0, %v2816
    %v2818 = vrot.slane %v2178, %v2817
    %v2819 = vlaneseq
    %v2820 = vshrl.u32 %v2819, 7
    %v2821 = vsub.s32 0, %v2820
    %v2822 = vrot.slane %v2180, %v2821
    %v2823 = vlaneseq
    %v2824 = vshrl.u32 %v2823, 7
    %v2825 = vsub.s32 0, %v2824
    %v2826 = vrot.slane %v2182, %v2825
    %v2843 = vlaneseq
    %v2844 = vshrl.u32 %v2843, 7
    %v2845 = vsub.s32 0, %v2844
    %v2846 = vrot.slane %v2208, %v2845
    %v2847 = vlaneseq
    %v2848 = vshrl.u32 %v2847, 7
    %v2849 = vsub.s32 0, %v2848
    %v2850 = vrot.slane %v2222, %v2849
    %v2851 = vlaneseq
    %v2852 = vshrl.u32 %v2851, 7
    %v2853 = vsub.s32 0, %v2852
    %v2854 = vrot.slane %v2230, %v2853
    %v2855 = vlaneseq
    %v2856 = vshrl.u32 %v2855, 7
    %v2857 = vsub.s32 0, %v2856
    %v2858 = vrot.slane %v2232, %v2857
    %v2859 = vlaneseq
    %v2860 = vshrl.u32 %v2859, 7
    %v2861 = vsub.s32 0, %v2860
    %v2862 = vrot.slane %v2215, %v2861
    %v2863 = vlaneseq
    %v2864 = vshrl.u32 %v2863, 7
    %v2865 = vsub.s32 0, %v2864
    %v2866 = vrot.slane %v2229, %v2865
    %v2867 = vlaneseq
    %v2868 = vshrl.u32 %v2867, 7
    %v2869 = vsub.s32 0, %v2868
    %v2870 = vrot.slane %v2231, %v2869
    %v2871 = vlaneseq
    %v2872 = vshrl.u32 %v2871, 7
    %v2873 = vsub.s32 0, %v2872
    %v2874 = vrot.slane %v2233, %v2873
    %v2875 = vlaneseq
    %v2876 = vshrl.u32 %v2875, 7
    %v2877 = vsub.s32 0, %v2876
    %v2878 = vrot.slane %v2257, %v2877
    %v2879 = vlaneseq
    %v2880 = vshrl.u32 %v2879, 7
    %v2881 = vsub.s32 0, %v2880
    %v2882 = vrot.slane %v2271, %v2881
    %v2883 = vlaneseq
    %v2884 = vshrl.u32 %v2883, 7
    %v2885 = vsub.s32 0, %v2884
    %v2886 = vrot.slane %v2279, %v2885
    %v2887 = vlaneseq
    %v2888 = vshrl.u32 %v2887, 7
    %v2889 = vsub.s32 0, %v2888
    %v2890 = vrot.slane %v2281, %v2889
    %v2891 = vlaneseq
    %v2892 = vshrl.u32 %v2891, 7
    %v2893 = vsub.s32 0, %v2892
    %v2894 = vrot.slane %v2264, %v2893
    %v2895 = vlaneseq
    %v2896 = vshrl.u32 %v2895, 7
    %v2897 = vsub.s32 0, %v2896
    %v2898 = vrot.slane %v2278, %v2897
    %v2899 = vlaneseq
    %v2900 = vshrl.u32 %v2899, 7
    %v2901 = vsub.s32 0, %v2900
    %v2902 = vrot.slane %v2280, %v2901
    %v2903 = vlaneseq
    %v2904 = vshrl.u32 %v2903, 7
    %v2905 = vsub.s32 0, %v2904
    %v2906 = vrot.slane %v2282, %v2905
    %v2923 = vlaneseq
    %v2924 = vshrl.u32 %v2923, 7
    %v2925 = vsub.s32 0, %v2924
    %v2926 = vrot.slane %v2308, %v2925
    %v2927 = vlaneseq
    %v2928 = vshrl.u32 %v2927, 7
    %v2929 = vsub.s32 0, %v2928
    %v2930 = vrot.slane %v2322, %v2929
    %v2931 = vlaneseq
    %v2932 = vshrl.u32 %v2931, 7
    %v2933 = vsub.s32 0, %v2932
    %v2934 = vrot.slane %v2330, %v2933
    %v2935 = vlaneseq
    %v2936 = vshrl.u32 %v2935, 7
    %v2937 = vsub.s32 0, %v2936
    %v2938 = vrot.slane %v2332, %v2937
    %v2939 = vlaneseq
    %v2940 = vshrl.u32 %v2939, 7
    %v2941 = vsub.s32 0, %v2940
    %v2942 = vrot.slane %v2315, %v2941
    %v2943 = vlaneseq
    %v2944 = vshrl.u32 %v2943, 7
    %v2945 = vsub.s32 0, %v2944
    %v2946 = vrot.slane %v2329, %v2945
    %v2947 = vlaneseq
    %v2948 = vshrl.u32 %v2947, 7
    %v2949 = vsub.s32 0, %v2948
    %v2950 = vrot.slane %v2331, %v2949
    %v2951 = vlaneseq
    %v2952 = vshrl.u32 %v2951, 7
    %v2953 = vsub.s32 0, %v2952
    %v2954 = vrot.slane %v2333, %v2953
    %v2955 = vlaneseq
    %v2956 = vshrl.u32 %v2955, 7
    %v2957 = vsub.s32 0, %v2956
    %v2958 = vrot.slane %v2357, %v2957
    %v2959 = vlaneseq
    %v2960 = vshrl.u32 %v2959, 7
    %v2961 = vsub.s32 0, %v2960
    %v2962 = vrot.slane %v2371, %v2961
    %v2963 = vlaneseq
    %v2964 = vshrl.u32 %v2963, 7
    %v2965 = vsub.s32 0, %v2964
    %v2966 = vrot.slane %v2379, %v2965
    %v2967 = vlaneseq
    %v2968 = vshrl.u32 %v2967, 7
    %v2969 = vsub.s32 0, %v2968
    %v2970 = vrot.slane %v2381, %v2969
    %v2971 = vlaneseq
    %v2972 = vshrl.u32 %v2971, 7
    %v2973 = vsub.s32 0, %v2972
    %v2974 = vrot.slane %v2364, %v2973
    %v2975 = vlaneseq
    %v2976 = vshrl.u32 %v2975, 7
    %v2977 = vsub.s32 0, %v2976
    %v2978 = vrot.slane %v2378, %v2977
    %v2979 = vlaneseq
    %v2980 = vshrl.u32 %v2979, 7
    %v2981 = vsub.s32 0, %v2980
    %v2982 = vrot.slane %v2380, %v2981
    %v2983 = vlaneseq
    %v2984 = vshrl.u32 %v2983, 7
    %v2985 = vsub.s32 0, %v2984
    %v2986 = vrot.slane %v2382, %v2985
    %v3003 = vlaneseq
    %v3004 = vshrl.u32 %v3003, 7
    %v3005 = vsub.s32 0, %v3004
    %v3006 = vrot.slane %v2408, %v3005
    %v3007 = vlaneseq
    %v3008 = vshrl.u32 %v3007, 7
    %v3009 = vsub.s32 0, %v3008
    %v3010 = vrot.slane %v2422, %v3009
    %v3011 = vlaneseq
    %v3012 = vshrl.u32 %v3011, 7
    %v3013 = vsub.s32 0, %v3012
    %v3014 = vrot.slane %v2430, %v3013
    %v3015 = vlaneseq
    %v3016 = vshrl.u32 %v3015, 7
    %v3017 = vsub.s32 0, %v3016
    %v3018 = vrot.slane %v2432, %v3017
    %v3019 = vlaneseq
    %v3020 = vshrl.u32 %v3019, 7
    %v3021 = vsub.s32 0, %v3020
    %v3022 = vrot.slane %v2415, %v3021
    %v3023 = vlaneseq
    %v3024 = vshrl.u32 %v3023, 7
    %v3025 = vsub.s32 0, %v3024
    %v3026 = vrot.slane %v2429, %v3025
    %v3027 = vlaneseq
    %v3028 = vshrl.u32 %v3027, 7
    %v3029 = vsub.s32 0, %v3028
    %v3030 = vrot.slane %v2431, %v3029
    %v3031 = vlaneseq
    %v3032 = vshrl.u32 %v3031, 7
    %v3033 = vsub.s32 0, %v3032
    %v3034 = vrot.slane %v2433, %v3033
    %v3035 = vlaneseq
    %v3036 = vshrl.u32 %v3035, 7
    %v3037 = vsub.s32 0, %v3036
    %v3038 = vrot.slane %v2457, %v3037
    %v3039 = vlaneseq
    %v3040 = vshrl.u32 %v3039, 7
    %v3041 = vsub.s32 0, %v3040
    %v3042 = vrot.slane %v2471, %v3041
    %v3043 = vlaneseq
    %v3044 = vshrl.u32 %v3043, 7
    %v3045 = vsub.s32 0, %v3044
    %v3046 = vrot.slane %v2479, %v3045
    %v3047 = vlaneseq
    %v3048 = vshrl.u32 %v3047, 7
    %v3049 = vsub.s32 0, %v3048
    %v3050 = vrot.slane %v2481, %v3049
    %v3051 = vlaneseq
    %v3052 = vshrl.u32 %v3051, 7
    %v3053 = vsub.s32 0, %v3052
    %v3054 = vrot.slane %v2464, %v3053
    %v3055 = vlaneseq
    %v3056 = vshrl.u32 %v3055, 7
    %v3057 = vsub.s32 0, %v3056
    %v3058 = vrot.slane %v2478, %v3057
    %v3059 = vlaneseq
    %v3060 = vshrl.u32 %v3059, 7
    %v3061 = vsub.s32 0, %v3060
    %v3062 = vrot.slane %v2480, %v3061
    %v3063 = vlaneseq
    %v3064 = vshrl.u32 %v3063, 7
    %v3065 = vsub.s32 0, %v3064
    %v3066 = vrot.slane %v2482, %v3065
    %v3083 = vlaneseq
    %v3084 = vshrl.u32 %v3083, 7
    %v3085 = vsub.s32 0, %v3084
    %v3086 = vrot.slane %v2508, %v3085
    %v3087 = vlaneseq
    %v3088 = vshrl.u32 %v3087, 7
    %v3089 = vsub.s32 0, %v3088
    %v3090 = vrot.slane %v2522, %v3089
    %v3091 = vlaneseq
    %v3092 = vshrl.u32 %v3091, 7
    %v3093 = vsub.s32 0, %v3092
    %v3094 = vrot.slane %v2530, %v3093
    %v3095 = vlaneseq
    %v3096 = vshrl.u32 %v3095, 7
    %v3097 = vsub.s32 0, %v3096
    %v3098 = vrot.slane %v2532, %v3097
    %v3099 = vlaneseq
    %v3100 = vshrl.u32 %v3099, 7
    %v3101 = vsub.s32 0, %v3100
    %v3102 = vrot.slane %v2515, %v3101
    %v3103 = vlaneseq
    %v3104 = vshrl.u32 %v3103, 7
    %v3105 = vsub.s32 0, %v3104
    %v3106 = vrot.slane %v2529, %v3105
    %v3107 = vlaneseq
    %v3108 = vshrl.u32 %v3107, 7
    %v3109 = vsub.s32 0, %v3108
    %v3110 = vrot.slane %v2531, %v3109
    %v3111 = vlaneseq
    %v3112 = vshrl.u32 %v3111, 7
    %v3113 = vsub.s32 0, %v3112
    %v3114 = vrot.slane %v2533, %v3113
    %v3115 = vlaneseq
    %v3116 = vshrl.u32 %v3115, 7
    %v3117 = vsub.s32 0, %v3116
    %v3118 = vrot.slane %v2557, %v3117
    %v3119 = vlaneseq
    %v3120 = vshrl.u32 %v3119, 7
    %v3121 = vsub.s32 0, %v3120
    %v3122 = vrot.slane %v2571, %v3121
    %v3123 = vlaneseq
    %v3124 = vshrl.u32 %v3123, 7
    %v3125 = vsub.s32 0, %v3124
    %v3126 = vrot.slane %v2579, %v3125
    %v3127 = vlaneseq
    %v3128 = vshrl.u32 %v3127, 7
    %v3129 = vsub.s32 0, %v3128
    %v3130 = vrot.slane %v2581, %v3129
    %v3131 = vlaneseq
    %v3132 = vshrl.u32 %v3131, 7
    %v3133 = vsub.s32 0, %v3132
    %v3134 = vrot.slane %v2564, %v3133
    %v3135 = vlaneseq
    %v3136 = vshrl.u32 %v3135, 7
    %v3137 = vsub.s32 0, %v3136
    %v3138 = vrot.slane %v2578, %v3137
    %v3139 = vlaneseq
    %v3140 = vshrl.u32 %v3139, 7
    %v3141 = vsub.s32 0, %v3140
    %v3142 = vrot.slane %v2580, %v3141
    %v3143 = vlaneseq
    %v3144 = vshrl.u32 %v3143, 7
    %v3145 = vsub.s32 0, %v3144
    %v3146 = vrot.slane %v2582, %v3145
    %v3163 = vlaneseq
    %v3164 = vshrl.u32 %v3163, 7
    %v3165 = vsub.s32 0, %v3164
    %v3166 = vrot.slane %v2608, %v3165
    %v3167 = vlaneseq
    %v3168 = vshrl.u32 %v3167, 7
    %v3169 = vsub.s32 0, %v3168
    %v3170 = vrot.slane %v2622, %v3169
    %v3171 = vlaneseq
    %v3172 = vshrl.u32 %v3171, 7
    %v3173 = vsub.s32 0, %v3172
    %v3174 = vrot.slane %v2630, %v3173
    %v3175 = vlaneseq
    %v3176 = vshrl.u32 %v3175, 7
    %v3177 = vsub.s32 0, %v3176
    %v3178 = vrot.slane %v2632, %v3177
    %v3179 = vlaneseq
    %v3180 = vshrl.u32 %v3179, 7
    %v3181 = vsub.s32 0, %v3180
    %v3182 = vrot.slane %v2615, %v3181
    %v3183 = vlaneseq
    %v3184 = vshrl.u32 %v3183, 7
    %v3185 = vsub.s32 0, %v3184
    %v3186 = vrot.slane %v2629, %v3185
    %v3187 = vlaneseq
    %v3188 = vshrl.u32 %v3187, 7
    %v3189 = vsub.s32 0, %v3188
    %v3190 = vrot.slane %v2631, %v3189
    %v3191 = vlaneseq
    %v3192 = vshrl.u32 %v3191, 7
    %v3193 = vsub.s32 0, %v3192
    %v3194 = vrot.slane %v2633, %v3193
    %v3195 = vlaneseq
    %v3196 = vshrl.u32 %v3195, 7
    %v3197 = vsub.s32 0, %v3196
    %v3198 = vrot.slane %v2657, %v3197
    %v3199 = vlaneseq
    %v3200 = vshrl.u32 %v3199, 7
    %v3201 = vsub.s32 0, %v3200
    %v3202 = vrot.slane %v2671, %v3201
    %v3203 = vlaneseq
    %v3204 = vshrl.u32 %v3203, 7
    %v3205 = vsub.s32 0, %v3204
    %v3206 = vrot.slane %v2679, %v3205
    %v3207 = vlaneseq
    %v3208 = vshrl.u32 %v3207, 7
    %v3209 = vsub.s32 0, %v3208
    %v3210 = vrot.slane %v2681, %v3209
    %v3211 = vlaneseq
    %v3212 = vshrl.u32 %v3211, 7
    %v3213 = vsub.s32 0, %v3212
    %v3214 = vrot.slane %v2664, %v3213
    %v3215 = vlaneseq
    %v3216 = vshrl.u32 %v3215, 7
    %v3217 = vsub.s32 0, %v3216
    %v3218 = vrot.slane %v2678, %v3217
    %v3219 = vlaneseq
    %v3220 = vshrl.u32 %v3219, 7
    %v3221 = vsub.s32 0, %v3220
    %v3222 = vrot.slane %v2680, %v3221
    %v3223 = vlaneseq
    %v3224 = vshrl.u32 %v3223, 7
    %v3225 = vsub.s32 0, %v3224
    %v3226 = vrot.slane %v2682, %v3225
    %vm3243 = vcmask 1040384
    %v3244 = vsel %vm3243, %v1892, %v2686
    %v3245 = vsel %vm3243, %v1906, %v2690
    %v3246 = vsel %vm3243, %v1914, %v2694
    %v3247 = vsel %vm3243, %v1916, %v2698
    %v3248 = vsel %vm3243, %v1899, %v2702
    %v3249 = vsel %vm3243, %v1913, %v2706
    %v3250 = vsel %vm3243, %v1915, %v2710
    %v3251 = vsel %vm3243, %v1917, %v2714
    %v3252 = vsel %vm3243, %v1941, %v2718
    %v3253 = vsel %vm3243, %v1955, %v2722
    %v3254 = vsel %vm3243, %v1963, %v2726
    %v3255 = vsel %vm3243, %v1965, %v2730
    %v3256 = vsel %vm3243, %v1948, %v2734
    %v3257 = vsel %vm3243, %v1962, %v2738
    %v3258 = vsel %vm3243, %v1964, %v2742
    %v3259 = vsel %vm3243, %v1966, %v2746
    %vm3260 = vcmask 1041408
    %v3261 = vsel %vm3260, %v3244, %v2766
    %v3262 = vsel %vm3260, %v3245, %v2770
    %v3263 = vsel %vm3260, %v3246, %v2774
    %v3264 = vsel %vm3260, %v3247, %v2778
    %v3265 = vsel %vm3260, %v3248, %v2782
    %v3266 = vsel %vm3260, %v3249, %v2786
    %v3267 = vsel %vm3260, %v3250, %v2790
    %v3268 = vsel %vm3260, %v3251, %v2794
    %v3269 = vsel %vm3260, %v3252, %v2798
    %v3270 = vsel %vm3260, %v3253, %v2802
    %v3271 = vsel %vm3260, %v3254, %v2806
    %v3272 = vsel %vm3260, %v3255, %v2810
    %v3273 = vsel %vm3260, %v3256, %v2814
    %v3274 = vsel %vm3260, %v3257, %v2818
    %v3275 = vsel %vm3260, %v3258, %v2822
    %v3276 = vsel %vm3260, %v3259, %v2826
    %vm3277 = vcmask 1042432
    %v3278 = vsel %vm3277, %v3261, %v2846
    %v3279 = vsel %vm3277, %v3262, %v2850
    %v3280 = vsel %vm3277, %v3263, %v2854
    %v3281 = vsel %vm3277, %v3264, %v2858
    %v3282 = vsel %vm3277, %v3265, %v2862
    %v3283 = vsel %vm3277, %v3266, %v2866
    %v3284 = vsel %vm3277, %v3267, %v2870
    %v3285 = vsel %vm3277, %v3268, %v2874
    %v3286 = vsel %vm3277, %v3269, %v2878
    %v3287 = vsel %vm3277, %v3270, %v2882
    %v3288 = vsel %vm3277, %v3271, %v2886
    %v3289 = vsel %vm3277, %v3272, %v2890
    %v3290 = vsel %vm3277, %v3273, %v2894
    %v3291 = vsel %vm3277, %v3274, %v2898
    %v3292 = vsel %vm3277, %v3275, %v2902
    %v3293 = vsel %vm3277, %v3276, %v2906
    %vm3294 = vcmask 1043456
    %v3295 = vsel %vm3294, %v3278, %v2926
    %v3296 = vsel %vm3294, %v3279, %v2930
    %v3297 = vsel %vm3294, %v3280, %v2934
    %v3298 = vsel %vm3294, %v3281, %v2938
    %v3299 = vsel %vm3294, %v3282, %v2942
    %v3300 = vsel %vm3294, %v3283, %v2946
    %v3301 = vsel %vm3294, %v3284, %v2950
    %v3302 = vsel %vm3294, %v3285, %v2954
    %v3303 = vsel %vm3294, %v3286, %v2958
    %v3304 = vsel %vm3294, %v3287, %v2962
    %v3305 = vsel %vm3294, %v3288, %v2966
    %v3306 = vsel %vm3294, %v3289, %v2970
    %v3307 = vsel %vm3294, %v3290, %v2974
    %v3308 = vsel %vm3294, %v3291, %v2978
    %v3309 = vsel %vm3294, %v3292, %v2982
    %v3310 = vsel %vm3294, %v3293, %v2986
    %vm3311 = vcmask 1044480
    %v3312 = vsel %vm3311, %v3295, %v3006
    %v3313 = vsel %vm3311, %v3296, %v3010
    %v3314 = vsel %vm3311, %v3297, %v3014
    %v3315 = vsel %vm3311, %v3298, %v3018
    %v3316 = vsel %vm3311, %v3299, %v3022
    %v3317 = vsel %vm3311, %v3300, %v3026
    %v3318 = vsel %vm3311, %v3301, %v3030
    %v3319 = vsel %vm3311, %v3302, %v3034
    %v3320 = vsel %vm3311, %v3303, %v3038
    %v3321 = vsel %vm3311, %v3304, %v3042
    %v3322 = vsel %vm3311, %v3305, %v3046
    %v3323 = vsel %vm3311, %v3306, %v3050
    %v3324 = vsel %vm3311, %v3307, %v3054
    %v3325 = vsel %vm3311, %v3308, %v3058
    %v3326 = vsel %vm3311, %v3309, %v3062
    %v3327 = vsel %vm3311, %v3310, %v3066
    %vm3328 = vcmask 1045504
    %v3329 = vsel %vm3328, %v3312, %v3086
    %v3330 = vsel %vm3328, %v3313, %v3090
    %v3331 = vsel %vm3328, %v3314, %v3094
    %v3332 = vsel %vm3328, %v3315, %v3098
    %v3333 = vsel %vm3328, %v3316, %v3102
    %v3334 = vsel %vm3328, %v3317, %v3106
    %v3335 = vsel %vm3328, %v3318, %v3110
    %v3336 = vsel %vm3328, %v3319, %v3114
    %v3337 = vsel %vm3328, %v3320, %v3118
    %v3338 = vsel %vm3328, %v3321, %v3122
    %v3339 = vsel %vm3328, %v3322, %v3126
    %v3340 = vsel %vm3328, %v3323, %v3130
    %v3341 = vsel %vm3328, %v3324, %v3134
    %v3342 = vsel %vm3328, %v3325, %v3138
    %v3343 = vsel %vm3328, %v3326, %v3142
    %v3344 = vsel %vm3328, %v3327, %v3146
    %vm3345 = vcmask 1046528
    %v3346 = vsel %vm3345, %v3329, %v3166
    %v3347 = vsel %vm3345, %v3330, %v3170
    %v3348 = vsel %vm3345, %v3331, %v3174
    %v3349 = vsel %vm3345, %v3332, %v3178
    %v3350 = vsel %vm3345, %v3333, %v3182
    %v3351 = vsel %vm3345, %v3334, %v3186
    %v3352 = vsel %vm3345, %v3335, %v3190
    %v3353 = vsel %vm3345, %v3336, %v3194
    %v3354 = vsel %vm3345, %v3337, %v3198
    %v3355 = vsel %vm3345, %v3338, %v3202
    %v3356 = vsel %vm3345, %v3339, %v3206
    %v3357 = vsel %vm3345, %v3340, %v3210
    %v3358 = vsel %vm3345, %v3341, %v3214
    %v3359 = vsel %vm3345, %v3342, %v3218
    %v3360 = vsel %vm3345, %v3343, %v3222
    %v3361 = vsel %vm3345, %v3344, %v3226
    %v3362 = vpack.c.bf16 %v3346, %v3346
    %v3363 = vpack.c.bf16 %v3347, %v3347
    %v3364 = vpack.c.bf16 %v3348, %v3348
    %v3365 = vpack.c.bf16 %v3349, %v3349
    %v3366 = vpack.c.bf16 %v3350, %v3350
    %v3367 = vpack.c.bf16 %v3351, %v3351
    %v3368 = vpack.c.bf16 %v3352, %v3352
    %v3369 = vpack.c.bf16 %v3353, %v3353
    %v3370 = vpack.c.bf16 %v3354, %v3354
    %v3371 = vpack.c.bf16 %v3355, %v3355
    %v3372 = vpack.c.bf16 %v3356, %v3356
    %v3373 = vpack.c.bf16 %v3357, %v3357
    %v3374 = vpack.c.bf16 %v3358, %v3358
    %v3375 = vpack.c.bf16 %v3359, %v3359
    %v3376 = vpack.c.bf16 %v3360, %v3360
    %v3377 = vpack.c.bf16 %v3361, %v3361
    %3378 = vst [vmem:[#allocation8] sm:$0xf] %v3362
    %3379 = vst [vmem:[#allocation8 + $0x4] sm:$0xf] %v3363
    %3380 = vst [vmem:[#allocation8 + $0x8] sm:$0xf] %v3364
    %3381 = vst [vmem:[#allocation8 + $0xc] sm:$0xf] %v3365
    %3382 = vst [vmem:[#allocation8 + $0x10] sm:$0xf] %v3366
    %3383 = vst [vmem:[#allocation8 + $0x14] sm:$0xf] %v3367
    %3384 = vst [vmem:[#allocation8 + $0x18] sm:$0xf] %v3368
    %3385 = vst [vmem:[#allocation8 + $0x1c] sm:$0xf] %v3369
    %3386 = vst [vmem:[#allocation8 + $0x20] sm:$0xf] %v3370
    %3387 = vst [vmem:[#allocation8 + $0x24] sm:$0xf] %v3371
    %3388 = vst [vmem:[#allocation8 + $0x28] sm:$0xf] %v3372
    %3389 = vst [vmem:[#allocation8 + $0x2c] sm:$0xf] %v3373
    %3390 = vst [vmem:[#allocation8 + $0x30] sm:$0xf] %v3374
    %3391 = vst [vmem:[#allocation8 + $0x34] sm:$0xf] %v3375
    %3392 = vst [vmem:[#allocation8 + $0x38] sm:$0xf] %v3376
    %3393 = vst [vmem:[#allocation8 + $0x3c] sm:$0xf] %v3377
    %3394 = vst [vmem:[#allocation9] sm:$0xff] %v1863
    %3395 = vst [vmem:[#allocation9 + $0x8] sm:$0xff] %v1864
    // Predicated region
    $region42: #{tpu_custom_call.1} parent=1 // pred_check
      _
    $region43: #{tpu_custom_call.1} parent=1 // pred_check_branch
      %3397 = sbr.rel (0) target = $region45
    $region44: #{tpu_custom_call.1} parent=1 // pred_region
      %s3399 = ssub.s32 1024, 1024
      %3400 = vsyncadd [#allocation4], %s3399
      %s3401 = sshll.u32 [#allocation8], 4
      %s3402 = int_to_ptr.vmem [resolvable:$true] %s3401
      %3407 = dma.vmem_to_hbm [thread:$0]  %s3402, 1024, %s6, [#allocation4], 64, 64, 4
    $region45: #{tpu_custom_call.1} parent=1 // pred_fallthru
      _
    // Predicated region
    $region46: #{tpu_custom_call.1} parent=1 // pred_check
      _
    $region47: #{tpu_custom_call.1} parent=1 // pred_check_branch
      %3409 = sbr.rel (0) target = $region49
    $region48: #{tpu_custom_call.1} parent=1 // pred_region
      %s3411 = ssub.s32 256, 256
      %3412 = vsyncadd [#allocation10], %s3411
      %s3413 = sshll.u32 [#allocation9], 4
      %s3414 = int_to_ptr.vmem [resolvable:$true] %s3413
      %3419 = dma.vmem_to_hbm [thread:$0]  %s3414, 256, %s7, [#allocation10], 128, 128, 8
    $region49: #{tpu_custom_call.1} parent=1 // pred_fallthru
      _
    // Predicated region
    $region50: #{tpu_custom_call.1} parent=1 // pred_check
      _
    $region51: #{tpu_custom_call.1} parent=1 // pred_check_branch
      %3421 = sbr.rel (0) target = $region53
    $region52: #{tpu_custom_call.1} parent=1 // pred_region
      %3422 = dma.done [#allocation4], 1024
    $region53: #{tpu_custom_call.1} parent=1 // pred_fallthru
      _
    // Predicated region
    $region54: #{tpu_custom_call.1} parent=1 // pred_check
      _
    $region55: #{tpu_custom_call.1} parent=1 // pred_check_branch
      %3424 = sbr.rel (0) target = $region57
    $region56: #{tpu_custom_call.1} parent=1 // pred_region
      %3425 = dma.done [#allocation10], 256
    $region57: #{tpu_custom_call.1} parent=1 // pred_fallthru
      _
    %3426 = vsyncpa [#allocation3], 1
    %3427 = vsyncpa [#allocation6], 1
    %3428 = vsyncpa [#allocation4], 1
    %3429 = vsyncpa [#allocation10], 1

</llo_original>
